<compile_context>
chip_gen: v6e
topology: v6e:2x2x1
jax: 0.10.0
libtpu: 0.0.40
codegen_flags: <defaults>
</compile_context>

<pallas_src>
import functools

import jax
import jax.numpy as jnp
from jax import lax
from jax.experimental import pallas as pl
from jax.experimental.pallas import tpu as pltpu


def _round_up(x, m):
    return ((x + m - 1) // m) * m


def _default_batch_blocks():
    """2 on chips with two TensorCores (v7x); 1 on v5e/v6e.

    On a single-TC chip a batch split would double the number of sequential
    recurrence steps for no gain, so it is only enabled when a second core can
    actually take the other half of the batch.
    """
    try:
        kind = jax.devices()[0].device_kind.lower()
    except Exception:
        return 1
    return 2 if ("v7" in kind or "7x" in kind) else 1


def _vmem_budget_bytes():
    """Usable VMEM budget (pipeline buffers + scratch), per TensorCore."""
    try:
        cap = int(pltpu.get_tpu_info().vmem_capacity_bytes)
    except Exception:
        cap = 64 * 1024 * 1024          # conservative: v7x has 64 MiB / TC
    return max(32 * 1024 * 1024, min(int(cap * 0.7), 100 * 1024 * 1024))


def _lstm_recurrence_kernel(xw_ref, whh_hbm_ref,
                            h_seq_ref, c_final_ref,
                            h_sc, c_sc, whh_vmem, whh_sem,
                            *, hidden_size, time_chunk, unroll):
    """One grid step == `time_chunk` LSTM timesteps for one batch block.

    grid = (batch_blocks ['parallel'], time_chunks ['arbitrary'])

    xw_ref      : (Tc, Bb, 4H) bf16  precomputed x_t @ W_ih^T + (b_ih + b_hh)
    whh_hbm_ref : (H, 4H)      bf16  recurrent weight, left in HBM (pl.ANY)
    h_seq_ref   : (Tc, Bb, H)        hidden states for this chunk
    c_final_ref : (1, Bb, H)   f32   resident output, written on the last chunk
    h_sc        : (Bb, H)      bf16  carried hidden state across time chunks
    c_sc        : (Bb, H)      f32   carried cell state across time chunks
    whh_vmem    : (H, 4H)      bf16  single-buffered VMEM copy of W_hh^T
    """
    c = pl.program_id(1)
    H = hidden_size

    @pl.when(c == 0)
    def _init():
        # Stage W_hh^T into VMEM once per core / batch block (single buffer)
        # and overlap the DMA with zeroing the carried state (module.reset()).
        cp = pltpu.make_async_copy(whh_hbm_ref, whh_vmem, whh_sem)
        cp.start()
        h_sc[...] = jnp.zeros_like(h_sc)
        c_sc[...] = jnp.zeros_like(c_sc)
        cp.wait()

    store_f32 = h_seq_ref.dtype == jnp.float32

    def step(s, carry):
        h_prev, c_prev = carry            # bf16 (Bb, H), f32 (Bb, H)
        # Read W_hh^T from VMEM inside the step: hoisting the loaded value
        # above the unrolled loop would pin H*4H*2 bytes of vregs and spill.
        gates = jnp.dot(h_prev, whh_vmem[...],
                        preferred_element_type=jnp.float32) + xw_ref[s]
        i_g = jax.nn.sigmoid(gates[:, 0 * H:1 * H])
        f_g = jax.nn.sigmoid(gates[:, 1 * H:2 * H])
        g_g = jnp.tanh(gates[:, 2 * H:3 * H])
        o_g = jax.nn.sigmoid(gates[:, 3 * H:4 * H])
        c_new = f_g * c_prev + i_g * g_g
        h_new = o_g * jnp.tanh(c_new)
        h_bf = h_new.astype(jnp.bfloat16)             # single cast site / step
        h_seq_ref[s] = h_new if store_f32 else h_bf
        return h_bf, c_new

    h_last, c_last = lax.fori_loop(0, time_chunk, step,
                                   (h_sc[...], c_sc[...]), unroll=unroll)
    h_sc[...] = h_last
    c_sc[...] = c_last

    # c_final is a resident output block (constant index along the time axis);
    # write it only once, at the end of the last chunk.  Any ragged-T padding
    # is at the FRONT and is an exact no-op on the state, so this is step T-1.
    @pl.when(c == pl.num_programs(1) - 1)
    def _finalize():
        c_final_ref[0] = c_last.astype(c_final_ref.dtype)


def awd_lstm_layer_forward(x, w_ih, w_hh, b_ih, b_hh, *,
                           time_chunk=32, batch_blocks=None,
                           h_dtype=jnp.bfloat16):
    """Pallas forward of _AwdLSTMLayer (eval mode, hidden reset to zeros).

    Args:
      x:     (T, B, I) float32   time-major, like torch.nn.LSTM default
      w_ih:  (4H, I)   float32   weight_ih_l0
      w_hh:  (4H, H)   float32   weight_hh_l0_raw (WeightDrop eval == identity)
      b_ih:  (4H,)     float32
      b_hh:  (4H,)     float32
      time_chunk:   requested timesteps per grid step (clamped by VMEM budget)
      batch_blocks: batch blocks for the leading 'parallel' grid axis
                    (None -> 2 on v7x, 1 on v5e/v6e)
      h_dtype:      dtype of the returned hidden sequence `h` (bf16 halves the
                    writeback stream; pass jnp.float32 for f32 output parity)

    Returns a dict mirroring AwdLSTMLayerOutput.
    """
    T, B, I = x.shape
    H = w_hh.shape[1]
    assert w_ih.shape == (4 * H, I) and w_hh.shape == (4 * H, H)
    assert b_ih.shape == (4 * H,) and b_hh.shape == (4 * H,)

    # ---- Pad H per gate block to a lane multiple (128) so in-kernel gate
    # slicing is lane-aligned.  Zero-padded gate units stay exactly zero
    # through the recurrence, so the padding is exact and sliced off at the end.
    Hp = _round_up(H, 128)
    if Hp != H:
        ph = Hp - H
        w_ih = jnp.pad(w_ih.reshape(4, H, I),
                       ((0, 0), (0, ph), (0, 0))).reshape(4 * Hp, I)
        w_hh = jnp.pad(w_hh.reshape(4, H, H),
                       ((0, 0), (0, ph), (0, ph))).reshape(4 * Hp, Hp)
        b_ih = jnp.pad(b_ih.reshape(4, H), ((0, 0), (0, ph))).reshape(4 * Hp)
        b_hh = jnp.pad(b_hh.reshape(4, H), ((0, 0), (0, ph))).reshape(4 * Hp)

    # ---- Batch blocking: leading 'parallel' grid axis (sharded across the two
    # TensorCores on v7x).  Per-block batch padded to 8 (<=8) or 16 (>8) for
    # bf16 sublane packing.
    nb = _default_batch_blocks() if batch_blocks is None else max(1, int(batch_blocks))
    bb = -(-B // nb)
    bb = _round_up(bb, 8) if bb <= 8 else _round_up(bb, 16)
    Bp = bb * nb
    xp = jnp.pad(x, ((0, 0), (0, Bp - B), (0, 0))) if Bp != B else x

    # ---- Hoisted input projection: one (T*Bp, I) x (I, 4Hp) bf16 MXU matmul
    # with f32 accumulation, both biases folded in, emitted in bf16 (halves
    # the dominant HBM read and the largest double-buffered VMEM block).
    bias = (b_ih + b_hh).astype(jnp.float32)
    xw = jnp.dot(xp.reshape(T * Bp, I).astype(jnp.bfloat16),
                 jnp.transpose(w_ih).astype(jnp.bfloat16),
                 preferred_element_type=jnp.float32)
    xw = (xw + bias[None, :]).astype(jnp.bfloat16).reshape(T, Bp, 4 * Hp)

    # ---- Time chunking: derive chunk size from the per-chip VMEM budget, then
    # FRONT-pad time to a multiple of it.  Zero xw rows on a zero initial state
    # leave the state exactly zero, so front padding is an exact no-op and
    # awkward T never degrades the chunk size (no tc->1 collapse).
    budget = _vmem_budget_bytes()
    h_isize = jnp.dtype(h_dtype).itemsize
    fixed = (Hp * 4 * Hp * 2                       # W_hh^T VMEM scratch (bf16)
             + bb * Hp * (2 + 4)                   # carried h (bf16) + c (f32)
             + 2 * bb * Hp * 4)                    # c_final output buffers (f32)
    per_tc = 2 * bb * 4 * Hp * 2 + 2 * bb * Hp * h_isize   # xw + h_seq, 2 buffers
    tc_max = max(1, min(int(time_chunk), (budget - fixed) // per_tc))
    n_chunks = -(-T // tc_max)
    tc = -(-T // n_chunks)          # balanced chunk size, minimal padding
    Tp = tc * n_chunks
    if Tp != T:
        xw = jnp.pad(xw, ((Tp - T, 0), (0, 0), (0, 0)))

    # Recurrent weight, pre-transposed, bf16 for the MXU (f32 accumulation).
    whh_t = jnp.transpose(w_hh).astype(jnp.bfloat16)          # (Hp, 4Hp)

    # Unroll the inner loop only while the per-step f32 gate tile stays well
    # under the 256 KiB vreg file; otherwise let the loop roll (vreg pressure).
    unroll = (bb * 4 * Hp * 4) <= (256 * 1024) // 3

    kernel = functools.partial(_lstm_recurrence_kernel,
                               hidden_size=Hp, time_chunk=tc, unroll=unroll)

    h_seq, c_final = pl.pallas_call(
        kernel,
        out_shape=(
            jax.ShapeDtypeStruct((Tp, Bp, Hp), h_dtype),      # h (full sequence)
            jax.ShapeDtypeStruct((1, Bp, Hp), jnp.float32),   # c_final
        ),
        grid_spec=pltpu.PrefetchScalarGridSpec(
            num_scalar_prefetch=0,
            grid=(nb, n_chunks),
            in_specs=[
                pl.BlockSpec((tc, bb, 4 * Hp), lambda b, c: (c, b, 0)),  # xw chunk
                pl.BlockSpec(memory_space=pl.ANY),                       # W_hh^T (HBM)
            ],
            out_specs=[
                pl.BlockSpec((tc, bb, Hp), lambda b, c: (c, b, 0)),      # h chunk
                pl.BlockSpec((1, bb, Hp), lambda b, c: (0, b, 0)),       # c_final
            ],
            scratch_shapes=[
                pltpu.VMEM((bb, Hp), jnp.bfloat16),      # carried h (bf16)
                pltpu.VMEM((bb, Hp), jnp.float32),       # carried c (f32)
                pltpu.VMEM((Hp, 4 * Hp), jnp.bfloat16),  # single-buffered W_hh^T
                pltpu.SemaphoreType.DMA(()),             # its copy semaphore
            ],
        ),
        compiler_params=pltpu.CompilerParams(
            dimension_semantics=("parallel", "arbitrary"),   # batch x time
            vmem_limit_bytes=int(budget),
        ),
    )(xw, whh_t)

    h_seq = h_seq[Tp - T:, :B, :H]                # drop front time / batch / H pad
    c_final = c_final[:, :B, :H].astype(x.dtype)
    h_final = h_seq[T - 1:T].astype(x.dtype)      # exact upcast; equals h[-1]
    zeros_init = jnp.zeros((1, B, H), dtype=x.dtype)

    # TODO(synk): training-mode LockedDropout / WeightDrop use torch bernoulli
    # RNG (no bit-exact Pallas equivalent); eval mode (identity) is implemented.
    return {
        "dropped_out_input": x,   # LockedDropout is identity in eval mode
        "h_init": zeros_init,
        "c_init": zeros_init,
        "h_final": h_final,
        "c_final": c_final,
        "h": h_seq,
    }


def _reference_lstm(x, w_ih, w_hh, b_ih, b_hh):
    """Pure-JAX f32 reference (same math as torch.nn.LSTM, single layer)."""
    H = w_hh.shape[1]

    def step(carry, x_t):
        h, c = carry
        gates = x_t @ w_ih.T + h @ w_hh.T + b_ih + b_hh
        i = jax.nn.sigmoid(gates[:, 0 * H:1 * H])
        f = jax.nn.sigmoid(gates[:, 1 * H:2 * H])
        g = jnp.tanh(gates[:, 2 * H:3 * H])
        o = jax.nn.sigmoid(gates[:, 3 * H:4 * H])
        c_new = f * c + i * g
        h_new = o * jnp.tanh(c_new)
        return (h_new, c_new), h_new

    B = x.shape[1]
    h0 = jnp.zeros((B, H), x.dtype)
    (h_f, c_f), h_seq = jax.lax.scan(step, (h0, h0), x)
    return h_seq, h_f[None], c_f[None]


def _make_inputs(key, T, B, I, H):
    kx, k1, k2, k3, k4 = jax.random.split(key, 5)
    bound = 1.0 / (H ** 0.5)     # PyTorch LSTM init range U(-1/sqrt(H), 1/sqrt(H))
    x = jax.random.normal(kx, (T, B, I), dtype=jnp.float32)
    w_ih = jax.random.uniform(k1, (4 * H, I), jnp.float32, -bound, bound)
    w_hh = jax.random.uniform(k2, (4 * H, H), jnp.float32, -bound, bound)
    b_ih = jax.random.uniform(k3, (4 * H,), jnp.float32, -bound, bound)
    b_hh = jax.random.uniform(k4, (4 * H,), jnp.float32, -bound, bound)
    return x, w_ih, w_hh, b_ih, b_hh


def _check(out, x, w_ih, w_hh, b_ih, b_hh, tol):
    T, B, _ = x.shape
    H = w_hh.shape[1]
    h_ref, hT_ref, cT_ref = _reference_lstm(x, w_ih, w_hh, b_ih, b_hh)
    assert out["h"].shape == (T, B, H)
    assert out["h_final"].shape == (1, B, H) and out["c_final"].shape == (1, B, H)
    assert jnp.allclose(out["h"].astype(jnp.float32), h_ref, atol=tol, rtol=tol)
    assert jnp.allclose(out["h_final"], hT_ref, atol=tol, rtol=tol)
    assert jnp.allclose(out["c_final"], cT_ref, atol=tol, rtol=tol)


if __name__ == "__main__":
    key = jax.random.PRNGKey(0)
    k_a, k_b = jax.random.split(key)

    # Config A: lane-aligned H, T fits one chunk; batch-block count auto-detected.
    T, B, I, H = 16, 4, 64, 128
    args_a = _make_inputs(k_a, T, B, I, H)
    out_a = jax.jit(awd_lstm_layer_forward)(*args_a)
    jax.block_until_ready(out_a)
    _check(out_a, *args_a, tol=3e-2)

    # Config B: exercises front time-padding (T=7 -> 8), H padding (96 -> 128),
    # batch padding (3 -> 16) and the 2-block 'parallel' (megacore) batch split.
    T2, B2, I2, H2 = 7, 3, 40, 96
    args_b = _make_inputs(k_b, T2, B2, I2, H2)
    fwd_b = functools.partial(awd_lstm_layer_forward, time_chunk=4, batch_blocks=2)
    out_b = jax.jit(fwd_b)(*args_b)
    jax.block_until_ready(out_b)
    _check(out_b, *args_b, tol=3e-2)

    print("KERNEL_OK")
</pallas_src>

<mosaic_0001>
module attributes {stable_mosaic.version = 11 : i64} {
  func.func @_lstm_recurrence_kernel(%arg0: i32, %arg1: i32, %arg2: memref<16x8x512xbf16, #tpu.memory_space<vmem>>, %arg3: memref<128x512xbf16, #tpu.memory_space<any>>, %arg4: memref<16x8x128xbf16, #tpu.memory_space<vmem>>, %arg5: memref<1x8x128xf32, #tpu.memory_space<vmem>>, %arg6: memref<8x128xbf16, #tpu.memory_space<vmem>>, %arg7: memref<8x128xf32, #tpu.memory_space<vmem>>, %arg8: memref<128x512xbf16, #tpu.memory_space<vmem>>, %arg9: memref<!tpu.dma_semaphore, #tpu.memory_space<semaphore_mem>>) attributes {dimension_semantics = [#tpu.dimension_semantics<parallel>, #tpu.dimension_semantics<arbitrary>], iteration_bounds = array<i64: 1, 1>, scalar_prefetch = 0 : i64, scratch_operands = 4 : i64, tpu.core_type = #tpu.core_type<tc>, window_params = [{transform_indices = @transform_0, window_bounds = array<i64: 16, 8, 512>}, {}, {transform_indices = @transform_2, window_bounds = array<i64: 16, 8, 128>}, {transform_indices = @transform_3, window_bounds = array<i64: 1, 8, 128>}]} {
    %c0_i32 = arith.constant 0 : i32
    %0 = arith.cmpi eq, %arg1, %c0_i32 : i32
    %1 = arith.extui %0 : i1 to i32
    %c0_i32_0 = arith.constant 0 : i32
    %2 = arith.cmpi ne, %1, %c0_i32_0 : i32
    scf.if %2 {
      tpu.enqueue_dma source(%arg3 : memref<128x512xbf16, #tpu.memory_space<any>>) target(%arg8 : memref<128x512xbf16, #tpu.memory_space<vmem>>) target_semaphore(%arg9 : memref<!tpu.dma_semaphore, #tpu.memory_space<semaphore_mem>>)
      %cst_170 = arith.constant 0.000000e+00 : bf16
      %602 = vector.broadcast %cst_170 : bf16 to vector<8x128xbf16>
      %c0_171 = arith.constant 0 : index
      %c0_172 = arith.constant 0 : index
      %603 = vector.load %arg6[%c0_171, %c0_172] : memref<8x128xbf16, #tpu.memory_space<vmem>>, vector<8x128xbf16>
      tpu.vector_store %arg6[%c0_171, %c0_172], %602 {strides = array<i32>} : memref<8x128xbf16, #tpu.memory_space<vmem>>, vector<8x128xbf16>,
      %cst_173 = arith.constant 0.000000e+00 : f32
      %604 = vector.broadcast %cst_173 : f32 to vector<8x128xf32>
      %c0_174 = arith.constant 0 : index
      %c0_175 = arith.constant 0 : index
      %605 = vector.load %arg7[%c0_174, %c0_175] : memref<8x128xf32, #tpu.memory_space<vmem>>, vector<8x128xf32>
      tpu.vector_store %arg7[%c0_174, %c0_175], %604 {strides = array<i32>} : memref<8x128xf32, #tpu.memory_space<vmem>>, vector<8x128xf32>,
      tpu.wait_dma2 semaphore(%arg9 : memref<!tpu.dma_semaphore, #tpu.memory_space<semaphore_mem>>) src(%arg3 : memref<128x512xbf16, #tpu.memory_space<any>>) dst(%arg8 : memref<128x512xbf16, #tpu.memory_space<vmem>>)
    } else {
    }
    %c0 = arith.constant 0 : index
    %c0_1 = arith.constant 0 : index
    %3 = vector.load %arg6[%c0, %c0_1] : memref<8x128xbf16, #tpu.memory_space<vmem>>, vector<8x128xbf16>
    %c0_2 = arith.constant 0 : index
    %c0_3 = arith.constant 0 : index
    %4 = vector.load %arg7[%c0_2, %c0_3] : memref<8x128xf32, #tpu.memory_space<vmem>>, vector<8x128xf32>
    %c0_i32_4 = arith.constant 0 : i32
    %c0_5 = arith.constant 0 : index
    %c0_6 = arith.constant 0 : index
    %5 = vector.load %arg8[%c0_5, %c0_6] : memref<128x512xbf16, #tpu.memory_space<vmem>>, vector<128x512xbf16>
    %cst = arith.constant dense<0.000000e+00> : vector<8x512xf32>
    %6 = tpu.matmul %3, %5, %cst {dimension_numbers = #tpu.dot_dimension_numbers<[1], [0], [0], [1], [0, 0, 1, 1], [], []>} : vector<8x128xbf16>, vector<128x512xbf16>, vector<8x512xf32> -> vector<8x512xf32>
    %7 = arith.index_cast %c0_i32_4 : i32 to index
    %c0_7 = arith.constant 0 : index
    %c0_8 = arith.constant 0 : index
    %8 = vector.load %arg2[%7, %c0_7, %c0_8] : memref<16x8x512xbf16, #tpu.memory_space<vmem>>, vector<1x8x512xbf16>
    %9 = vector.shape_cast %8 : vector<1x8x512xbf16> to vector<8x512xbf16>
    %10 = arith.extf %9 : vector<8x512xbf16> to vector<8x512xf32>
    %11 = arith.addf %6, %10 : vector<8x512xf32>
    %12 = vector.extract_strided_slice %11 {offsets = [0, 0], sizes = [8, 128], strides = [1, 1]} : vector<8x512xf32> to vector<8x128xf32>
    %13 = arith.negf %12 : vector<8x128xf32>
    %14 = math.exp %13 : vector<8x128xf32>
    %cst_9 = arith.constant 1.000000e+00 : f32
    %15 = vector.broadcast %cst_9 : f32 to vector<8x128xf32>
    %16 = arith.addf %15, %14 : vector<8x128xf32>
    %17 = arith.divf %15, %16 : vector<8x128xf32>
    %18 = vector.extract_strided_slice %11 {offsets = [0, 128], sizes = [8, 128], strides = [1, 1]} : vector<8x512xf32> to vector<8x128xf32>
    %19 = arith.negf %18 : vector<8x128xf32>
    %20 = math.exp %19 : vector<8x128xf32>
    %cst_10 = arith.constant 1.000000e+00 : f32
    %21 = vector.broadcast %cst_10 : f32 to vector<8x128xf32>
    %22 = arith.addf %21, %20 : vector<8x128xf32>
    %23 = arith.divf %21, %22 : vector<8x128xf32>
    %24 = vector.extract_strided_slice %11 {offsets = [0, 256], sizes = [8, 128], strides = [1, 1]} : vector<8x512xf32> to vector<8x128xf32>
    %25 = math.tanh %24 : vector<8x128xf32>
    %26 = vector.extract_strided_slice %11 {offsets = [0, 384], sizes = [8, 128], strides = [1, 1]} : vector<8x512xf32> to vector<8x128xf32>
    %27 = arith.negf %26 : vector<8x128xf32>
    %28 = math.exp %27 : vector<8x128xf32>
    %cst_11 = arith.constant 1.000000e+00 : f32
    %29 = vector.broadcast %cst_11 : f32 to vector<8x128xf32>
    %30 = arith.addf %29, %28 : vector<8x128xf32>
    %31 = arith.divf %29, %30 : vector<8x128xf32>
    %32 = arith.mulf %23, %4 : vector<8x128xf32>
    %33 = arith.mulf %17, %25 : vector<8x128xf32>
    %34 = arith.addf %32, %33 : vector<8x128xf32>
    %35 = math.tanh %34 : vector<8x128xf32>
    %36 = arith.mulf %31, %35 : vector<8x128xf32>
    %37 = arith.truncf %36 : vector<8x128xf32> to vector<8x128xbf16>
    %38 = arith.index_cast %c0_i32_4 : i32 to index
    %c0_12 = arith.constant 0 : index
    %c0_13 = arith.constant 0 : index
    %39 = vector.load %arg4[%38, %c0_12, %c0_13] : memref<16x8x128xbf16, #tpu.memory_space<vmem>>, vector<1x8x128xbf16>
    %40 = vector.shape_cast %39 : vector<1x8x128xbf16> to vector<8x128xbf16>
    %41 = vector.shape_cast %37 : vector<8x128xbf16> to vector<1x8x128xbf16>
    tpu.vector_store %arg4[%38, %c0_12, %c0_13], %41 {strides = array<i32>} : memref<16x8x128xbf16, #tpu.memory_space<vmem>>, vector<1x8x128xbf16>,
    %c1_i32 = arith.constant 1 : i32
    %c0_14 = arith.constant 0 : index
    %c0_15 = arith.constant 0 : index
    %42 = vector.load %arg8[%c0_14, %c0_15] : memref<128x512xbf16, #tpu.memory_space<vmem>>, vector<128x512xbf16>
    %cst_16 = arith.constant dense<0.000000e+00> : vector<8x512xf32>
    %43 = tpu.matmul %37, %42, %cst_16 {dimension_numbers = #tpu.dot_dimension_numbers<[1], [0], [0], [1], [0, 0, 1, 1], [], []>} : vector<8x128xbf16>, vector<128x512xbf16>, vector<8x512xf32> -> vector<8x512xf32>
    %44 = arith.index_cast %c1_i32 : i32 to index
    %c0_17 = arith.constant 0 : index
    %c0_18 = arith.constant 0 : index
    %45 = vector.load %arg2[%44, %c0_17, %c0_18] : memref<16x8x512xbf16, #tpu.memory_space<vmem>>, vector<1x8x512xbf16>
    %46 = vector.shape_cast %45 : vector<1x8x512xbf16> to vector<8x512xbf16>
    %47 = arith.extf %46 : vector<8x512xbf16> to vector<8x512xf32>
    %48 = arith.addf %43, %47 : vector<8x512xf32>
    %49 = vector.extract_strided_slice %48 {offsets = [0, 0], sizes = [8, 128], strides = [1, 1]} : vector<8x512xf32> to vector<8x128xf32>
    %50 = arith.negf %49 : vector<8x128xf32>
    %51 = math.exp %50 : vector<8x128xf32>
    %cst_19 = arith.constant 1.000000e+00 : f32
    %52 = vector.broadcast %cst_19 : f32 to vector<8x128xf32>
    %53 = arith.addf %52, %51 : vector<8x128xf32>
    %54 = arith.divf %52, %53 : vector<8x128xf32>
    %55 = vector.extract_strided_slice %48 {offsets = [0, 128], sizes = [8, 128], strides = [1, 1]} : vector<8x512xf32> to vector<8x128xf32>
    %56 = arith.negf %55 : vector<8x128xf32>
    %57 = math.exp %56 : vector<8x128xf32>
    %cst_20 = arith.constant 1.000000e+00 : f32
    %58 = vector.broadcast %cst_20 : f32 to vector<8x128xf32>
    %59 = arith.addf %58, %57 : vector<8x128xf32>
    %60 = arith.divf %58, %59 : vector<8x128xf32>
    %61 = vector.extract_strided_slice %48 {offsets = [0, 256], sizes = [8, 128], strides = [1, 1]} : vector<8x512xf32> to vector<8x128xf32>
    %62 = math.tanh %61 : vector<8x128xf32>
    %63 = vector.extract_strided_slice %48 {offsets = [0, 384], sizes = [8, 128], strides = [1, 1]} : vector<8x512xf32> to vector<8x128xf32>
    %64 = arith.negf %63 : vector<8x128xf32>
    %65 = math.exp %64 : vector<8x128xf32>
    %cst_21 = arith.constant 1.000000e+00 : f32
    %66 = vector.broadcast %cst_21 : f32 to vector<8x128xf32>
    %67 = arith.addf %66, %65 : vector<8x128xf32>
    %68 = arith.divf %66, %67 : vector<8x128xf32>
    %69 = arith.mulf %60, %34 : vector<8x128xf32>
    %70 = arith.mulf %54, %62 : vector<8x128xf32>
    %71 = arith.addf %69, %70 : vector<8x128xf32>
    %72 = math.tanh %71 : vector<8x128xf32>
    %73 = arith.mulf %68, %72 : vector<8x128xf32>
    %74 = arith.truncf %73 : vector<8x128xf32> to vector<8x128xbf16>
    %75 = arith.index_cast %c1_i32 : i32 to index
    %c0_22 = arith.constant 0 : index
    %c0_23 = arith.constant 0 : index
    %76 = vector.load %arg4[%75, %c0_22, %c0_23] : memref<16x8x128xbf16, #tpu.memory_space<vmem>>, vector<1x8x128xbf16>
    %77 = vector.shape_cast %76 : vector<1x8x128xbf16> to vector<8x128xbf16>
    %78 = vector.shape_cast %74 : vector<8x128xbf16> to vector<1x8x128xbf16>
    tpu.vector_store %arg4[%75, %c0_22, %c0_23], %78 {strides = array<i32>} : memref<16x8x128xbf16, #tpu.memory_space<vmem>>, vector<1x8x128xbf16>,
    %c2_i32 = arith.constant 2 : i32
    %c0_24 = arith.constant 0 : index
    %c0_25 = arith.constant 0 : index
    %79 = vector.load %arg8[%c0_24, %c0_25] : memref<128x512xbf16, #tpu.memory_space<vmem>>, vector<128x512xbf16>
    %cst_26 = arith.constant dense<0.000000e+00> : vector<8x512xf32>
    %80 = tpu.matmul %74, %79, %cst_26 {dimension_numbers = #tpu.dot_dimension_numbers<[1], [0], [0], [1], [0, 0, 1, 1], [], []>} : vector<8x128xbf16>, vector<128x512xbf16>, vector<8x512xf32> -> vector<8x512xf32>
    %81 = arith.index_cast %c2_i32 : i32 to index
    %c0_27 = arith.constant 0 : index
    %c0_28 = arith.constant 0 : index
    %82 = vector.load %arg2[%81, %c0_27, %c0_28] : memref<16x8x512xbf16, #tpu.memory_space<vmem>>, vector<1x8x512xbf16>
    %83 = vector.shape_cast %82 : vector<1x8x512xbf16> to vector<8x512xbf16>
    %84 = arith.extf %83 : vector<8x512xbf16> to vector<8x512xf32>
    %85 = arith.addf %80, %84 : vector<8x512xf32>
    %86 = vector.extract_strided_slice %85 {offsets = [0, 0], sizes = [8, 128], strides = [1, 1]} : vector<8x512xf32> to vector<8x128xf32>
    %87 = arith.negf %86 : vector<8x128xf32>
    %88 = math.exp %87 : vector<8x128xf32>
    %cst_29 = arith.constant 1.000000e+00 : f32
    %89 = vector.broadcast %cst_29 : f32 to vector<8x128xf32>
    %90 = arith.addf %89, %88 : vector<8x128xf32>
    %91 = arith.divf %89, %90 : vector<8x128xf32>
    %92 = vector.extract_strided_slice %85 {offsets = [0, 128], sizes = [8, 128], strides = [1, 1]} : vector<8x512xf32> to vector<8x128xf32>
    %93 = arith.negf %92 : vector<8x128xf32>
    %94 = math.exp %93 : vector<8x128xf32>
    %cst_30 = arith.constant 1.000000e+00 : f32
    %95 = vector.broadcast %cst_30 : f32 to vector<8x128xf32>
    %96 = arith.addf %95, %94 : vector<8x128xf32>
    %97 = arith.divf %95, %96 : vector<8x128xf32>
    %98 = vector.extract_strided_slice %85 {offsets = [0, 256], sizes = [8, 128], strides = [1, 1]} : vector<8x512xf32> to vector<8x128xf32>
    %99 = math.tanh %98 : vector<8x128xf32>
    %100 = vector.extract_strided_slice %85 {offsets = [0, 384], sizes = [8, 128], strides = [1, 1]} : vector<8x512xf32> to vector<8x128xf32>
    %101 = arith.negf %100 : vector<8x128xf32>
    %102 = math.exp %101 : vector<8x128xf32>
    %cst_31 = arith.constant 1.000000e+00 : f32
    %103 = vector.broadcast %cst_31 : f32 to vector<8x128xf32>
    %104 = arith.addf %103, %102 : vector<8x128xf32>
    %105 = arith.divf %103, %104 : vector<8x128xf32>
    %106 = arith.mulf %97, %71 : vector<8x128xf32>
    %107 = arith.mulf %91, %99 : vector<8x128xf32>
    %108 = arith.addf %106, %107 : vector<8x128xf32>
    %109 = math.tanh %108 : vector<8x128xf32>
    %110 = arith.mulf %105, %109 : vector<8x128xf32>
    %111 = arith.truncf %110 : vector<8x128xf32> to vector<8x128xbf16>
    %112 = arith.index_cast %c2_i32 : i32 to index
    %c0_32 = arith.constant 0 : index
    %c0_33 = arith.constant 0 : index
    %113 = vector.load %arg4[%112, %c0_32, %c0_33] : memref<16x8x128xbf16, #tpu.memory_space<vmem>>, vector<1x8x128xbf16>
    %114 = vector.shape_cast %113 : vector<1x8x128xbf16> to vector<8x128xbf16>
    %115 = vector.shape_cast %111 : vector<8x128xbf16> to vector<1x8x128xbf16>
    tpu.vector_store %arg4[%112, %c0_32, %c0_33], %115 {strides = array<i32>} : memref<16x8x128xbf16, #tpu.memory_space<vmem>>, vector<1x8x128xbf16>,
    %c3_i32 = arith.constant 3 : i32
    %c0_34 = arith.constant 0 : index
    %c0_35 = arith.constant 0 : index
    %116 = vector.load %arg8[%c0_34, %c0_35] : memref<128x512xbf16, #tpu.memory_space<vmem>>, vector<128x512xbf16>
    %cst_36 = arith.constant dense<0.000000e+00> : vector<8x512xf32>
    %117 = tpu.matmul %111, %116, %cst_36 {dimension_numbers = #tpu.dot_dimension_numbers<[1], [0], [0], [1], [0, 0, 1, 1], [], []>} : vector<8x128xbf16>, vector<128x512xbf16>, vector<8x512xf32> -> vector<8x512xf32>
    %118 = arith.index_cast %c3_i32 : i32 to index
    %c0_37 = arith.constant 0 : index
    %c0_38 = arith.constant 0 : index
    %119 = vector.load %arg2[%118, %c0_37, %c0_38] : memref<16x8x512xbf16, #tpu.memory_space<vmem>>, vector<1x8x512xbf16>
    %120 = vector.shape_cast %119 : vector<1x8x512xbf16> to vector<8x512xbf16>
    %121 = arith.extf %120 : vector<8x512xbf16> to vector<8x512xf32>
    %122 = arith.addf %117, %121 : vector<8x512xf32>
    %123 = vector.extract_strided_slice %122 {offsets = [0, 0], sizes = [8, 128], strides = [1, 1]} : vector<8x512xf32> to vector<8x128xf32>
    %124 = arith.negf %123 : vector<8x128xf32>
    %125 = math.exp %124 : vector<8x128xf32>
    %cst_39 = arith.constant 1.000000e+00 : f32
    %126 = vector.broadcast %cst_39 : f32 to vector<8x128xf32>
    %127 = arith.addf %126, %125 : vector<8x128xf32>
    %128 = arith.divf %126, %127 : vector<8x128xf32>
    %129 = vector.extract_strided_slice %122 {offsets = [0, 128], sizes = [8, 128], strides = [1, 1]} : vector<8x512xf32> to vector<8x128xf32>
    %130 = arith.negf %129 : vector<8x128xf32>
    %131 = math.exp %130 : vector<8x128xf32>
    %cst_40 = arith.constant 1.000000e+00 : f32
    %132 = vector.broadcast %cst_40 : f32 to vector<8x128xf32>
    %133 = arith.addf %132, %131 : vector<8x128xf32>
    %134 = arith.divf %132, %133 : vector<8x128xf32>
    %135 = vector.extract_strided_slice %122 {offsets = [0, 256], sizes = [8, 128], strides = [1, 1]} : vector<8x512xf32> to vector<8x128xf32>
    %136 = math.tanh %135 : vector<8x128xf32>
    %137 = vector.extract_strided_slice %122 {offsets = [0, 384], sizes = [8, 128], strides = [1, 1]} : vector<8x512xf32> to vector<8x128xf32>
    %138 = arith.negf %137 : vector<8x128xf32>
    %139 = math.exp %138 : vector<8x128xf32>
    %cst_41 = arith.constant 1.000000e+00 : f32
    %140 = vector.broadcast %cst_41 : f32 to vector<8x128xf32>
    %141 = arith.addf %140, %139 : vector<8x128xf32>
    %142 = arith.divf %140, %141 : vector<8x128xf32>
    %143 = arith.mulf %134, %108 : vector<8x128xf32>
    %144 = arith.mulf %128, %136 : vector<8x128xf32>
    %145 = arith.addf %143, %144 : vector<8x128xf32>
    %146 = math.tanh %145 : vector<8x128xf32>
    %147 = arith.mulf %142, %146 : vector<8x128xf32>
    %148 = arith.truncf %147 : vector<8x128xf32> to vector<8x128xbf16>
    %149 = arith.index_cast %c3_i32 : i32 to index
    %c0_42 = arith.constant 0 : index
    %c0_43 = arith.constant 0 : index
    %150 = vector.load %arg4[%149, %c0_42, %c0_43] : memref<16x8x128xbf16, #tpu.memory_space<vmem>>, vector<1x8x128xbf16>
    %151 = vector.shape_cast %150 : vector<1x8x128xbf16> to vector<8x128xbf16>
    %152 = vector.shape_cast %148 : vector<8x128xbf16> to vector<1x8x128xbf16>
    tpu.vector_store %arg4[%149, %c0_42, %c0_43], %152 {strides = array<i32>} : memref<16x8x128xbf16, #tpu.memory_space<vmem>>, vector<1x8x128xbf16>,
    %c4_i32 = arith.constant 4 : i32
    %c0_44 = arith.constant 0 : index
    %c0_45 = arith.constant 0 : index
    %153 = vector.load %arg8[%c0_44, %c0_45] : memref<128x512xbf16, #tpu.memory_space<vmem>>, vector<128x512xbf16>
    %cst_46 = arith.constant dense<0.000000e+00> : vector<8x512xf32>
    %154 = tpu.matmul %148, %153, %cst_46 {dimension_numbers = #tpu.dot_dimension_numbers<[1], [0], [0], [1], [0, 0, 1, 1], [], []>} : vector<8x128xbf16>, vector<128x512xbf16>, vector<8x512xf32> -> vector<8x512xf32>
    %155 = arith.index_cast %c4_i32 : i32 to index
    %c0_47 = arith.constant 0 : index
    %c0_48 = arith.constant 0 : index
    %156 = vector.load %arg2[%155, %c0_47, %c0_48] : memref<16x8x512xbf16, #tpu.memory_space<vmem>>, vector<1x8x512xbf16>
    %157 = vector.shape_cast %156 : vector<1x8x512xbf16> to vector<8x512xbf16>
    %158 = arith.extf %157 : vector<8x512xbf16> to vector<8x512xf32>
    %159 = arith.addf %154, %158 : vector<8x512xf32>
    %160 = vector.extract_strided_slice %159 {offsets = [0, 0], sizes = [8, 128], strides = [1, 1]} : vector<8x512xf32> to vector<8x128xf32>
    %161 = arith.negf %160 : vector<8x128xf32>
    %162 = math.exp %161 : vector<8x128xf32>
    %cst_49 = arith.constant 1.000000e+00 : f32
    %163 = vector.broadcast %cst_49 : f32 to vector<8x128xf32>
    %164 = arith.addf %163, %162 : vector<8x128xf32>
    %165 = arith.divf %163, %164 : vector<8x128xf32>
    %166 = vector.extract_strided_slice %159 {offsets = [0, 128], sizes = [8, 128], strides = [1, 1]} : vector<8x512xf32> to vector<8x128xf32>
    %167 = arith.negf %166 : vector<8x128xf32>
    %168 = math.exp %167 : vector<8x128xf32>
    %cst_50 = arith.constant 1.000000e+00 : f32
    %169 = vector.broadcast %cst_50 : f32 to vector<8x128xf32>
    %170 = arith.addf %169, %168 : vector<8x128xf32>
    %171 = arith.divf %169, %170 : vector<8x128xf32>
    %172 = vector.extract_strided_slice %159 {offsets = [0, 256], sizes = [8, 128], strides = [1, 1]} : vector<8x512xf32> to vector<8x128xf32>
    %173 = math.tanh %172 : vector<8x128xf32>
    %174 = vector.extract_strided_slice %159 {offsets = [0, 384], sizes = [8, 128], strides = [1, 1]} : vector<8x512xf32> to vector<8x128xf32>
    %175 = arith.negf %174 : vector<8x128xf32>
    %176 = math.exp %175 : vector<8x128xf32>
    %cst_51 = arith.constant 1.000000e+00 : f32
    %177 = vector.broadcast %cst_51 : f32 to vector<8x128xf32>
    %178 = arith.addf %177, %176 : vector<8x128xf32>
    %179 = arith.divf %177, %178 : vector<8x128xf32>
    %180 = arith.mulf %171, %145 : vector<8x128xf32>
    %181 = arith.mulf %165, %173 : vector<8x128xf32>
    %182 = arith.addf %180, %181 : vector<8x128xf32>
    %183 = math.tanh %182 : vector<8x128xf32>
    %184 = arith.mulf %179, %183 : vector<8x128xf32>
    %185 = arith.truncf %184 : vector<8x128xf32> to vector<8x128xbf16>
    %186 = arith.index_cast %c4_i32 : i32 to index
    %c0_52 = arith.constant 0 : index
    %c0_53 = arith.constant 0 : index
    %187 = vector.load %arg4[%186, %c0_52, %c0_53] : memref<16x8x128xbf16, #tpu.memory_space<vmem>>, vector<1x8x128xbf16>
    %188 = vector.shape_cast %187 : vector<1x8x128xbf16> to vector<8x128xbf16>
    %189 = vector.shape_cast %185 : vector<8x128xbf16> to vector<1x8x128xbf16>
    tpu.vector_store %arg4[%186, %c0_52, %c0_53], %189 {strides = array<i32>} : memref<16x8x128xbf16, #tpu.memory_space<vmem>>, vector<1x8x128xbf16>,
    %c5_i32 = arith.constant 5 : i32
    %c0_54 = arith.constant 0 : index
    %c0_55 = arith.constant 0 : index
    %190 = vector.load %arg8[%c0_54, %c0_55] : memref<128x512xbf16, #tpu.memory_space<vmem>>, vector<128x512xbf16>
    %cst_56 = arith.constant dense<0.000000e+00> : vector<8x512xf32>
    %191 = tpu.matmul %185, %190, %cst_56 {dimension_numbers = #tpu.dot_dimension_numbers<[1], [0], [0], [1], [0, 0, 1, 1], [], []>} : vector<8x128xbf16>, vector<128x512xbf16>, vector<8x512xf32> -> vector<8x512xf32>
    %192 = arith.index_cast %c5_i32 : i32 to index
    %c0_57 = arith.constant 0 : index
    %c0_58 = arith.constant 0 : index
    %193 = vector.load %arg2[%192, %c0_57, %c0_58] : memref<16x8x512xbf16, #tpu.memory_space<vmem>>, vector<1x8x512xbf16>
    %194 = vector.shape_cast %193 : vector<1x8x512xbf16> to vector<8x512xbf16>
    %195 = arith.extf %194 : vector<8x512xbf16> to vector<8x512xf32>
    %196 = arith.addf %191, %195 : vector<8x512xf32>
    %197 = vector.extract_strided_slice %196 {offsets = [0, 0], sizes = [8, 128], strides = [1, 1]} : vector<8x512xf32> to vector<8x128xf32>
    %198 = arith.negf %197 : vector<8x128xf32>
    %199 = math.exp %198 : vector<8x128xf32>
    %cst_59 = arith.constant 1.000000e+00 : f32
    %200 = vector.broadcast %cst_59 : f32 to vector<8x128xf32>
    %201 = arith.addf %200, %199 : vector<8x128xf32>
    %202 = arith.divf %200, %201 : vector<8x128xf32>
    %203 = vector.extract_strided_slice %196 {offsets = [0, 128], sizes = [8, 128], strides = [1, 1]} : vector<8x512xf32> to vector<8x128xf32>
    %204 = arith.negf %203 : vector<8x128xf32>
    %205 = math.exp %204 : vector<8x128xf32>
    %cst_60 = arith.constant 1.000000e+00 : f32
    %206 = vector.broadcast %cst_60 : f32 to vector<8x128xf32>
    %207 = arith.addf %206, %205 : vector<8x128xf32>
    %208 = arith.divf %206, %207 : vector<8x128xf32>
    %209 = vector.extract_strided_slice %196 {offsets = [0, 256], sizes = [8, 128], strides = [1, 1]} : vector<8x512xf32> to vector<8x128xf32>
    %210 = math.tanh %209 : vector<8x128xf32>
    %211 = vector.extract_strided_slice %196 {offsets = [0, 384], sizes = [8, 128], strides = [1, 1]} : vector<8x512xf32> to vector<8x128xf32>
    %212 = arith.negf %211 : vector<8x128xf32>
    %213 = math.exp %212 : vector<8x128xf32>
    %cst_61 = arith.constant 1.000000e+00 : f32
    %214 = vector.broadcast %cst_61 : f32 to vector<8x128xf32>
    %215 = arith.addf %214, %213 : vector<8x128xf32>
    %216 = arith.divf %214, %215 : vector<8x128xf32>
    %217 = arith.mulf %208, %182 : vector<8x128xf32>
    %218 = arith.mulf %202, %210 : vector<8x128xf32>
    %219 = arith.addf %217, %218 : vector<8x128xf32>
    %220 = math.tanh %219 : vector<8x128xf32>
    %221 = arith.mulf %216, %220 : vector<8x128xf32>
    %222 = arith.truncf %221 : vector<8x128xf32> to vector<8x128xbf16>
    %223 = arith.index_cast %c5_i32 : i32 to index
    %c0_62 = arith.constant 0 : index
    %c0_63 = arith.constant 0 : index
    %224 = vector.load %arg4[%223, %c0_62, %c0_63] : memref<16x8x128xbf16, #tpu.memory_space<vmem>>, vector<1x8x128xbf16>
    %225 = vector.shape_cast %224 : vector<1x8x128xbf16> to vector<8x128xbf16>
    %226 = vector.shape_cast %222 : vector<8x128xbf16> to vector<1x8x128xbf16>
    tpu.vector_store %arg4[%223, %c0_62, %c0_63], %226 {strides = array<i32>} : memref<16x8x128xbf16, #tpu.memory_space<vmem>>, vector<1x8x128xbf16>,
    %c6_i32 = arith.constant 6 : i32
    %c0_64 = arith.constant 0 : index
    %c0_65 = arith.constant 0 : index
    %227 = vector.load %arg8[%c0_64, %c0_65] : memref<128x512xbf16, #tpu.memory_space<vmem>>, vector<128x512xbf16>
    %cst_66 = arith.constant dense<0.000000e+00> : vector<8x512xf32>
    %228 = tpu.matmul %222, %227, %cst_66 {dimension_numbers = #tpu.dot_dimension_numbers<[1], [0], [0], [1], [0, 0, 1, 1], [], []>} : vector<8x128xbf16>, vector<128x512xbf16>, vector<8x512xf32> -> vector<8x512xf32>
    %229 = arith.index_cast %c6_i32 : i32 to index
    %c0_67 = arith.constant 0 : index
    %c0_68 = arith.constant 0 : index
    %230 = vector.load %arg2[%229, %c0_67, %c0_68] : memref<16x8x512xbf16, #tpu.memory_space<vmem>>, vector<1x8x512xbf16>
    %231 = vector.shape_cast %230 : vector<1x8x512xbf16> to vector<8x512xbf16>
    %232 = arith.extf %231 : vector<8x512xbf16> to vector<8x512xf32>
    %233 = arith.addf %228, %232 : vector<8x512xf32>
    %234 = vector.extract_strided_slice %233 {offsets = [0, 0], sizes = [8, 128], strides = [1, 1]} : vector<8x512xf32> to vector<8x128xf32>
    %235 = arith.negf %234 : vector<8x128xf32>
    %236 = math.exp %235 : vector<8x128xf32>
    %cst_69 = arith.constant 1.000000e+00 : f32
    %237 = vector.broadcast %cst_69 : f32 to vector<8x128xf32>
    %238 = arith.addf %237, %236 : vector<8x128xf32>
    %239 = arith.divf %237, %238 : vector<8x128xf32>
    %240 = vector.extract_strided_slice %233 {offsets = [0, 128], sizes = [8, 128], strides = [1, 1]} : vector<8x512xf32> to vector<8x128xf32>
    %241 = arith.negf %240 : vector<8x128xf32>
    %242 = math.exp %241 : vector<8x128xf32>
    %cst_70 = arith.constant 1.000000e+00 : f32
    %243 = vector.broadcast %cst_70 : f32 to vector<8x128xf32>
    %244 = arith.addf %243, %242 : vector<8x128xf32>
    %245 = arith.divf %243, %244 : vector<8x128xf32>
    %246 = vector.extract_strided_slice %233 {offsets = [0, 256], sizes = [8, 128], strides = [1, 1]} : vector<8x512xf32> to vector<8x128xf32>
    %247 = math.tanh %246 : vector<8x128xf32>
    %248 = vector.extract_strided_slice %233 {offsets = [0, 384], sizes = [8, 128], strides = [1, 1]} : vector<8x512xf32> to vector<8x128xf32>
    %249 = arith.negf %248 : vector<8x128xf32>
    %250 = math.exp %249 : vector<8x128xf32>
    %cst_71 = arith.constant 1.000000e+00 : f32
    %251 = vector.broadcast %cst_71 : f32 to vector<8x128xf32>
    %252 = arith.addf %251, %250 : vector<8x128xf32>
    %253 = arith.divf %251, %252 : vector<8x128xf32>
    %254 = arith.mulf %245, %219 : vector<8x128xf32>
    %255 = arith.mulf %239, %247 : vector<8x128xf32>
    %256 = arith.addf %254, %255 : vector<8x128xf32>
    %257 = math.tanh %256 : vector<8x128xf32>
    %258 = arith.mulf %253, %257 : vector<8x128xf32>
    %259 = arith.truncf %258 : vector<8x128xf32> to vector<8x128xbf16>
    %260 = arith.index_cast %c6_i32 : i32 to index
    %c0_72 = arith.constant 0 : index
    %c0_73 = arith.constant 0 : index
    %261 = vector.load %arg4[%260, %c0_72, %c0_73] : memref<16x8x128xbf16, #tpu.memory_space<vmem>>, vector<1x8x128xbf16>
    %262 = vector.shape_cast %261 : vector<1x8x128xbf16> to vector<8x128xbf16>
    %263 = vector.shape_cast %259 : vector<8x128xbf16> to vector<1x8x128xbf16>
    tpu.vector_store %arg4[%260, %c0_72, %c0_73], %263 {strides = array<i32>} : memref<16x8x128xbf16, #tpu.memory_space<vmem>>, vector<1x8x128xbf16>,
    %c7_i32 = arith.constant 7 : i32
    %c0_74 = arith.constant 0 : index
    %c0_75 = arith.constant 0 : index
    %264 = vector.load %arg8[%c0_74, %c0_75] : memref<128x512xbf16, #tpu.memory_space<vmem>>, vector<128x512xbf16>
    %cst_76 = arith.constant dense<0.000000e+00> : vector<8x512xf32>
    %265 = tpu.matmul %259, %264, %cst_76 {dimension_numbers = #tpu.dot_dimension_numbers<[1], [0], [0], [1], [0, 0, 1, 1], [], []>} : vector<8x128xbf16>, vector<128x512xbf16>, vector<8x512xf32> -> vector<8x512xf32>
    %266 = arith.index_cast %c7_i32 : i32 to index
    %c0_77 = arith.constant 0 : index
    %c0_78 = arith.constant 0 : index
    %267 = vector.load %arg2[%266, %c0_77, %c0_78] : memref<16x8x512xbf16, #tpu.memory_space<vmem>>, vector<1x8x512xbf16>
    %268 = vector.shape_cast %267 : vector<1x8x512xbf16> to vector<8x512xbf16>
    %269 = arith.extf %268 : vector<8x512xbf16> to vector<8x512xf32>
    %270 = arith.addf %265, %269 : vector<8x512xf32>
    %271 = vector.extract_strided_slice %270 {offsets = [0, 0], sizes = [8, 128], strides = [1, 1]} : vector<8x512xf32> to vector<8x128xf32>
    %272 = arith.negf %271 : vector<8x128xf32>
    %273 = math.exp %272 : vector<8x128xf32>
    %cst_79 = arith.constant 1.000000e+00 : f32
    %274 = vector.broadcast %cst_79 : f32 to vector<8x128xf32>
    %275 = arith.addf %274, %273 : vector<8x128xf32>
    %276 = arith.divf %274, %275 : vector<8x128xf32>
    %277 = vector.extract_strided_slice %270 {offsets = [0, 128], sizes = [8, 128], strides = [1, 1]} : vector<8x512xf32> to vector<8x128xf32>
    %278 = arith.negf %277 : vector<8x128xf32>
    %279 = math.exp %278 : vector<8x128xf32>
    %cst_80 = arith.constant 1.000000e+00 : f32
    %280 = vector.broadcast %cst_80 : f32 to vector<8x128xf32>
    %281 = arith.addf %280, %279 : vector<8x128xf32>
    %282 = arith.divf %280, %281 : vector<8x128xf32>
    %283 = vector.extract_strided_slice %270 {offsets = [0, 256], sizes = [8, 128], strides = [1, 1]} : vector<8x512xf32> to vector<8x128xf32>
    %284 = math.tanh %283 : vector<8x128xf32>
    %285 = vector.extract_strided_slice %270 {offsets = [0, 384], sizes = [8, 128], strides = [1, 1]} : vector<8x512xf32> to vector<8x128xf32>
    %286 = arith.negf %285 : vector<8x128xf32>
    %287 = math.exp %286 : vector<8x128xf32>
    %cst_81 = arith.constant 1.000000e+00 : f32
    %288 = vector.broadcast %cst_81 : f32 to vector<8x128xf32>
    %289 = arith.addf %288, %287 : vector<8x128xf32>
    %290 = arith.divf %288, %289 : vector<8x128xf32>
    %291 = arith.mulf %282, %256 : vector<8x128xf32>
    %292 = arith.mulf %276, %284 : vector<8x128xf32>
    %293 = arith.addf %291, %292 : vector<8x128xf32>
    %294 = math.tanh %293 : vector<8x128xf32>
    %295 = arith.mulf %290, %294 : vector<8x128xf32>
    %296 = arith.truncf %295 : vector<8x128xf32> to vector<8x128xbf16>
    %297 = arith.index_cast %c7_i32 : i32 to index
    %c0_82 = arith.constant 0 : index
    %c0_83 = arith.constant 0 : index
    %298 = vector.load %arg4[%297, %c0_82, %c0_83] : memref<16x8x128xbf16, #tpu.memory_space<vmem>>, vector<1x8x128xbf16>
    %299 = vector.shape_cast %298 : vector<1x8x128xbf16> to vector<8x128xbf16>
    %300 = vector.shape_cast %296 : vector<8x128xbf16> to vector<1x8x128xbf16>
    tpu.vector_store %arg4[%297, %c0_82, %c0_83], %300 {strides = array<i32>} : memref<16x8x128xbf16, #tpu.memory_space<vmem>>, vector<1x8x128xbf16>,
    %c8_i32 = arith.constant 8 : i32
    %c0_84 = arith.constant 0 : index
    %c0_85 = arith.constant 0 : index
    %301 = vector.load %arg8[%c0_84, %c0_85] : memref<128x512xbf16, #tpu.memory_space<vmem>>, vector<128x512xbf16>
    %cst_86 = arith.constant dense<0.000000e+00> : vector<8x512xf32>
    %302 = tpu.matmul %296, %301, %cst_86 {dimension_numbers = #tpu.dot_dimension_numbers<[1], [0], [0], [1], [0, 0, 1, 1], [], []>} : vector<8x128xbf16>, vector<128x512xbf16>, vector<8x512xf32> -> vector<8x512xf32>
    %303 = arith.index_cast %c8_i32 : i32 to index
    %c0_87 = arith.constant 0 : index
    %c0_88 = arith.constant 0 : index
    %304 = vector.load %arg2[%303, %c0_87, %c0_88] : memref<16x8x512xbf16, #tpu.memory_space<vmem>>, vector<1x8x512xbf16>
    %305 = vector.shape_cast %304 : vector<1x8x512xbf16> to vector<8x512xbf16>
    %306 = arith.extf %305 : vector<8x512xbf16> to vector<8x512xf32>
    %307 = arith.addf %302, %306 : vector<8x512xf32>
    %308 = vector.extract_strided_slice %307 {offsets = [0, 0], sizes = [8, 128], strides = [1, 1]} : vector<8x512xf32> to vector<8x128xf32>
    %309 = arith.negf %308 : vector<8x128xf32>
    %310 = math.exp %309 : vector<8x128xf32>
    %cst_89 = arith.constant 1.000000e+00 : f32
    %311 = vector.broadcast %cst_89 : f32 to vector<8x128xf32>
    %312 = arith.addf %311, %310 : vector<8x128xf32>
    %313 = arith.divf %311, %312 : vector<8x128xf32>
    %314 = vector.extract_strided_slice %307 {offsets = [0, 128], sizes = [8, 128], strides = [1, 1]} : vector<8x512xf32> to vector<8x128xf32>
    %315 = arith.negf %314 : vector<8x128xf32>
    %316 = math.exp %315 : vector<8x128xf32>
    %cst_90 = arith.constant 1.000000e+00 : f32
    %317 = vector.broadcast %cst_90 : f32 to vector<8x128xf32>
    %318 = arith.addf %317, %316 : vector<8x128xf32>
    %319 = arith.divf %317, %318 : vector<8x128xf32>
    %320 = vector.extract_strided_slice %307 {offsets = [0, 256], sizes = [8, 128], strides = [1, 1]} : vector<8x512xf32> to vector<8x128xf32>
    %321 = math.tanh %320 : vector<8x128xf32>
    %322 = vector.extract_strided_slice %307 {offsets = [0, 384], sizes = [8, 128], strides = [1, 1]} : vector<8x512xf32> to vector<8x128xf32>
    %323 = arith.negf %322 : vector<8x128xf32>
    %324 = math.exp %323 : vector<8x128xf32>
    %cst_91 = arith.constant 1.000000e+00 : f32
    %325 = vector.broadcast %cst_91 : f32 to vector<8x128xf32>
    %326 = arith.addf %325, %324 : vector<8x128xf32>
    %327 = arith.divf %325, %326 : vector<8x128xf32>
    %328 = arith.mulf %319, %293 : vector<8x128xf32>
    %329 = arith.mulf %313, %321 : vector<8x128xf32>
    %330 = arith.addf %328, %329 : vector<8x128xf32>
    %331 = math.tanh %330 : vector<8x128xf32>
    %332 = arith.mulf %327, %331 : vector<8x128xf32>
    %333 = arith.truncf %332 : vector<8x128xf32> to vector<8x128xbf16>
    %334 = arith.index_cast %c8_i32 : i32 to index
    %c0_92 = arith.constant 0 : index
    %c0_93 = arith.constant 0 : index
    %335 = vector.load %arg4[%334, %c0_92, %c0_93] : memref<16x8x128xbf16, #tpu.memory_space<vmem>>, vector<1x8x128xbf16>
    %336 = vector.shape_cast %335 : vector<1x8x128xbf16> to vector<8x128xbf16>
    %337 = vector.shape_cast %333 : vector<8x128xbf16> to vector<1x8x128xbf16>
    tpu.vector_store %arg4[%334, %c0_92, %c0_93], %337 {strides = array<i32>} : memref<16x8x128xbf16, #tpu.memory_space<vmem>>, vector<1x8x128xbf16>,
    %c9_i32 = arith.constant 9 : i32
    %c0_94 = arith.constant 0 : index
    %c0_95 = arith.constant 0 : index
    %338 = vector.load %arg8[%c0_94, %c0_95] : memref<128x512xbf16, #tpu.memory_space<vmem>>, vector<128x512xbf16>
    %cst_96 = arith.constant dense<0.000000e+00> : vector<8x512xf32>
    %339 = tpu.matmul %333, %338, %cst_96 {dimension_numbers = #tpu.dot_dimension_numbers<[1], [0], [0], [1], [0, 0, 1, 1], [], []>} : vector<8x128xbf16>, vector<128x512xbf16>, vector<8x512xf32> -> vector<8x512xf32>
    %340 = arith.index_cast %c9_i32 : i32 to index
    %c0_97 = arith.constant 0 : index
    %c0_98 = arith.constant 0 : index
    %341 = vector.load %arg2[%340, %c0_97, %c0_98] : memref<16x8x512xbf16, #tpu.memory_space<vmem>>, vector<1x8x512xbf16>
    %342 = vector.shape_cast %341 : vector<1x8x512xbf16> to vector<8x512xbf16>
    %343 = arith.extf %342 : vector<8x512xbf16> to vector<8x512xf32>
    %344 = arith.addf %339, %343 : vector<8x512xf32>
    %345 = vector.extract_strided_slice %344 {offsets = [0, 0], sizes = [8, 128], strides = [1, 1]} : vector<8x512xf32> to vector<8x128xf32>
    %346 = arith.negf %345 : vector<8x128xf32>
    %347 = math.exp %346 : vector<8x128xf32>
    %cst_99 = arith.constant 1.000000e+00 : f32
    %348 = vector.broadcast %cst_99 : f32 to vector<8x128xf32>
    %349 = arith.addf %348, %347 : vector<8x128xf32>
    %350 = arith.divf %348, %349 : vector<8x128xf32>
    %351 = vector.extract_strided_slice %344 {offsets = [0, 128], sizes = [8, 128], strides = [1, 1]} : vector<8x512xf32> to vector<8x128xf32>
    %352 = arith.negf %351 : vector<8x128xf32>
    %353 = math.exp %352 : vector<8x128xf32>
    %cst_100 = arith.constant 1.000000e+00 : f32
    %354 = vector.broadcast %cst_100 : f32 to vector<8x128xf32>
    %355 = arith.addf %354, %353 : vector<8x128xf32>
    %356 = arith.divf %354, %355 : vector<8x128xf32>
    %357 = vector.extract_strided_slice %344 {offsets = [0, 256], sizes = [8, 128], strides = [1, 1]} : vector<8x512xf32> to vector<8x128xf32>
    %358 = math.tanh %357 : vector<8x128xf32>
    %359 = vector.extract_strided_slice %344 {offsets = [0, 384], sizes = [8, 128], strides = [1, 1]} : vector<8x512xf32> to vector<8x128xf32>
    %360 = arith.negf %359 : vector<8x128xf32>
    %361 = math.exp %360 : vector<8x128xf32>
    %cst_101 = arith.constant 1.000000e+00 : f32
    %362 = vector.broadcast %cst_101 : f32 to vector<8x128xf32>
    %363 = arith.addf %362, %361 : vector<8x128xf32>
    %364 = arith.divf %362, %363 : vector<8x128xf32>
    %365 = arith.mulf %356, %330 : vector<8x128xf32>
    %366 = arith.mulf %350, %358 : vector<8x128xf32>
    %367 = arith.addf %365, %366 : vector<8x128xf32>
    %368 = math.tanh %367 : vector<8x128xf32>
    %369 = arith.mulf %364, %368 : vector<8x128xf32>
    %370 = arith.truncf %369 : vector<8x128xf32> to vector<8x128xbf16>
    %371 = arith.index_cast %c9_i32 : i32 to index
    %c0_102 = arith.constant 0 : index
    %c0_103 = arith.constant 0 : index
    %372 = vector.load %arg4[%371, %c0_102, %c0_103] : memref<16x8x128xbf16, #tpu.memory_space<vmem>>, vector<1x8x128xbf16>
    %373 = vector.shape_cast %372 : vector<1x8x128xbf16> to vector<8x128xbf16>
    %374 = vector.shape_cast %370 : vector<8x128xbf16> to vector<1x8x128xbf16>
    tpu.vector_store %arg4[%371, %c0_102, %c0_103], %374 {strides = array<i32>} : memref<16x8x128xbf16, #tpu.memory_space<vmem>>, vector<1x8x128xbf16>,
    %c10_i32 = arith.constant 10 : i32
    %c0_104 = arith.constant 0 : index
    %c0_105 = arith.constant 0 : index
    %375 = vector.load %arg8[%c0_104, %c0_105] : memref<128x512xbf16, #tpu.memory_space<vmem>>, vector<128x512xbf16>
    %cst_106 = arith.constant dense<0.000000e+00> : vector<8x512xf32>
    %376 = tpu.matmul %370, %375, %cst_106 {dimension_numbers = #tpu.dot_dimension_numbers<[1], [0], [0], [1], [0, 0, 1, 1], [], []>} : vector<8x128xbf16>, vector<128x512xbf16>, vector<8x512xf32> -> vector<8x512xf32>
    %377 = arith.index_cast %c10_i32 : i32 to index
    %c0_107 = arith.constant 0 : index
    %c0_108 = arith.constant 0 : index
    %378 = vector.load %arg2[%377, %c0_107, %c0_108] : memref<16x8x512xbf16, #tpu.memory_space<vmem>>, vector<1x8x512xbf16>
    %379 = vector.shape_cast %378 : vector<1x8x512xbf16> to vector<8x512xbf16>
    %380 = arith.extf %379 : vector<8x512xbf16> to vector<8x512xf32>
    %381 = arith.addf %376, %380 : vector<8x512xf32>
    %382 = vector.extract_strided_slice %381 {offsets = [0, 0], sizes = [8, 128], strides = [1, 1]} : vector<8x512xf32> to vector<8x128xf32>
    %383 = arith.negf %382 : vector<8x128xf32>
    %384 = math.exp %383 : vector<8x128xf32>
    %cst_109 = arith.constant 1.000000e+00 : f32
    %385 = vector.broadcast %cst_109 : f32 to vector<8x128xf32>
    %386 = arith.addf %385, %384 : vector<8x128xf32>
    %387 = arith.divf %385, %386 : vector<8x128xf32>
    %388 = vector.extract_strided_slice %381 {offsets = [0, 128], sizes = [8, 128], strides = [1, 1]} : vector<8x512xf32> to vector<8x128xf32>
    %389 = arith.negf %388 : vector<8x128xf32>
    %390 = math.exp %389 : vector<8x128xf32>
    %cst_110 = arith.constant 1.000000e+00 : f32
    %391 = vector.broadcast %cst_110 : f32 to vector<8x128xf32>
    %392 = arith.addf %391, %390 : vector<8x128xf32>
    %393 = arith.divf %391, %392 : vector<8x128xf32>
    %394 = vector.extract_strided_slice %381 {offsets = [0, 256], sizes = [8, 128], strides = [1, 1]} : vector<8x512xf32> to vector<8x128xf32>
    %395 = math.tanh %394 : vector<8x128xf32>
    %396 = vector.extract_strided_slice %381 {offsets = [0, 384], sizes = [8, 128], strides = [1, 1]} : vector<8x512xf32> to vector<8x128xf32>
    %397 = arith.negf %396 : vector<8x128xf32>
    %398 = math.exp %397 : vector<8x128xf32>
    %cst_111 = arith.constant 1.000000e+00 : f32
    %399 = vector.broadcast %cst_111 : f32 to vector<8x128xf32>
    %400 = arith.addf %399, %398 : vector<8x128xf32>
    %401 = arith.divf %399, %400 : vector<8x128xf32>
    %402 = arith.mulf %393, %367 : vector<8x128xf32>
    %403 = arith.mulf %387, %395 : vector<8x128xf32>
    %404 = arith.addf %402, %403 : vector<8x128xf32>
    %405 = math.tanh %404 : vector<8x128xf32>
    %406 = arith.mulf %401, %405 : vector<8x128xf32>
    %407 = arith.truncf %406 : vector<8x128xf32> to vector<8x128xbf16>
    %408 = arith.index_cast %c10_i32 : i32 to index
    %c0_112 = arith.constant 0 : index
    %c0_113 = arith.constant 0 : index
    %409 = vector.load %arg4[%408, %c0_112, %c0_113] : memref<16x8x128xbf16, #tpu.memory_space<vmem>>, vector<1x8x128xbf16>
    %410 = vector.shape_cast %409 : vector<1x8x128xbf16> to vector<8x128xbf16>
    %411 = vector.shape_cast %407 : vector<8x128xbf16> to vector<1x8x128xbf16>
    tpu.vector_store %arg4[%408, %c0_112, %c0_113], %411 {strides = array<i32>} : memref<16x8x128xbf16, #tpu.memory_space<vmem>>, vector<1x8x128xbf16>,
    %c11_i32 = arith.constant 11 : i32
    %c0_114 = arith.constant 0 : index
    %c0_115 = arith.constant 0 : index
    %412 = vector.load %arg8[%c0_114, %c0_115] : memref<128x512xbf16, #tpu.memory_space<vmem>>, vector<128x512xbf16>
    %cst_116 = arith.constant dense<0.000000e+00> : vector<8x512xf32>
    %413 = tpu.matmul %407, %412, %cst_116 {dimension_numbers = #tpu.dot_dimension_numbers<[1], [0], [0], [1], [0, 0, 1, 1], [], []>} : vector<8x128xbf16>, vector<128x512xbf16>, vector<8x512xf32> -> vector<8x512xf32>
    %414 = arith.index_cast %c11_i32 : i32 to index
    %c0_117 = arith.constant 0 : index
    %c0_118 = arith.constant 0 : index
    %415 = vector.load %arg2[%414, %c0_117, %c0_118] : memref<16x8x512xbf16, #tpu.memory_space<vmem>>, vector<1x8x512xbf16>
    %416 = vector.shape_cast %415 : vector<1x8x512xbf16> to vector<8x512xbf16>
    %417 = arith.extf %416 : vector<8x512xbf16> to vector<8x512xf32>
    %418 = arith.addf %413, %417 : vector<8x512xf32>
    %419 = vector.extract_strided_slice %418 {offsets = [0, 0], sizes = [8, 128], strides = [1, 1]} : vector<8x512xf32> to vector<8x128xf32>
    %420 = arith.negf %419 : vector<8x128xf32>
    %421 = math.exp %420 : vector<8x128xf32>
    %cst_119 = arith.constant 1.000000e+00 : f32
    %422 = vector.broadcast %cst_119 : f32 to vector<8x128xf32>
    %423 = arith.addf %422, %421 : vector<8x128xf32>
    %424 = arith.divf %422, %423 : vector<8x128xf32>
    %425 = vector.extract_strided_slice %418 {offsets = [0, 128], sizes = [8, 128], strides = [1, 1]} : vector<8x512xf32> to vector<8x128xf32>
    %426 = arith.negf %425 : vector<8x128xf32>
    %427 = math.exp %426 : vector<8x128xf32>
    %cst_120 = arith.constant 1.000000e+00 : f32
    %428 = vector.broadcast %cst_120 : f32 to vector<8x128xf32>
    %429 = arith.addf %428, %427 : vector<8x128xf32>
    %430 = arith.divf %428, %429 : vector<8x128xf32>
    %431 = vector.extract_strided_slice %418 {offsets = [0, 256], sizes = [8, 128], strides = [1, 1]} : vector<8x512xf32> to vector<8x128xf32>
    %432 = math.tanh %431 : vector<8x128xf32>
    %433 = vector.extract_strided_slice %418 {offsets = [0, 384], sizes = [8, 128], strides = [1, 1]} : vector<8x512xf32> to vector<8x128xf32>
    %434 = arith.negf %433 : vector<8x128xf32>
    %435 = math.exp %434 : vector<8x128xf32>
    %cst_121 = arith.constant 1.000000e+00 : f32
    %436 = vector.broadcast %cst_121 : f32 to vector<8x128xf32>
    %437 = arith.addf %436, %435 : vector<8x128xf32>
    %438 = arith.divf %436, %437 : vector<8x128xf32>
    %439 = arith.mulf %430, %404 : vector<8x128xf32>
    %440 = arith.mulf %424, %432 : vector<8x128xf32>
    %441 = arith.addf %439, %440 : vector<8x128xf32>
    %442 = math.tanh %441 : vector<8x128xf32>
    %443 = arith.mulf %438, %442 : vector<8x128xf32>
    %444 = arith.truncf %443 : vector<8x128xf32> to vector<8x128xbf16>
    %445 = arith.index_cast %c11_i32 : i32 to index
    %c0_122 = arith.constant 0 : index
    %c0_123 = arith.constant 0 : index
    %446 = vector.load %arg4[%445, %c0_122, %c0_123] : memref<16x8x128xbf16, #tpu.memory_space<vmem>>, vector<1x8x128xbf16>
    %447 = vector.shape_cast %446 : vector<1x8x128xbf16> to vector<8x128xbf16>
    %448 = vector.shape_cast %444 : vector<8x128xbf16> to vector<1x8x128xbf16>
    tpu.vector_store %arg4[%445, %c0_122, %c0_123], %448 {strides = array<i32>} : memref<16x8x128xbf16, #tpu.memory_space<vmem>>, vector<1x8x128xbf16>,
    %c12_i32 = arith.constant 12 : i32
    %c0_124 = arith.constant 0 : index
    %c0_125 = arith.constant 0 : index
    %449 = vector.load %arg8[%c0_124, %c0_125] : memref<128x512xbf16, #tpu.memory_space<vmem>>, vector<128x512xbf16>
    %cst_126 = arith.constant dense<0.000000e+00> : vector<8x512xf32>
    %450 = tpu.matmul %444, %449, %cst_126 {dimension_numbers = #tpu.dot_dimension_numbers<[1], [0], [0], [1], [0, 0, 1, 1], [], []>} : vector<8x128xbf16>, vector<128x512xbf16>, vector<8x512xf32> -> vector<8x512xf32>
    %451 = arith.index_cast %c12_i32 : i32 to index
    %c0_127 = arith.constant 0 : index
    %c0_128 = arith.constant 0 : index
    %452 = vector.load %arg2[%451, %c0_127, %c0_128] : memref<16x8x512xbf16, #tpu.memory_space<vmem>>, vector<1x8x512xbf16>
    %453 = vector.shape_cast %452 : vector<1x8x512xbf16> to vector<8x512xbf16>
    %454 = arith.extf %453 : vector<8x512xbf16> to vector<8x512xf32>
    %455 = arith.addf %450, %454 : vector<8x512xf32>
    %456 = vector.extract_strided_slice %455 {offsets = [0, 0], sizes = [8, 128], strides = [1, 1]} : vector<8x512xf32> to vector<8x128xf32>
    %457 = arith.negf %456 : vector<8x128xf32>
    %458 = math.exp %457 : vector<8x128xf32>
    %cst_129 = arith.constant 1.000000e+00 : f32
    %459 = vector.broadcast %cst_129 : f32 to vector<8x128xf32>
    %460 = arith.addf %459, %458 : vector<8x128xf32>
    %461 = arith.divf %459, %460 : vector<8x128xf32>
    %462 = vector.extract_strided_slice %455 {offsets = [0, 128], sizes = [8, 128], strides = [1, 1]} : vector<8x512xf32> to vector<8x128xf32>
    %463 = arith.negf %462 : vector<8x128xf32>
    %464 = math.exp %463 : vector<8x128xf32>
    %cst_130 = arith.constant 1.000000e+00 : f32
    %465 = vector.broadcast %cst_130 : f32 to vector<8x128xf32>
    %466 = arith.addf %465, %464 : vector<8x128xf32>
    %467 = arith.divf %465, %466 : vector<8x128xf32>
    %468 = vector.extract_strided_slice %455 {offsets = [0, 256], sizes = [8, 128], strides = [1, 1]} : vector<8x512xf32> to vector<8x128xf32>
    %469 = math.tanh %468 : vector<8x128xf32>
    %470 = vector.extract_strided_slice %455 {offsets = [0, 384], sizes = [8, 128], strides = [1, 1]} : vector<8x512xf32> to vector<8x128xf32>
    %471 = arith.negf %470 : vector<8x128xf32>
    %472 = math.exp %471 : vector<8x128xf32>
    %cst_131 = arith.constant 1.000000e+00 : f32
    %473 = vector.broadcast %cst_131 : f32 to vector<8x128xf32>
    %474 = arith.addf %473, %472 : vector<8x128xf32>
    %475 = arith.divf %473, %474 : vector<8x128xf32>
    %476 = arith.mulf %467, %441 : vector<8x128xf32>
    %477 = arith.mulf %461, %469 : vector<8x128xf32>
    %478 = arith.addf %476, %477 : vector<8x128xf32>
    %479 = math.tanh %478 : vector<8x128xf32>
    %480 = arith.mulf %475, %479 : vector<8x128xf32>
    %481 = arith.truncf %480 : vector<8x128xf32> to vector<8x128xbf16>
    %482 = arith.index_cast %c12_i32 : i32 to index
    %c0_132 = arith.constant 0 : index
    %c0_133 = arith.constant 0 : index
    %483 = vector.load %arg4[%482, %c0_132, %c0_133] : memref<16x8x128xbf16, #tpu.memory_space<vmem>>, vector<1x8x128xbf16>
    %484 = vector.shape_cast %483 : vector<1x8x128xbf16> to vector<8x128xbf16>
    %485 = vector.shape_cast %481 : vector<8x128xbf16> to vector<1x8x128xbf16>
    tpu.vector_store %arg4[%482, %c0_132, %c0_133], %485 {strides = array<i32>} : memref<16x8x128xbf16, #tpu.memory_space<vmem>>, vector<1x8x128xbf16>,
    %c13_i32 = arith.constant 13 : i32
    %c0_134 = arith.constant 0 : index
    %c0_135 = arith.constant 0 : index
    %486 = vector.load %arg8[%c0_134, %c0_135] : memref<128x512xbf16, #tpu.memory_space<vmem>>, vector<128x512xbf16>
    %cst_136 = arith.constant dense<0.000000e+00> : vector<8x512xf32>
    %487 = tpu.matmul %481, %486, %cst_136 {dimension_numbers = #tpu.dot_dimension_numbers<[1], [0], [0], [1], [0, 0, 1, 1], [], []>} : vector<8x128xbf16>, vector<128x512xbf16>, vector<8x512xf32> -> vector<8x512xf32>
    %488 = arith.index_cast %c13_i32 : i32 to index
    %c0_137 = arith.constant 0 : index
    %c0_138 = arith.constant 0 : index
    %489 = vector.load %arg2[%488, %c0_137, %c0_138] : memref<16x8x512xbf16, #tpu.memory_space<vmem>>, vector<1x8x512xbf16>
    %490 = vector.shape_cast %489 : vector<1x8x512xbf16> to vector<8x512xbf16>
    %491 = arith.extf %490 : vector<8x512xbf16> to vector<8x512xf32>
    %492 = arith.addf %487, %491 : vector<8x512xf32>
    %493 = vector.extract_strided_slice %492 {offsets = [0, 0], sizes = [8, 128], strides = [1, 1]} : vector<8x512xf32> to vector<8x128xf32>
    %494 = arith.negf %493 : vector<8x128xf32>
    %495 = math.exp %494 : vector<8x128xf32>
    %cst_139 = arith.constant 1.000000e+00 : f32
    %496 = vector.broadcast %cst_139 : f32 to vector<8x128xf32>
    %497 = arith.addf %496, %495 : vector<8x128xf32>
    %498 = arith.divf %496, %497 : vector<8x128xf32>
    %499 = vector.extract_strided_slice %492 {offsets = [0, 128], sizes = [8, 128], strides = [1, 1]} : vector<8x512xf32> to vector<8x128xf32>
    %500 = arith.negf %499 : vector<8x128xf32>
    %501 = math.exp %500 : vector<8x128xf32>
    %cst_140 = arith.constant 1.000000e+00 : f32
    %502 = vector.broadcast %cst_140 : f32 to vector<8x128xf32>
    %503 = arith.addf %502, %501 : vector<8x128xf32>
    %504 = arith.divf %502, %503 : vector<8x128xf32>
    %505 = vector.extract_strided_slice %492 {offsets = [0, 256], sizes = [8, 128], strides = [1, 1]} : vector<8x512xf32> to vector<8x128xf32>
    %506 = math.tanh %505 : vector<8x128xf32>
    %507 = vector.extract_strided_slice %492 {offsets = [0, 384], sizes = [8, 128], strides = [1, 1]} : vector<8x512xf32> to vector<8x128xf32>
    %508 = arith.negf %507 : vector<8x128xf32>
    %509 = math.exp %508 : vector<8x128xf32>
    %cst_141 = arith.constant 1.000000e+00 : f32
    %510 = vector.broadcast %cst_141 : f32 to vector<8x128xf32>
    %511 = arith.addf %510, %509 : vector<8x128xf32>
    %512 = arith.divf %510, %511 : vector<8x128xf32>
    %513 = arith.mulf %504, %478 : vector<8x128xf32>
    %514 = arith.mulf %498, %506 : vector<8x128xf32>
    %515 = arith.addf %513, %514 : vector<8x128xf32>
    %516 = math.tanh %515 : vector<8x128xf32>
    %517 = arith.mulf %512, %516 : vector<8x128xf32>
    %518 = arith.truncf %517 : vector<8x128xf32> to vector<8x128xbf16>
    %519 = arith.index_cast %c13_i32 : i32 to index
    %c0_142 = arith.constant 0 : index
    %c0_143 = arith.constant 0 : index
    %520 = vector.load %arg4[%519, %c0_142, %c0_143] : memref<16x8x128xbf16, #tpu.memory_space<vmem>>, vector<1x8x128xbf16>
    %521 = vector.shape_cast %520 : vector<1x8x128xbf16> to vector<8x128xbf16>
    %522 = vector.shape_cast %518 : vector<8x128xbf16> to vector<1x8x128xbf16>
    tpu.vector_store %arg4[%519, %c0_142, %c0_143], %522 {strides = array<i32>} : memref<16x8x128xbf16, #tpu.memory_space<vmem>>, vector<1x8x128xbf16>,
    %c14_i32 = arith.constant 14 : i32
    %c0_144 = arith.constant 0 : index
    %c0_145 = arith.constant 0 : index
    %523 = vector.load %arg8[%c0_144, %c0_145] : memref<128x512xbf16, #tpu.memory_space<vmem>>, vector<128x512xbf16>
    %cst_146 = arith.constant dense<0.000000e+00> : vector<8x512xf32>
    %524 = tpu.matmul %518, %523, %cst_146 {dimension_numbers = #tpu.dot_dimension_numbers<[1], [0], [0], [1], [0, 0, 1, 1], [], []>} : vector<8x128xbf16>, vector<128x512xbf16>, vector<8x512xf32> -> vector<8x512xf32>
    %525 = arith.index_cast %c14_i32 : i32 to index
    %c0_147 = arith.constant 0 : index
    %c0_148 = arith.constant 0 : index
    %526 = vector.load %arg2[%525, %c0_147, %c0_148] : memref<16x8x512xbf16, #tpu.memory_space<vmem>>, vector<1x8x512xbf16>
    %527 = vector.shape_cast %526 : vector<1x8x512xbf16> to vector<8x512xbf16>
    %528 = arith.extf %527 : vector<8x512xbf16> to vector<8x512xf32>
    %529 = arith.addf %524, %528 : vector<8x512xf32>
    %530 = vector.extract_strided_slice %529 {offsets = [0, 0], sizes = [8, 128], strides = [1, 1]} : vector<8x512xf32> to vector<8x128xf32>
    %531 = arith.negf %530 : vector<8x128xf32>
    %532 = math.exp %531 : vector<8x128xf32>
    %cst_149 = arith.constant 1.000000e+00 : f32
    %533 = vector.broadcast %cst_149 : f32 to vector<8x128xf32>
    %534 = arith.addf %533, %532 : vector<8x128xf32>
    %535 = arith.divf %533, %534 : vector<8x128xf32>
    %536 = vector.extract_strided_slice %529 {offsets = [0, 128], sizes = [8, 128], strides = [1, 1]} : vector<8x512xf32> to vector<8x128xf32>
    %537 = arith.negf %536 : vector<8x128xf32>
    %538 = math.exp %537 : vector<8x128xf32>
    %cst_150 = arith.constant 1.000000e+00 : f32
    %539 = vector.broadcast %cst_150 : f32 to vector<8x128xf32>
    %540 = arith.addf %539, %538 : vector<8x128xf32>
    %541 = arith.divf %539, %540 : vector<8x128xf32>
    %542 = vector.extract_strided_slice %529 {offsets = [0, 256], sizes = [8, 128], strides = [1, 1]} : vector<8x512xf32> to vector<8x128xf32>
    %543 = math.tanh %542 : vector<8x128xf32>
    %544 = vector.extract_strided_slice %529 {offsets = [0, 384], sizes = [8, 128], strides = [1, 1]} : vector<8x512xf32> to vector<8x128xf32>
    %545 = arith.negf %544 : vector<8x128xf32>
    %546 = math.exp %545 : vector<8x128xf32>
    %cst_151 = arith.constant 1.000000e+00 : f32
    %547 = vector.broadcast %cst_151 : f32 to vector<8x128xf32>
    %548 = arith.addf %547, %546 : vector<8x128xf32>
    %549 = arith.divf %547, %548 : vector<8x128xf32>
    %550 = arith.mulf %541, %515 : vector<8x128xf32>
    %551 = arith.mulf %535, %543 : vector<8x128xf32>
    %552 = arith.addf %550, %551 : vector<8x128xf32>
    %553 = math.tanh %552 : vector<8x128xf32>
    %554 = arith.mulf %549, %553 : vector<8x128xf32>
    %555 = arith.truncf %554 : vector<8x128xf32> to vector<8x128xbf16>
    %556 = arith.index_cast %c14_i32 : i32 to index
    %c0_152 = arith.constant 0 : index
    %c0_153 = arith.constant 0 : index
    %557 = vector.load %arg4[%556, %c0_152, %c0_153] : memref<16x8x128xbf16, #tpu.memory_space<vmem>>, vector<1x8x128xbf16>
    %558 = vector.shape_cast %557 : vector<1x8x128xbf16> to vector<8x128xbf16>
    %559 = vector.shape_cast %555 : vector<8x128xbf16> to vector<1x8x128xbf16>
    tpu.vector_store %arg4[%556, %c0_152, %c0_153], %559 {strides = array<i32>} : memref<16x8x128xbf16, #tpu.memory_space<vmem>>, vector<1x8x128xbf16>,
    %c15_i32 = arith.constant 15 : i32
    %c0_154 = arith.constant 0 : index
    %c0_155 = arith.constant 0 : index
    %560 = vector.load %arg8[%c0_154, %c0_155] : memref<128x512xbf16, #tpu.memory_space<vmem>>, vector<128x512xbf16>
    %cst_156 = arith.constant dense<0.000000e+00> : vector<8x512xf32>
    %561 = tpu.matmul %555, %560, %cst_156 {dimension_numbers = #tpu.dot_dimension_numbers<[1], [0], [0], [1], [0, 0, 1, 1], [], []>} : vector<8x128xbf16>, vector<128x512xbf16>, vector<8x512xf32> -> vector<8x512xf32>
    %562 = arith.index_cast %c15_i32 : i32 to index
    %c0_157 = arith.constant 0 : index
    %c0_158 = arith.constant 0 : index
    %563 = vector.load %arg2[%562, %c0_157, %c0_158] : memref<16x8x512xbf16, #tpu.memory_space<vmem>>, vector<1x8x512xbf16>
    %564 = vector.shape_cast %563 : vector<1x8x512xbf16> to vector<8x512xbf16>
    %565 = arith.extf %564 : vector<8x512xbf16> to vector<8x512xf32>
    %566 = arith.addf %561, %565 : vector<8x512xf32>
    %567 = vector.extract_strided_slice %566 {offsets = [0, 0], sizes = [8, 128], strides = [1, 1]} : vector<8x512xf32> to vector<8x128xf32>
    %568 = arith.negf %567 : vector<8x128xf32>
    %569 = math.exp %568 : vector<8x128xf32>
    %cst_159 = arith.constant 1.000000e+00 : f32
    %570 = vector.broadcast %cst_159 : f32 to vector<8x128xf32>
    %571 = arith.addf %570, %569 : vector<8x128xf32>
    %572 = arith.divf %570, %571 : vector<8x128xf32>
    %573 = vector.extract_strided_slice %566 {offsets = [0, 128], sizes = [8, 128], strides = [1, 1]} : vector<8x512xf32> to vector<8x128xf32>
    %574 = arith.negf %573 : vector<8x128xf32>
    %575 = math.exp %574 : vector<8x128xf32>
    %cst_160 = arith.constant 1.000000e+00 : f32
    %576 = vector.broadcast %cst_160 : f32 to vector<8x128xf32>
    %577 = arith.addf %576, %575 : vector<8x128xf32>
    %578 = arith.divf %576, %577 : vector<8x128xf32>
    %579 = vector.extract_strided_slice %566 {offsets = [0, 256], sizes = [8, 128], strides = [1, 1]} : vector<8x512xf32> to vector<8x128xf32>
    %580 = math.tanh %579 : vector<8x128xf32>
    %581 = vector.extract_strided_slice %566 {offsets = [0, 384], sizes = [8, 128], strides = [1, 1]} : vector<8x512xf32> to vector<8x128xf32>
    %582 = arith.negf %581 : vector<8x128xf32>
    %583 = math.exp %582 : vector<8x128xf32>
    %cst_161 = arith.constant 1.000000e+00 : f32
    %584 = vector.broadcast %cst_161 : f32 to vector<8x128xf32>
    %585 = arith.addf %584, %583 : vector<8x128xf32>
    %586 = arith.divf %584, %585 : vector<8x128xf32>
    %587 = arith.mulf %578, %552 : vector<8x128xf32>
    %588 = arith.mulf %572, %580 : vector<8x128xf32>
    %589 = arith.addf %587, %588 : vector<8x128xf32>
    %590 = math.tanh %589 : vector<8x128xf32>
    %591 = arith.mulf %586, %590 : vector<8x128xf32>
    %592 = arith.truncf %591 : vector<8x128xf32> to vector<8x128xbf16>
    %593 = arith.index_cast %c15_i32 : i32 to index
    %c0_162 = arith.constant 0 : index
    %c0_163 = arith.constant 0 : index
    %594 = vector.load %arg4[%593, %c0_162, %c0_163] : memref<16x8x128xbf16, #tpu.memory_space<vmem>>, vector<1x8x128xbf16>
    %595 = vector.shape_cast %594 : vector<1x8x128xbf16> to vector<8x128xbf16>
    %596 = vector.shape_cast %592 : vector<8x128xbf16> to vector<1x8x128xbf16>
    tpu.vector_store %arg4[%593, %c0_162, %c0_163], %596 {strides = array<i32>} : memref<16x8x128xbf16, #tpu.memory_space<vmem>>, vector<1x8x128xbf16>,
    %c16_i32 = arith.constant 16 : i32
    %c0_164 = arith.constant 0 : index
    %c0_165 = arith.constant 0 : index
    %597 = vector.load %arg6[%c0_164, %c0_165] : memref<8x128xbf16, #tpu.memory_space<vmem>>, vector<8x128xbf16>
    tpu.vector_store %arg6[%c0_164, %c0_165], %592 {strides = array<i32>} : memref<8x128xbf16, #tpu.memory_space<vmem>>, vector<8x128xbf16>,
    %c0_166 = arith.constant 0 : index
    %c0_167 = arith.constant 0 : index
    %598 = vector.load %arg7[%c0_166, %c0_167] : memref<8x128xf32, #tpu.memory_space<vmem>>, vector<8x128xf32>
    tpu.vector_store %arg7[%c0_166, %c0_167], %589 {strides = array<i32>} : memref<8x128xf32, #tpu.memory_space<vmem>>, vector<8x128xf32>,
    %c0_i32_168 = arith.constant 0 : i32
    %599 = arith.cmpi eq, %arg1, %c0_i32_168 : i32
    %600 = arith.extui %599 : i1 to i32
    %c0_i32_169 = arith.constant 0 : i32
    %601 = arith.cmpi ne, %600, %c0_i32_169 : i32
    scf.if %601 {
      %c0_170 = arith.constant 0 : index
      %c0_171 = arith.constant 0 : index
      %c0_172 = arith.constant 0 : index
      %602 = vector.load %arg5[%c0_170, %c0_171, %c0_172] : memref<1x8x128xf32, #tpu.memory_space<vmem>>, vector<1x8x128xf32>
      %603 = vector.shape_cast %602 : vector<1x8x128xf32> to vector<8x128xf32>
      %604 = vector.shape_cast %589 : vector<8x128xf32> to vector<1x8x128xf32>
      tpu.vector_store %arg5[%c0_170, %c0_171, %c0_172], %604 {strides = array<i32>} : memref<1x8x128xf32, #tpu.memory_space<vmem>>, vector<1x8x128xf32>,
    } else {
    }
    return
  }
  func.func @transform_0(%arg0: i32, %arg1: i32) -> (i32, i32, i32) {
    %c0_i32 = arith.constant 0 : i32
    %c0_i32_0 = arith.constant 0 : i32
    return %arg1, %arg0, %c0_i32 : i32, i32, i32
  }
  func.func @transform_2(%arg0: i32, %arg1: i32) -> (i32, i32, i32) {
    %c0_i32 = arith.constant 0 : i32
    %c0_i32_0 = arith.constant 0 : i32
    return %arg1, %arg0, %c0_i32 : i32, i32, i32
  }
  func.func @transform_3(%arg0: i32, %arg1: i32) -> (i32, i32, i32) {
    %c0_i32 = arith.constant 0 : i32
    %c0_i32_0 = arith.constant 0 : i32
    %c0_i32_1 = arith.constant 0 : i32
    return %c0_i32, %arg0, %c0_i32_0 : i32, i32, i32
  }
}

</mosaic_0001>

<llo_original>
// kernel: awd_lstm_layer_forward.1
$region0: #{awd_lstm_layer_forward.1}
  #allocation0 [shape = 'u32[]', space=smem, size = 0x4, offset = 0x4, fixed_abs, tag = 'smem constant byte address 0x4 - core index']
  #allocation1 [shape = 'u32[144,128]{1,0:T(1,128)}', space=vmem, size = 0x12000, scoped, tag = 'internal scratch']
  #allocation2 [shape = 'bf16[8,128]{1,0:T(8,128)(2,1)}', space=vmem, size = 0x800, scoped, tag = 'scratch operand']
  #allocation3 [shape = 'f32[8,128]{1,0:T(8,128)}', space=vmem, size = 0x1000, scoped, tag = 'scratch operand']
  #allocation4 [shape = 'bf16[128,512]{1,0:T(8,128)(2,1)}', space=vmem, size = 0x20000, scoped, tag = 'scratch operand']
  #allocation5 [shape = 's32[1]{0}', space=sflag, size = 0x4, scoped, tag = 'scratch operand']
  #allocation6 [shape = 's32[]', space=sflag, size = 0x4, offset = 0, fixed_abs, tag = 'sflag constant byte address 0x0 - dummy sync flag']
  %s0 = inlined_call_operand.vmem [shape: bf16[16,8,512], index: 0, kind: input, shape index: {}]
  %s1 = inlined_call_operand.vmem [shape: bf16[128,512], index: 1, kind: input, shape index: {}]
  %s2 = inlined_call_operand.vmem [shape: bf16[16,8,128], index: 2, kind: output, shape index: {0}]
  %s3 = inlined_call_operand.vmem [shape: f32[1,8,128], index: 3, kind: output, shape index: {1}]
  %4 = xla_tuple %s2, %s3
  %s5 = sld [smem:[#allocation0]]
  $region64: #{awd_lstm_layer_forward.1} parent=0
    _
  %s7 = ssub.s32 1, %s5
  %s8 = scalar_select 0, %s7, %s5
  // Predicated region
  $region2: #{awd_lstm_layer_forward.1} parent=0 // pred_check
    _
  $region3: #{awd_lstm_layer_forward.1} parent=0 // pred_check_branch
    %10 = sbr.rel (0) target = $region5
  $region4: #{awd_lstm_layer_forward.1} parent=0 // pred_region
    _
  $region5: #{awd_lstm_layer_forward.1} parent=0 // pred_fallthru
    _
  %p12 = scmp.eq.s32.totalorder 0, 0
  // Predicated region
  $region6: #{awd_lstm_layer_forward.1} parent=0 // pred_check
    %p13 = pneg %p12
  $region7: #{awd_lstm_layer_forward.1} parent=0 // pred_check_branch
    %15 = sbr.rel (%p13) target = $region9
  $region8: #{awd_lstm_layer_forward.1} parent=0 // pred_region
    %p17 = scmp.lt.u32.totalorder 256, 8
    %p18 = pneg %p17
    // Predicated region
    $region10: #{awd_lstm_layer_forward.1} parent=8 // pred_check
      _
    $region11: #{awd_lstm_layer_forward.1} parent=8 // pred_check_branch
      %20 = sbr.rel (%p17) target = $region13
    $region12: #{awd_lstm_layer_forward.1} parent=8 // pred_region
      %s36 = sand.u32 256, 7
      %p37 = scmp.eq.s32.totalorder %s36, 0
      // Predicated region
      $region25: #{awd_lstm_layer_forward.1} parent=12 // pred_check
        %p38 = pneg %p37
      $region26: #{awd_lstm_layer_forward.1} parent=12 // pred_check_branch
        %40 = sbr.rel (%p38) target = $region28
      $region27: #{awd_lstm_layer_forward.1} parent=12 // pred_region
        loop: start=0, step=1, limit=1
        $region29: #{awd_lstm_layer_forward.1} parent=27 // loop_pre_header
          _
        $region30: #{awd_lstm_layer_forward.1} parent=27 // loop_header
          %s42 = sphi 0, %s46
          %p43 = scmp.ge.s32.totalorder %s42, 1
          %s47 = sphi %s1, %s1
          %s48 = sphi [#allocation4], [#allocation4]
        $region31: #{awd_lstm_layer_forward.1} parent=27 // loop_header_branch
          %45 = sbr.rel (%p43) target = $region35
        $region32: #{awd_lstm_layer_forward.1} parent=27 // loop_body
          %v49 = vld [vmem:[%s47] sm:$0xff]
          %50 = vst [vmem:[%s48] sm:$0xff] %v49
          %v51 = vld [vmem:[%s47 + $0x8] sm:$0xff]
          %52 = vst [vmem:[%s48 + $0x8] sm:$0xff] %v51
          %v53 = vld [vmem:[%s47 + $0x10] sm:$0xff]
          %54 = vst [vmem:[%s48 + $0x10] sm:$0xff] %v53
          %v55 = vld [vmem:[%s47 + $0x18] sm:$0xff]
          %56 = vst [vmem:[%s48 + $0x18] sm:$0xff] %v55
          %v57 = vld [vmem:[%s47 + $0x20] sm:$0xff]
          %58 = vst [vmem:[%s48 + $0x20] sm:$0xff] %v57
          %v59 = vld [vmem:[%s47 + $0x28] sm:$0xff]
          %60 = vst [vmem:[%s48 + $0x28] sm:$0xff] %v59
          %v61 = vld [vmem:[%s47 + $0x30] sm:$0xff]
          %62 = vst [vmem:[%s48 + $0x30] sm:$0xff] %v61
          %v63 = vld [vmem:[%s47 + $0x38] sm:$0xff]
          %64 = vst [vmem:[%s48 + $0x38] sm:$0xff] %v63
          %v65 = vld [vmem:[%s47 + $0x40] sm:$0xff]
          %66 = vst [vmem:[%s48 + $0x40] sm:$0xff] %v65
          %v67 = vld [vmem:[%s47 + $0x48] sm:$0xff]
          %68 = vst [vmem:[%s48 + $0x48] sm:$0xff] %v67
          %v69 = vld [vmem:[%s47 + $0x50] sm:$0xff]
          %70 = vst [vmem:[%s48 + $0x50] sm:$0xff] %v69
          %v71 = vld [vmem:[%s47 + $0x58] sm:$0xff]
          %72 = vst [vmem:[%s48 + $0x58] sm:$0xff] %v71
          %v73 = vld [vmem:[%s47 + $0x60] sm:$0xff]
          %74 = vst [vmem:[%s48 + $0x60] sm:$0xff] %v73
          %v75 = vld [vmem:[%s47 + $0x68] sm:$0xff]
          %76 = vst [vmem:[%s48 + $0x68] sm:$0xff] %v75
          %v77 = vld [vmem:[%s47 + $0x70] sm:$0xff]
          %78 = vst [vmem:[%s48 + $0x70] sm:$0xff] %v77
          %v79 = vld [vmem:[%s47 + $0x78] sm:$0xff]
          %80 = vst [vmem:[%s48 + $0x78] sm:$0xff] %v79
          %v81 = vld [vmem:[%s47 + $0x80] sm:$0xff]
          %82 = vst [vmem:[%s48 + $0x80] sm:$0xff] %v81
          %v83 = vld [vmem:[%s47 + $0x88] sm:$0xff]
          %84 = vst [vmem:[%s48 + $0x88] sm:$0xff] %v83
          %v85 = vld [vmem:[%s47 + $0x90] sm:$0xff]
          %86 = vst [vmem:[%s48 + $0x90] sm:$0xff] %v85
          %v87 = vld [vmem:[%s47 + $0x98] sm:$0xff]
          %88 = vst [vmem:[%s48 + $0x98] sm:$0xff] %v87
          %v89 = vld [vmem:[%s47 + $0xa0] sm:$0xff]
          %90 = vst [vmem:[%s48 + $0xa0] sm:$0xff] %v89
          %v91 = vld [vmem:[%s47 + $0xa8] sm:$0xff]
          %92 = vst [vmem:[%s48 + $0xa8] sm:$0xff] %v91
          %v93 = vld [vmem:[%s47 + $0xb0] sm:$0xff]
          %94 = vst [vmem:[%s48 + $0xb0] sm:$0xff] %v93
          %v95 = vld [vmem:[%s47 + $0xb8] sm:$0xff]
          %96 = vst [vmem:[%s48 + $0xb8] sm:$0xff] %v95
          %v97 = vld [vmem:[%s47 + $0xc0] sm:$0xff]
          %98 = vst [vmem:[%s48 + $0xc0] sm:$0xff] %v97
          %v99 = vld [vmem:[%s47 + $0xc8] sm:$0xff]
          %100 = vst [vmem:[%s48 + $0xc8] sm:$0xff] %v99
          %v101 = vld [vmem:[%s47 + $0xd0] sm:$0xff]
          %102 = vst [vmem:[%s48 + $0xd0] sm:$0xff] %v101
          %v103 = vld [vmem:[%s47 + $0xd8] sm:$0xff]
          %104 = vst [vmem:[%s48 + $0xd8] sm:$0xff] %v103
          %v105 = vld [vmem:[%s47 + $0xe0] sm:$0xff]
          %106 = vst [vmem:[%s48 + $0xe0] sm:$0xff] %v105
          %v107 = vld [vmem:[%s47 + $0xe8] sm:$0xff]
          %108 = vst [vmem:[%s48 + $0xe8] sm:$0xff] %v107
          %v109 = vld [vmem:[%s47 + $0xf0] sm:$0xff]
          %110 = vst [vmem:[%s48 + $0xf0] sm:$0xff] %v109
          %v111 = vld [vmem:[%s47 + $0xf8] sm:$0xff]
          %112 = vst [vmem:[%s48 + $0xf8] sm:$0xff] %v111
        $region33: #{awd_lstm_layer_forward.1} parent=27 // loop_footer
          %s46 = sadd.s32 1, %s42
        $region34: #{awd_lstm_layer_forward.1} parent=27 // loop_footer_branch
          %41 = sbr.rel target = $region30
        $region35: #{awd_lstm_layer_forward.1} parent=27 // loop_exit
          _
      $region28: #{awd_lstm_layer_forward.1} parent=12 // pred_fallthru
        _
      %p113 = pneg %p37
      // Predicated region
      $region36: #{awd_lstm_layer_forward.1} parent=12 // pred_check
        _
      $region37: #{awd_lstm_layer_forward.1} parent=12 // pred_check_branch
        %115 = sbr.rel (%p37) target = $region39
      $region38: #{awd_lstm_layer_forward.1} parent=12 // pred_region
        %s116 = sand.u32 256, 7
      $region39: #{awd_lstm_layer_forward.1} parent=12 // pred_fallthru
        _
    $region13: #{awd_lstm_layer_forward.1} parent=8 // pred_fallthru
      _
    // Predicated region
    $region14: #{awd_lstm_layer_forward.1} parent=8 // pred_check
      %p21 = pneg %p17
    $region15: #{awd_lstm_layer_forward.1} parent=8 // pred_check_branch
      %23 = sbr.rel (%p21) target = $region17
    $region16: #{awd_lstm_layer_forward.1} parent=8 // pred_region
      %s24 = sshll.u32 1, 256
      %s25 = ssub.s32 %s24, 1
      loop: start=0, step=1, limit=1
      $region18: #{awd_lstm_layer_forward.1} parent=16 // loop_pre_header
        _
      $region19: #{awd_lstm_layer_forward.1} parent=16 // loop_header
        %s27 = sphi 0, %s31
        %p28 = scmp.ge.s32.totalorder %s27, 1
        %s32 = sphi %s1, %s1
        %s33 = sphi [#allocation4], [#allocation4]
      $region20: #{awd_lstm_layer_forward.1} parent=16 // loop_header_branch
        %30 = sbr.rel (%p28) target = $region24
      $region21: #{awd_lstm_layer_forward.1} parent=16 // loop_body
        %v34 = vld [vmem:[%s32] sm:%s25]
        %35 = vst [vmem:[%s33] sm:%s25] %v34
      $region22: #{awd_lstm_layer_forward.1} parent=16 // loop_footer
        %s31 = sadd.s32 1, %s27
      $region23: #{awd_lstm_layer_forward.1} parent=16 // loop_footer_branch
        %26 = sbr.rel target = $region19
      $region24: #{awd_lstm_layer_forward.1} parent=16 // loop_exit
        _
    $region17: #{awd_lstm_layer_forward.1} parent=8 // pred_fallthru
      _
    // Predicated region
    $region40: #{awd_lstm_layer_forward.1} parent=8 // pred_check
      _
    $region41: #{awd_lstm_layer_forward.1} parent=8 // pred_check_branch
      %119 = sbr.rel (0) target = $region43
    $region42: #{awd_lstm_layer_forward.1} parent=8 // pred_region
      %120 = vsyncadd [#allocation5], 4096
    $region43: #{awd_lstm_layer_forward.1} parent=8 // pred_fallthru
      _
    %121 = vst [vmem:[#allocation2] sm:$0xf] 0
    %122 = vst [vmem:[#allocation3] sm:$0xff] 0.0
    %s123 = smul.u32 4, 16
    %s124 = smul.u32 %s123, 4
    %s125 = sshll.u32 %s124, 4
    %126 = dma.done [#allocation5], %s125
  $region9: #{awd_lstm_layer_forward.1} parent=0 // pred_fallthru
    _
  %v127 = vld [vmem:[#allocation2] sm:$0xf]
  %v128 = vld [vmem:[#allocation3] sm:$0xff]
  %v129 = vld [vmem:[#allocation4] sm:$0xff]
  %v130 = vld [vmem:[#allocation4 + $0x8] sm:$0xff]
  %v131 = vld [vmem:[#allocation4 + $0x10] sm:$0xff]
  %v132 = vld [vmem:[#allocation4 + $0x18] sm:$0xff]
  %v133 = vld [vmem:[#allocation4 + $0x20] sm:$0xff]
  %v134 = vld [vmem:[#allocation4 + $0x28] sm:$0xff]
  %v135 = vld [vmem:[#allocation4 + $0x30] sm:$0xff]
  %v136 = vld [vmem:[#allocation4 + $0x38] sm:$0xff]
  %v137 = vld [vmem:[#allocation4 + $0x40] sm:$0xff]
  %v138 = vld [vmem:[#allocation4 + $0x48] sm:$0xff]
  %v139 = vld [vmem:[#allocation4 + $0x50] sm:$0xff]
  %v140 = vld [vmem:[#allocation4 + $0x58] sm:$0xff]
  %v141 = vld [vmem:[#allocation4 + $0x60] sm:$0xff]
  %v142 = vld [vmem:[#allocation4 + $0x68] sm:$0xff]
  %v143 = vld [vmem:[#allocation4 + $0x70] sm:$0xff]
  %v144 = vld [vmem:[#allocation4 + $0x78] sm:$0xff]
  %v145 = vld [vmem:[#allocation4 + $0x80] sm:$0xff]
  %v146 = vld [vmem:[#allocation4 + $0x88] sm:$0xff]
  %v147 = vld [vmem:[#allocation4 + $0x90] sm:$0xff]
  %v148 = vld [vmem:[#allocation4 + $0x98] sm:$0xff]
  %v149 = vld [vmem:[#allocation4 + $0xa0] sm:$0xff]
  %v150 = vld [vmem:[#allocation4 + $0xa8] sm:$0xff]
  %v151 = vld [vmem:[#allocation4 + $0xb0] sm:$0xff]
  %v152 = vld [vmem:[#allocation4 + $0xb8] sm:$0xff]
  %v153 = vld [vmem:[#allocation4 + $0xc0] sm:$0xff]
  %v154 = vld [vmem:[#allocation4 + $0xc8] sm:$0xff]
  %v155 = vld [vmem:[#allocation4 + $0xd0] sm:$0xff]
  %v156 = vld [vmem:[#allocation4 + $0xd8] sm:$0xff]
  %v157 = vld [vmem:[#allocation4 + $0xe0] sm:$0xff]
  %v158 = vld [vmem:[#allocation4 + $0xe8] sm:$0xff]
  %v159 = vld [vmem:[#allocation4 + $0xf0] sm:$0xff]
  %v160 = vld [vmem:[#allocation4 + $0xf8] sm:$0xff]
  %v161 = vld [vmem:[%s0] sm:$0xff]
  %v162 = vld [vmem:[%s0 + $0x8] sm:$0xff]
  %v163 = vunpack.c.l.bf16 %v161
  %v164 = vunpack.c.h.bf16 %v161
  %v165 = vunpack.c.l.bf16 %v162
  %v166 = vunpack.c.h.bf16 %v162
  %v199 = vunpack.c.l.b16 %v129
  %v200 = vunpack.c.h.b16 %v129
  %v201 = vunpack.c.l.b16 %v130
  %v202 = vunpack.c.h.b16 %v130
  %v203 = vunpack.c.l.b16 %v131
  %v204 = vunpack.c.h.b16 %v131
  %v205 = vunpack.c.l.b16 %v132
  %v206 = vunpack.c.h.b16 %v132
  %v207 = vunpack.c.l.b16 %v133
  %v208 = vunpack.c.h.b16 %v133
  %v209 = vunpack.c.l.b16 %v134
  %v210 = vunpack.c.h.b16 %v134
  %v211 = vunpack.c.l.b16 %v135
  %v212 = vunpack.c.h.b16 %v135
  %v213 = vunpack.c.l.b16 %v136
  %v214 = vunpack.c.h.b16 %v136
  %v215 = vunpack.c.l.b16 %v137
  %v216 = vunpack.c.h.b16 %v137
  %v217 = vunpack.c.l.b16 %v138
  %v218 = vunpack.c.h.b16 %v138
  %v219 = vunpack.c.l.b16 %v139
  %v220 = vunpack.c.h.b16 %v139
  %v221 = vunpack.c.l.b16 %v140
  %v222 = vunpack.c.h.b16 %v140
  %v223 = vunpack.c.l.b16 %v141
  %v224 = vunpack.c.h.b16 %v141
  %v225 = vunpack.c.l.b16 %v142
  %v226 = vunpack.c.h.b16 %v142
  %v227 = vunpack.c.l.b16 %v143
  %v228 = vunpack.c.h.b16 %v143
  %v229 = vunpack.c.l.b16 %v144
  %v230 = vunpack.c.h.b16 %v144
  %v231 = vunpack.c.l.b16 %v145
  %v232 = vunpack.c.h.b16 %v145
  %v233 = vunpack.c.l.b16 %v146
  %v234 = vunpack.c.h.b16 %v146
  %v235 = vunpack.c.l.b16 %v147
  %v236 = vunpack.c.h.b16 %v147
  %v237 = vunpack.c.l.b16 %v148
  %v238 = vunpack.c.h.b16 %v148
  %v239 = vunpack.c.l.b16 %v149
  %v240 = vunpack.c.h.b16 %v149
  %v241 = vunpack.c.l.b16 %v150
  %v242 = vunpack.c.h.b16 %v150
  %v243 = vunpack.c.l.b16 %v151
  %v244 = vunpack.c.h.b16 %v151
  %v245 = vunpack.c.l.b16 %v152
  %v246 = vunpack.c.h.b16 %v152
  %v247 = vunpack.c.l.b16 %v153
  %v248 = vunpack.c.h.b16 %v153
  %v249 = vunpack.c.l.b16 %v154
  %v250 = vunpack.c.h.b16 %v154
  %v251 = vunpack.c.l.b16 %v155
  %v252 = vunpack.c.h.b16 %v155
  %v253 = vunpack.c.l.b16 %v156
  %v254 = vunpack.c.h.b16 %v156
  %v255 = vunpack.c.l.b16 %v157
  %v256 = vunpack.c.h.b16 %v157
  %v257 = vunpack.c.l.b16 %v158
  %v258 = vunpack.c.h.b16 %v158
  %v259 = vunpack.c.l.b16 %v159
  %v260 = vunpack.c.h.b16 %v159
  %v261 = vunpack.c.l.b16 %v160
  %v262 = vunpack.c.h.b16 %v160
  %v263 = vpack.c.b16 %v203, %v199
  %v264 = vpack.c.b16 %v204, %v200
  %v265 = vpack.c.b16 %v205, %v201
  %v266 = vpack.c.b16 %v206, %v202
  %v267 = vpack.c.b16 %v211, %v207
  %v268 = vpack.c.b16 %v212, %v208
  %v269 = vpack.c.b16 %v213, %v209
  %v270 = vpack.c.b16 %v214, %v210
  %v271 = vpack.c.b16 %v219, %v215
  %v272 = vpack.c.b16 %v220, %v216
  %v273 = vpack.c.b16 %v221, %v217
  %v274 = vpack.c.b16 %v222, %v218
  %v275 = vpack.c.b16 %v227, %v223
  %v276 = vpack.c.b16 %v228, %v224
  %v277 = vpack.c.b16 %v229, %v225
  %v278 = vpack.c.b16 %v230, %v226
  %v279 = vpack.c.b16 %v235, %v231
  %v280 = vpack.c.b16 %v236, %v232
  %v281 = vpack.c.b16 %v237, %v233
  %v282 = vpack.c.b16 %v238, %v234
  %v283 = vpack.c.b16 %v243, %v239
  %v284 = vpack.c.b16 %v244, %v240
  %v285 = vpack.c.b16 %v245, %v241
  %v286 = vpack.c.b16 %v246, %v242
  %v287 = vpack.c.b16 %v251, %v247
  %v288 = vpack.c.b16 %v252, %v248
  %v289 = vpack.c.b16 %v253, %v249
  %v290 = vpack.c.b16 %v254, %v250
  %v291 = vpack.c.b16 %v259, %v255
  %v292 = vpack.c.b16 %v260, %v256
  %v293 = vpack.c.b16 %v261, %v257
  %v294 = vpack.c.b16 %v262, %v258
  %327 = vmatprep.subr.bf16.mxu0 %v292
  %328 = vmatpush1.bf16.msra.mxu0 %v291
  %329 = vmatprep.subr.bf16.mxu0 %v288
  %330 = vmatpush1.bf16.msra.mxu0 %v287
  %331 = vmatprep.subr.bf16.mxu0 %v284
  %332 = vmatpush1.bf16.msra.mxu0 %v283
  %333 = vmatprep.subr.bf16.mxu0 %v280
  %334 = vmatpush1.bf16.msra.mxu0 %v279
  %335 = vmatprep.subr.bf16.mxu0 %v276
  %336 = vmatpush1.bf16.msra.mxu0 %v275
  %337 = vmatprep.subr.bf16.mxu0 %v272
  %338 = vmatpush1.bf16.msra.mxu0 %v271
  %339 = vmatprep.subr.bf16.mxu0 %v268
  %340 = vmatpush1.bf16.msra.mxu0 %v267
  %341 = vmatprep.subr.bf16.mxu0 %v264
  %342 = vmatpush1.bf16.msra.mxu0 %v263
  %343 = vmatprep.subr.bf16.mxu0 0
  %344 = vmatpush2.bf16.msra.mxu0 0
  %345 = vmatprep.subr.bf16.mxu0 0
  %346 = vmatpush2.bf16.msra.mxu0 0
  %347 = vmatprep.subr.bf16.mxu0 0
  %348 = vmatpush2.bf16.msra.mxu0 0
  %349 = vmatprep.subr.bf16.mxu0 0
  %350 = vmatpush2.bf16.msra.mxu0 0
  %351 = vmatprep.subr.bf16.mxu0 0
  %352 = vmatpush2.bf16.msra.mxu0 0
  %353 = vmatprep.subr.bf16.mxu0 0
  %354 = vmatpush2.bf16.msra.mxu0 0
  %355 = vmatprep.subr.bf16.mxu0 0
  %356 = vmatpush2.bf16.msra.mxu0 0
  %357 = vmatprep.subr.bf16.mxu0 0
  %358 = vmatpush2.bf16.msra.mxu0 0
  %359 = vmatprep.mubr.bf16.mxu0 0
  %360 = vmatmul.mubr.bf16.gmra.mxu0 %v127
  %v361 = vpop.f32.mrf.mxu0
  %v362 = vadd.f32 %v163, %v361
  %v363 = vpop.f32.mrf.mxu0
  %v364 = vadd.f32 %v164, %v363
  %v365 = vpop.f32.mrf.mxu0
  %v366 = vpop.f32.mrf.mxu0
  %367 = vdwg.mxu0
  %368 = vmatprep.subr.bf16.mxu0 %v294
  %369 = vmatpush1.bf16.msra.mxu0 %v293
  %370 = vmatprep.subr.bf16.mxu0 %v290
  %371 = vmatpush1.bf16.msra.mxu0 %v289
  %372 = vmatprep.subr.bf16.mxu0 %v286
  %373 = vmatpush1.bf16.msra.mxu0 %v285
  %374 = vmatprep.subr.bf16.mxu0 %v282
  %375 = vmatpush1.bf16.msra.mxu0 %v281
  %376 = vmatprep.subr.bf16.mxu0 %v278
  %377 = vmatpush1.bf16.msra.mxu0 %v277
  %378 = vmatprep.subr.bf16.mxu0 %v274
  %379 = vmatpush1.bf16.msra.mxu0 %v273
  %380 = vmatprep.subr.bf16.mxu0 %v270
  %381 = vmatpush1.bf16.msra.mxu0 %v269
  %382 = vmatprep.subr.bf16.mxu0 %v266
  %383 = vmatpush1.bf16.msra.mxu0 %v265
  %384 = vmatprep.subr.bf16.mxu0 0
  %385 = vmatpush2.bf16.msra.mxu0 0
  %386 = vmatprep.subr.bf16.mxu0 0
  %387 = vmatpush2.bf16.msra.mxu0 0
  %388 = vmatprep.subr.bf16.mxu0 0
  %389 = vmatpush2.bf16.msra.mxu0 0
  %390 = vmatprep.subr.bf16.mxu0 0
  %391 = vmatpush2.bf16.msra.mxu0 0
  %392 = vmatprep.subr.bf16.mxu0 0
  %393 = vmatpush2.bf16.msra.mxu0 0
  %394 = vmatprep.subr.bf16.mxu0 0
  %395 = vmatpush2.bf16.msra.mxu0 0
  %396 = vmatprep.subr.bf16.mxu0 0
  %397 = vmatpush2.bf16.msra.mxu0 0
  %398 = vmatprep.subr.bf16.mxu0 0
  %399 = vmatpush2.bf16.msra.mxu0 0
  %400 = vmatprep.mubr.bf16.mxu0 0
  %401 = vmatmul.mubr.bf16.gmra.mxu0 %v127
  %v402 = vpop.f32.mrf.mxu0
  %v403 = vadd.f32 %v165, %v402
  %v404 = vpop.f32.mrf.mxu0
  %v405 = vadd.f32 %v166, %v404
  %v406 = vpop.f32.mrf.mxu0
  %v407 = vpop.f32.mrf.mxu0
  %408 = vdwg.mxu0
  %v409 = vxor.u32 %v362, 2147483648
  %v410 = vmul.f32 %v409, 1.442695
  %v411 = vpow.pop %v410
  %v412 = vadd.f32 %v411, 1.0
  %v413 = vrcp.pop %v412
  %v414 = vmul.f32 1.0, %v413
  %v415 = vxor.u32 %v364, 2147483648
  %v416 = vmul.f32 %v415, 1.442695
  %v417 = vpow.pop %v416
  %v418 = vadd.f32 %v417, 1.0
  %v419 = vrcp.pop %v418
  %v420 = vmul.f32 1.0, %v419
  %v421 = vtanh.pop %v403
  %v422 = vxor.u32 %v405, 2147483648
  %v423 = vmul.f32 %v422, 1.442695
  %v424 = vpow.pop %v423
  %v425 = vadd.f32 %v424, 1.0
  %v426 = vrcp.pop %v425
  %v427 = vmul.f32 1.0, %v426
  %v428 = vmul.f32 %v420, %v128
  %v429 = vmul.f32 %v414, %v421
  %v430 = vadd.f32 %v428, %v429
  %v431 = vtanh.pop %v430
  %v432 = vmul.f32 %v427, %v431
  %v433 = vpack.c.bf16 %v432, %v432
  %434 = vst [vmem:[%s2] sm:$0xf] %v433
  %v435 = vld [vmem:[#allocation4] sm:$0xff]
  %v436 = vld [vmem:[#allocation4 + $0x8] sm:$0xff]
  %v437 = vld [vmem:[#allocation4 + $0x10] sm:$0xff]
  %v438 = vld [vmem:[#allocation4 + $0x18] sm:$0xff]
  %v439 = vld [vmem:[#allocation4 + $0x20] sm:$0xff]
  %v440 = vld [vmem:[#allocation4 + $0x28] sm:$0xff]
  %v441 = vld [vmem:[#allocation4 + $0x30] sm:$0xff]
  %v442 = vld [vmem:[#allocation4 + $0x38] sm:$0xff]
  %v443 = vld [vmem:[#allocation4 + $0x40] sm:$0xff]
  %v444 = vld [vmem:[#allocation4 + $0x48] sm:$0xff]
  %v445 = vld [vmem:[#allocation4 + $0x50] sm:$0xff]
  %v446 = vld [vmem:[#allocation4 + $0x58] sm:$0xff]
  %v447 = vld [vmem:[#allocation4 + $0x60] sm:$0xff]
  %v448 = vld [vmem:[#allocation4 + $0x68] sm:$0xff]
  %v449 = vld [vmem:[#allocation4 + $0x70] sm:$0xff]
  %v450 = vld [vmem:[#allocation4 + $0x78] sm:$0xff]
  %v451 = vld [vmem:[#allocation4 + $0x80] sm:$0xff]
  %v452 = vld [vmem:[#allocation4 + $0x88] sm:$0xff]
  %v453 = vld [vmem:[#allocation4 + $0x90] sm:$0xff]
  %v454 = vld [vmem:[#allocation4 + $0x98] sm:$0xff]
  %v455 = vld [vmem:[#allocation4 + $0xa0] sm:$0xff]
  %v456 = vld [vmem:[#allocation4 + $0xa8] sm:$0xff]
  %v457 = vld [vmem:[#allocation4 + $0xb0] sm:$0xff]
  %v458 = vld [vmem:[#allocation4 + $0xb8] sm:$0xff]
  %v459 = vld [vmem:[#allocation4 + $0xc0] sm:$0xff]
  %v460 = vld [vmem:[#allocation4 + $0xc8] sm:$0xff]
  %v461 = vld [vmem:[#allocation4 + $0xd0] sm:$0xff]
  %v462 = vld [vmem:[#allocation4 + $0xd8] sm:$0xff]
  %v463 = vld [vmem:[#allocation4 + $0xe0] sm:$0xff]
  %v464 = vld [vmem:[#allocation4 + $0xe8] sm:$0xff]
  %v465 = vld [vmem:[#allocation4 + $0xf0] sm:$0xff]
  %v466 = vld [vmem:[#allocation4 + $0xf8] sm:$0xff]
  %s467 = scalar_lea.vmem %s0, 16
  %v468 = vld [vmem:[%s467] sm:$0xff]
  %v469 = vld [vmem:[%s467 + $0x8] sm:$0xff]
  %v470 = vunpack.c.l.bf16 %v468
  %v471 = vunpack.c.h.bf16 %v468
  %v472 = vunpack.c.l.bf16 %v469
  %v473 = vunpack.c.h.bf16 %v469
  %v506 = vunpack.c.l.b16 %v435
  %v507 = vunpack.c.h.b16 %v435
  %v508 = vunpack.c.l.b16 %v436
  %v509 = vunpack.c.h.b16 %v436
  %v510 = vunpack.c.l.b16 %v437
  %v511 = vunpack.c.h.b16 %v437
  %v512 = vunpack.c.l.b16 %v438
  %v513 = vunpack.c.h.b16 %v438
  %v514 = vunpack.c.l.b16 %v439
  %v515 = vunpack.c.h.b16 %v439
  %v516 = vunpack.c.l.b16 %v440
  %v517 = vunpack.c.h.b16 %v440
  %v518 = vunpack.c.l.b16 %v441
  %v519 = vunpack.c.h.b16 %v441
  %v520 = vunpack.c.l.b16 %v442
  %v521 = vunpack.c.h.b16 %v442
  %v522 = vunpack.c.l.b16 %v443
  %v523 = vunpack.c.h.b16 %v443
  %v524 = vunpack.c.l.b16 %v444
  %v525 = vunpack.c.h.b16 %v444
  %v526 = vunpack.c.l.b16 %v445
  %v527 = vunpack.c.h.b16 %v445
  %v528 = vunpack.c.l.b16 %v446
  %v529 = vunpack.c.h.b16 %v446
  %v530 = vunpack.c.l.b16 %v447
  %v531 = vunpack.c.h.b16 %v447
  %v532 = vunpack.c.l.b16 %v448
  %v533 = vunpack.c.h.b16 %v448
  %v534 = vunpack.c.l.b16 %v449
  %v535 = vunpack.c.h.b16 %v449
  %v536 = vunpack.c.l.b16 %v450
  %v537 = vunpack.c.h.b16 %v450
  %v538 = vunpack.c.l.b16 %v451
  %v539 = vunpack.c.h.b16 %v451
  %v540 = vunpack.c.l.b16 %v452
  %v541 = vunpack.c.h.b16 %v452
  %v542 = vunpack.c.l.b16 %v453
  %v543 = vunpack.c.h.b16 %v453
  %v544 = vunpack.c.l.b16 %v454
  %v545 = vunpack.c.h.b16 %v454
  %v546 = vunpack.c.l.b16 %v455
  %v547 = vunpack.c.h.b16 %v455
  %v548 = vunpack.c.l.b16 %v456
  %v549 = vunpack.c.h.b16 %v456
  %v550 = vunpack.c.l.b16 %v457
  %v551 = vunpack.c.h.b16 %v457
  %v552 = vunpack.c.l.b16 %v458
  %v553 = vunpack.c.h.b16 %v458
  %v554 = vunpack.c.l.b16 %v459
  %v555 = vunpack.c.h.b16 %v459
  %v556 = vunpack.c.l.b16 %v460
  %v557 = vunpack.c.h.b16 %v460
  %v558 = vunpack.c.l.b16 %v461
  %v559 = vunpack.c.h.b16 %v461
  %v560 = vunpack.c.l.b16 %v462
  %v561 = vunpack.c.h.b16 %v462
  %v562 = vunpack.c.l.b16 %v463
  %v563 = vunpack.c.h.b16 %v463
  %v564 = vunpack.c.l.b16 %v464
  %v565 = vunpack.c.h.b16 %v464
  %v566 = vunpack.c.l.b16 %v465
  %v567 = vunpack.c.h.b16 %v465
  %v568 = vunpack.c.l.b16 %v466
  %v569 = vunpack.c.h.b16 %v466
  %v570 = vpack.c.b16 %v510, %v506
  %v571 = vpack.c.b16 %v511, %v507
  %v572 = vpack.c.b16 %v512, %v508
  %v573 = vpack.c.b16 %v513, %v509
  %v574 = vpack.c.b16 %v518, %v514
  %v575 = vpack.c.b16 %v519, %v515
  %v576 = vpack.c.b16 %v520, %v516
  %v577 = vpack.c.b16 %v521, %v517
  %v578 = vpack.c.b16 %v526, %v522
  %v579 = vpack.c.b16 %v527, %v523
  %v580 = vpack.c.b16 %v528, %v524
  %v581 = vpack.c.b16 %v529, %v525
  %v582 = vpack.c.b16 %v534, %v530
  %v583 = vpack.c.b16 %v535, %v531
  %v584 = vpack.c.b16 %v536, %v532
  %v585 = vpack.c.b16 %v537, %v533
  %v586 = vpack.c.b16 %v542, %v538
  %v587 = vpack.c.b16 %v543, %v539
  %v588 = vpack.c.b16 %v544, %v540
  %v589 = vpack.c.b16 %v545, %v541
  %v590 = vpack.c.b16 %v550, %v546
  %v591 = vpack.c.b16 %v551, %v547
  %v592 = vpack.c.b16 %v552, %v548
  %v593 = vpack.c.b16 %v553, %v549
  %v594 = vpack.c.b16 %v558, %v554
  %v595 = vpack.c.b16 %v559, %v555
  %v596 = vpack.c.b16 %v560, %v556
  %v597 = vpack.c.b16 %v561, %v557
  %v598 = vpack.c.b16 %v566, %v562
  %v599 = vpack.c.b16 %v567, %v563
  %v600 = vpack.c.b16 %v568, %v564
  %v601 = vpack.c.b16 %v569, %v565
  %634 = vmatprep.subr.bf16.mxu0 %v599
  %635 = vmatpush1.bf16.msra.mxu0 %v598
  %636 = vmatprep.subr.bf16.mxu0 %v595
  %637 = vmatpush1.bf16.msra.mxu0 %v594
  %638 = vmatprep.subr.bf16.mxu0 %v591
  %639 = vmatpush1.bf16.msra.mxu0 %v590
  %640 = vmatprep.subr.bf16.mxu0 %v587
  %641 = vmatpush1.bf16.msra.mxu0 %v586
  %642 = vmatprep.subr.bf16.mxu0 %v583
  %643 = vmatpush1.bf16.msra.mxu0 %v582
  %644 = vmatprep.subr.bf16.mxu0 %v579
  %645 = vmatpush1.bf16.msra.mxu0 %v578
  %646 = vmatprep.subr.bf16.mxu0 %v575
  %647 = vmatpush1.bf16.msra.mxu0 %v574
  %648 = vmatprep.subr.bf16.mxu0 %v571
  %649 = vmatpush1.bf16.msra.mxu0 %v570
  %650 = vmatprep.subr.bf16.mxu0 0
  %651 = vmatpush2.bf16.msra.mxu0 0
  %652 = vmatprep.subr.bf16.mxu0 0
  %653 = vmatpush2.bf16.msra.mxu0 0
  %654 = vmatprep.subr.bf16.mxu0 0
  %655 = vmatpush2.bf16.msra.mxu0 0
  %656 = vmatprep.subr.bf16.mxu0 0
  %657 = vmatpush2.bf16.msra.mxu0 0
  %658 = vmatprep.subr.bf16.mxu0 0
  %659 = vmatpush2.bf16.msra.mxu0 0
  %660 = vmatprep.subr.bf16.mxu0 0
  %661 = vmatpush2.bf16.msra.mxu0 0
  %662 = vmatprep.subr.bf16.mxu0 0
  %663 = vmatpush2.bf16.msra.mxu0 0
  %664 = vmatprep.subr.bf16.mxu0 0
  %665 = vmatpush2.bf16.msra.mxu0 0
  %666 = vmatprep.mubr.bf16.mxu0 0
  %667 = vmatmul.mubr.bf16.gmra.mxu0 %v433
  %v668 = vpop.f32.mrf.mxu0
  %v669 = vadd.f32 %v470, %v668
  %v670 = vpop.f32.mrf.mxu0
  %v671 = vadd.f32 %v471, %v670
  %v672 = vpop.f32.mrf.mxu0
  %v673 = vpop.f32.mrf.mxu0
  %674 = vdwg.mxu0
  %675 = vmatprep.subr.bf16.mxu0 %v601
  %676 = vmatpush1.bf16.msra.mxu0 %v600
  %677 = vmatprep.subr.bf16.mxu0 %v597
  %678 = vmatpush1.bf16.msra.mxu0 %v596
  %679 = vmatprep.subr.bf16.mxu0 %v593
  %680 = vmatpush1.bf16.msra.mxu0 %v592
  %681 = vmatprep.subr.bf16.mxu0 %v589
  %682 = vmatpush1.bf16.msra.mxu0 %v588
  %683 = vmatprep.subr.bf16.mxu0 %v585
  %684 = vmatpush1.bf16.msra.mxu0 %v584
  %685 = vmatprep.subr.bf16.mxu0 %v581
  %686 = vmatpush1.bf16.msra.mxu0 %v580
  %687 = vmatprep.subr.bf16.mxu0 %v577
  %688 = vmatpush1.bf16.msra.mxu0 %v576
  %689 = vmatprep.subr.bf16.mxu0 %v573
  %690 = vmatpush1.bf16.msra.mxu0 %v572
  %691 = vmatprep.subr.bf16.mxu0 0
  %692 = vmatpush2.bf16.msra.mxu0 0
  %693 = vmatprep.subr.bf16.mxu0 0
  %694 = vmatpush2.bf16.msra.mxu0 0
  %695 = vmatprep.subr.bf16.mxu0 0
  %696 = vmatpush2.bf16.msra.mxu0 0
  %697 = vmatprep.subr.bf16.mxu0 0
  %698 = vmatpush2.bf16.msra.mxu0 0
  %699 = vmatprep.subr.bf16.mxu0 0
  %700 = vmatpush2.bf16.msra.mxu0 0
  %701 = vmatprep.subr.bf16.mxu0 0
  %702 = vmatpush2.bf16.msra.mxu0 0
  %703 = vmatprep.subr.bf16.mxu0 0
  %704 = vmatpush2.bf16.msra.mxu0 0
  %705 = vmatprep.subr.bf16.mxu0 0
  %706 = vmatpush2.bf16.msra.mxu0 0
  %707 = vmatprep.mubr.bf16.mxu0 0
  %708 = vmatmul.mubr.bf16.gmra.mxu0 %v433
  %v709 = vpop.f32.mrf.mxu0
  %v710 = vadd.f32 %v472, %v709
  %v711 = vpop.f32.mrf.mxu0
  %v712 = vadd.f32 %v473, %v711
  %v713 = vpop.f32.mrf.mxu0
  %v714 = vpop.f32.mrf.mxu0
  %715 = vdwg.mxu0
  %v716 = vxor.u32 %v669, 2147483648
  %v717 = vmul.f32 %v716, 1.442695
  %v718 = vpow.pop %v717
  %v719 = vadd.f32 %v718, 1.0
  %v720 = vrcp.pop %v719
  %v721 = vmul.f32 1.0, %v720
  %v722 = vxor.u32 %v671, 2147483648
  %v723 = vmul.f32 %v722, 1.442695
  %v724 = vpow.pop %v723
  %v725 = vadd.f32 %v724, 1.0
  %v726 = vrcp.pop %v725
  %v727 = vmul.f32 1.0, %v726
  %v728 = vtanh.pop %v710
  %v729 = vxor.u32 %v712, 2147483648
  %v730 = vmul.f32 %v729, 1.442695
  %v731 = vpow.pop %v730
  %v732 = vadd.f32 %v731, 1.0
  %v733 = vrcp.pop %v732
  %v734 = vmul.f32 1.0, %v733
  %v735 = vmul.f32 %v727, %v430
  %v736 = vmul.f32 %v721, %v728
  %v737 = vadd.f32 %v735, %v736
  %v738 = vtanh.pop %v737
  %v739 = vmul.f32 %v734, %v738
  %v740 = vpack.c.bf16 %v739, %v739
  %s741 = scalar_lea.vmem %s2, 4
  %742 = vst [vmem:[%s741] sm:$0xf] %v740
  %v743 = vld [vmem:[#allocation4] sm:$0xff]
  %v744 = vld [vmem:[#allocation4 + $0x8] sm:$0xff]
  %v745 = vld [vmem:[#allocation4 + $0x10] sm:$0xff]
  %v746 = vld [vmem:[#allocation4 + $0x18] sm:$0xff]
  %v747 = vld [vmem:[#allocation4 + $0x20] sm:$0xff]
  %v748 = vld [vmem:[#allocation4 + $0x28] sm:$0xff]
  %v749 = vld [vmem:[#allocation4 + $0x30] sm:$0xff]
  %v750 = vld [vmem:[#allocation4 + $0x38] sm:$0xff]
  %v751 = vld [vmem:[#allocation4 + $0x40] sm:$0xff]
  %v752 = vld [vmem:[#allocation4 + $0x48] sm:$0xff]
  %v753 = vld [vmem:[#allocation4 + $0x50] sm:$0xff]
  %v754 = vld [vmem:[#allocation4 + $0x58] sm:$0xff]
  %v755 = vld [vmem:[#allocation4 + $0x60] sm:$0xff]
  %v756 = vld [vmem:[#allocation4 + $0x68] sm:$0xff]
  %v757 = vld [vmem:[#allocation4 + $0x70] sm:$0xff]
  %v758 = vld [vmem:[#allocation4 + $0x78] sm:$0xff]
  %v759 = vld [vmem:[#allocation4 + $0x80] sm:$0xff]
  %v760 = vld [vmem:[#allocation4 + $0x88] sm:$0xff]
  %v761 = vld [vmem:[#allocation4 + $0x90] sm:$0xff]
  %v762 = vld [vmem:[#allocation4 + $0x98] sm:$0xff]
  %v763 = vld [vmem:[#allocation4 + $0xa0] sm:$0xff]
  %v764 = vld [vmem:[#allocation4 + $0xa8] sm:$0xff]
  %v765 = vld [vmem:[#allocation4 + $0xb0] sm:$0xff]
  %v766 = vld [vmem:[#allocation4 + $0xb8] sm:$0xff]
  %v767 = vld [vmem:[#allocation4 + $0xc0] sm:$0xff]
  %v768 = vld [vmem:[#allocation4 + $0xc8] sm:$0xff]
  %v769 = vld [vmem:[#allocation4 + $0xd0] sm:$0xff]
  %v770 = vld [vmem:[#allocation4 + $0xd8] sm:$0xff]
  %v771 = vld [vmem:[#allocation4 + $0xe0] sm:$0xff]
  %v772 = vld [vmem:[#allocation4 + $0xe8] sm:$0xff]
  %v773 = vld [vmem:[#allocation4 + $0xf0] sm:$0xff]
  %v774 = vld [vmem:[#allocation4 + $0xf8] sm:$0xff]
  %s775 = scalar_lea.vmem %s0, 32
  %v776 = vld [vmem:[%s775] sm:$0xff]
  %v777 = vld [vmem:[%s775 + $0x8] sm:$0xff]
  %v778 = vunpack.c.l.bf16 %v776
  %v779 = vunpack.c.h.bf16 %v776
  %v780 = vunpack.c.l.bf16 %v777
  %v781 = vunpack.c.h.bf16 %v777
  %v814 = vunpack.c.l.b16 %v743
  %v815 = vunpack.c.h.b16 %v743
  %v816 = vunpack.c.l.b16 %v744
  %v817 = vunpack.c.h.b16 %v744
  %v818 = vunpack.c.l.b16 %v745
  %v819 = vunpack.c.h.b16 %v745
  %v820 = vunpack.c.l.b16 %v746
  %v821 = vunpack.c.h.b16 %v746
  %v822 = vunpack.c.l.b16 %v747
  %v823 = vunpack.c.h.b16 %v747
  %v824 = vunpack.c.l.b16 %v748
  %v825 = vunpack.c.h.b16 %v748
  %v826 = vunpack.c.l.b16 %v749
  %v827 = vunpack.c.h.b16 %v749
  %v828 = vunpack.c.l.b16 %v750
  %v829 = vunpack.c.h.b16 %v750
  %v830 = vunpack.c.l.b16 %v751
  %v831 = vunpack.c.h.b16 %v751
  %v832 = vunpack.c.l.b16 %v752
  %v833 = vunpack.c.h.b16 %v752
  %v834 = vunpack.c.l.b16 %v753
  %v835 = vunpack.c.h.b16 %v753
  %v836 = vunpack.c.l.b16 %v754
  %v837 = vunpack.c.h.b16 %v754
  %v838 = vunpack.c.l.b16 %v755
  %v839 = vunpack.c.h.b16 %v755
  %v840 = vunpack.c.l.b16 %v756
  %v841 = vunpack.c.h.b16 %v756
  %v842 = vunpack.c.l.b16 %v757
  %v843 = vunpack.c.h.b16 %v757
  %v844 = vunpack.c.l.b16 %v758
  %v845 = vunpack.c.h.b16 %v758
  %v846 = vunpack.c.l.b16 %v759
  %v847 = vunpack.c.h.b16 %v759
  %v848 = vunpack.c.l.b16 %v760
  %v849 = vunpack.c.h.b16 %v760
  %v850 = vunpack.c.l.b16 %v761
  %v851 = vunpack.c.h.b16 %v761
  %v852 = vunpack.c.l.b16 %v762
  %v853 = vunpack.c.h.b16 %v762
  %v854 = vunpack.c.l.b16 %v763
  %v855 = vunpack.c.h.b16 %v763
  %v856 = vunpack.c.l.b16 %v764
  %v857 = vunpack.c.h.b16 %v764
  %v858 = vunpack.c.l.b16 %v765
  %v859 = vunpack.c.h.b16 %v765
  %v860 = vunpack.c.l.b16 %v766
  %v861 = vunpack.c.h.b16 %v766
  %v862 = vunpack.c.l.b16 %v767
  %v863 = vunpack.c.h.b16 %v767
  %v864 = vunpack.c.l.b16 %v768
  %v865 = vunpack.c.h.b16 %v768
  %v866 = vunpack.c.l.b16 %v769
  %v867 = vunpack.c.h.b16 %v769
  %v868 = vunpack.c.l.b16 %v770
  %v869 = vunpack.c.h.b16 %v770
  %v870 = vunpack.c.l.b16 %v771
  %v871 = vunpack.c.h.b16 %v771
  %v872 = vunpack.c.l.b16 %v772
  %v873 = vunpack.c.h.b16 %v772
  %v874 = vunpack.c.l.b16 %v773
  %v875 = vunpack.c.h.b16 %v773
  %v876 = vunpack.c.l.b16 %v774
  %v877 = vunpack.c.h.b16 %v774
  %v878 = vpack.c.b16 %v818, %v814
  %v879 = vpack.c.b16 %v819, %v815
  %v880 = vpack.c.b16 %v820, %v816
  %v881 = vpack.c.b16 %v821, %v817
  %v882 = vpack.c.b16 %v826, %v822
  %v883 = vpack.c.b16 %v827, %v823
  %v884 = vpack.c.b16 %v828, %v824
  %v885 = vpack.c.b16 %v829, %v825
  %v886 = vpack.c.b16 %v834, %v830
  %v887 = vpack.c.b16 %v835, %v831
  %v888 = vpack.c.b16 %v836, %v832
  %v889 = vpack.c.b16 %v837, %v833
  %v890 = vpack.c.b16 %v842, %v838
  %v891 = vpack.c.b16 %v843, %v839
  %v892 = vpack.c.b16 %v844, %v840
  %v893 = vpack.c.b16 %v845, %v841
  %v894 = vpack.c.b16 %v850, %v846
  %v895 = vpack.c.b16 %v851, %v847
  %v896 = vpack.c.b16 %v852, %v848
  %v897 = vpack.c.b16 %v853, %v849
  %v898 = vpack.c.b16 %v858, %v854
  %v899 = vpack.c.b16 %v859, %v855
  %v900 = vpack.c.b16 %v860, %v856
  %v901 = vpack.c.b16 %v861, %v857
  %v902 = vpack.c.b16 %v866, %v862
  %v903 = vpack.c.b16 %v867, %v863
  %v904 = vpack.c.b16 %v868, %v864
  %v905 = vpack.c.b16 %v869, %v865
  %v906 = vpack.c.b16 %v874, %v870
  %v907 = vpack.c.b16 %v875, %v871
  %v908 = vpack.c.b16 %v876, %v872
  %v909 = vpack.c.b16 %v877, %v873
  %942 = vmatprep.subr.bf16.mxu0 %v907
  %943 = vmatpush1.bf16.msra.mxu0 %v906
  %944 = vmatprep.subr.bf16.mxu0 %v903
  %945 = vmatpush1.bf16.msra.mxu0 %v902
  %946 = vmatprep.subr.bf16.mxu0 %v899
  %947 = vmatpush1.bf16.msra.mxu0 %v898
  %948 = vmatprep.subr.bf16.mxu0 %v895
  %949 = vmatpush1.bf16.msra.mxu0 %v894
  %950 = vmatprep.subr.bf16.mxu0 %v891
  %951 = vmatpush1.bf16.msra.mxu0 %v890
  %952 = vmatprep.subr.bf16.mxu0 %v887
  %953 = vmatpush1.bf16.msra.mxu0 %v886
  %954 = vmatprep.subr.bf16.mxu0 %v883
  %955 = vmatpush1.bf16.msra.mxu0 %v882
  %956 = vmatprep.subr.bf16.mxu0 %v879
  %957 = vmatpush1.bf16.msra.mxu0 %v878
  %958 = vmatprep.subr.bf16.mxu0 0
  %959 = vmatpush2.bf16.msra.mxu0 0
  %960 = vmatprep.subr.bf16.mxu0 0
  %961 = vmatpush2.bf16.msra.mxu0 0
  %962 = vmatprep.subr.bf16.mxu0 0
  %963 = vmatpush2.bf16.msra.mxu0 0
  %964 = vmatprep.subr.bf16.mxu0 0
  %965 = vmatpush2.bf16.msra.mxu0 0
  %966 = vmatprep.subr.bf16.mxu0 0
  %967 = vmatpush2.bf16.msra.mxu0 0
  %968 = vmatprep.subr.bf16.mxu0 0
  %969 = vmatpush2.bf16.msra.mxu0 0
  %970 = vmatprep.subr.bf16.mxu0 0
  %971 = vmatpush2.bf16.msra.mxu0 0
  %972 = vmatprep.subr.bf16.mxu0 0
  %973 = vmatpush2.bf16.msra.mxu0 0
  %974 = vmatprep.mubr.bf16.mxu0 0
  %975 = vmatmul.mubr.bf16.gmra.mxu0 %v740
  %v976 = vpop.f32.mrf.mxu0
  %v977 = vadd.f32 %v778, %v976
  %v978 = vpop.f32.mrf.mxu0
  %v979 = vadd.f32 %v779, %v978
  %v980 = vpop.f32.mrf.mxu0
  %v981 = vpop.f32.mrf.mxu0
  %982 = vdwg.mxu0
  %983 = vmatprep.subr.bf16.mxu0 %v909
  %984 = vmatpush1.bf16.msra.mxu0 %v908
  %985 = vmatprep.subr.bf16.mxu0 %v905
  %986 = vmatpush1.bf16.msra.mxu0 %v904
  %987 = vmatprep.subr.bf16.mxu0 %v901
  %988 = vmatpush1.bf16.msra.mxu0 %v900
  %989 = vmatprep.subr.bf16.mxu0 %v897
  %990 = vmatpush1.bf16.msra.mxu0 %v896
  %991 = vmatprep.subr.bf16.mxu0 %v893
  %992 = vmatpush1.bf16.msra.mxu0 %v892
  %993 = vmatprep.subr.bf16.mxu0 %v889
  %994 = vmatpush1.bf16.msra.mxu0 %v888
  %995 = vmatprep.subr.bf16.mxu0 %v885
  %996 = vmatpush1.bf16.msra.mxu0 %v884
  %997 = vmatprep.subr.bf16.mxu0 %v881
  %998 = vmatpush1.bf16.msra.mxu0 %v880
  %999 = vmatprep.subr.bf16.mxu0 0
  %1000 = vmatpush2.bf16.msra.mxu0 0
  %1001 = vmatprep.subr.bf16.mxu0 0
  %1002 = vmatpush2.bf16.msra.mxu0 0
  %1003 = vmatprep.subr.bf16.mxu0 0
  %1004 = vmatpush2.bf16.msra.mxu0 0
  %1005 = vmatprep.subr.bf16.mxu0 0
  %1006 = vmatpush2.bf16.msra.mxu0 0
  %1007 = vmatprep.subr.bf16.mxu0 0
  %1008 = vmatpush2.bf16.msra.mxu0 0
  %1009 = vmatprep.subr.bf16.mxu0 0
  %1010 = vmatpush2.bf16.msra.mxu0 0
  %1011 = vmatprep.subr.bf16.mxu0 0
  %1012 = vmatpush2.bf16.msra.mxu0 0
  %1013 = vmatprep.subr.bf16.mxu0 0
  %1014 = vmatpush2.bf16.msra.mxu0 0
  %1015 = vmatprep.mubr.bf16.mxu0 0
  %1016 = vmatmul.mubr.bf16.gmra.mxu0 %v740
  %v1017 = vpop.f32.mrf.mxu0
  %v1018 = vadd.f32 %v780, %v1017
  %v1019 = vpop.f32.mrf.mxu0
  %v1020 = vadd.f32 %v781, %v1019
  %v1021 = vpop.f32.mrf.mxu0
  %v1022 = vpop.f32.mrf.mxu0
  %1023 = vdwg.mxu0
  %v1024 = vxor.u32 %v977, 2147483648
  %v1025 = vmul.f32 %v1024, 1.442695
  %v1026 = vpow.pop %v1025
  %v1027 = vadd.f32 %v1026, 1.0
  %v1028 = vrcp.pop %v1027
  %v1029 = vmul.f32 1.0, %v1028
  %v1030 = vxor.u32 %v979, 2147483648
  %v1031 = vmul.f32 %v1030, 1.442695
  %v1032 = vpow.pop %v1031
  %v1033 = vadd.f32 %v1032, 1.0
  %v1034 = vrcp.pop %v1033
  %v1035 = vmul.f32 1.0, %v1034
  %v1036 = vtanh.pop %v1018
  %v1037 = vxor.u32 %v1020, 2147483648
  %v1038 = vmul.f32 %v1037, 1.442695
  %v1039 = vpow.pop %v1038
  %v1040 = vadd.f32 %v1039, 1.0
  %v1041 = vrcp.pop %v1040
  %v1042 = vmul.f32 1.0, %v1041
  %v1043 = vmul.f32 %v1035, %v737
  %v1044 = vmul.f32 %v1029, %v1036
  %v1045 = vadd.f32 %v1043, %v1044
  %v1046 = vtanh.pop %v1045
  %v1047 = vmul.f32 %v1042, %v1046
  %v1048 = vpack.c.bf16 %v1047, %v1047
  %s1049 = scalar_lea.vmem %s2, 8
  %1050 = vst [vmem:[%s1049] sm:$0xf] %v1048
  %v1051 = vld [vmem:[#allocation4] sm:$0xff]
  %v1052 = vld [vmem:[#allocation4 + $0x8] sm:$0xff]
  %v1053 = vld [vmem:[#allocation4 + $0x10] sm:$0xff]
  %v1054 = vld [vmem:[#allocation4 + $0x18] sm:$0xff]
  %v1055 = vld [vmem:[#allocation4 + $0x20] sm:$0xff]
  %v1056 = vld [vmem:[#allocation4 + $0x28] sm:$0xff]
  %v1057 = vld [vmem:[#allocation4 + $0x30] sm:$0xff]
  %v1058 = vld [vmem:[#allocation4 + $0x38] sm:$0xff]
  %v1059 = vld [vmem:[#allocation4 + $0x40] sm:$0xff]
  %v1060 = vld [vmem:[#allocation4 + $0x48] sm:$0xff]
  %v1061 = vld [vmem:[#allocation4 + $0x50] sm:$0xff]
  %v1062 = vld [vmem:[#allocation4 + $0x58] sm:$0xff]
  %v1063 = vld [vmem:[#allocation4 + $0x60] sm:$0xff]
  %v1064 = vld [vmem:[#allocation4 + $0x68] sm:$0xff]
  %v1065 = vld [vmem:[#allocation4 + $0x70] sm:$0xff]
  %v1066 = vld [vmem:[#allocation4 + $0x78] sm:$0xff]
  %v1067 = vld [vmem:[#allocation4 + $0x80] sm:$0xff]
  %v1068 = vld [vmem:[#allocation4 + $0x88] sm:$0xff]
  %v1069 = vld [vmem:[#allocation4 + $0x90] sm:$0xff]
  %v1070 = vld [vmem:[#allocation4 + $0x98] sm:$0xff]
  %v1071 = vld [vmem:[#allocation4 + $0xa0] sm:$0xff]
  %v1072 = vld [vmem:[#allocation4 + $0xa8] sm:$0xff]
  %v1073 = vld [vmem:[#allocation4 + $0xb0] sm:$0xff]
  %v1074 = vld [vmem:[#allocation4 + $0xb8] sm:$0xff]
  %v1075 = vld [vmem:[#allocation4 + $0xc0] sm:$0xff]
  %v1076 = vld [vmem:[#allocation4 + $0xc8] sm:$0xff]
  %v1077 = vld [vmem:[#allocation4 + $0xd0] sm:$0xff]
  %v1078 = vld [vmem:[#allocation4 + $0xd8] sm:$0xff]
  %v1079 = vld [vmem:[#allocation4 + $0xe0] sm:$0xff]
  %v1080 = vld [vmem:[#allocation4 + $0xe8] sm:$0xff]
  %v1081 = vld [vmem:[#allocation4 + $0xf0] sm:$0xff]
  %v1082 = vld [vmem:[#allocation4 + $0xf8] sm:$0xff]
  %s1083 = scalar_lea.vmem %s0, 48
  %v1084 = vld [vmem:[%s1083] sm:$0xff]
  %v1085 = vld [vmem:[%s1083 + $0x8] sm:$0xff]
  %v1086 = vunpack.c.l.bf16 %v1084
  %v1087 = vunpack.c.h.bf16 %v1084
  %v1088 = vunpack.c.l.bf16 %v1085
  %v1089 = vunpack.c.h.bf16 %v1085
  %v1122 = vunpack.c.l.b16 %v1051
  %v1123 = vunpack.c.h.b16 %v1051
  %v1124 = vunpack.c.l.b16 %v1052
  %v1125 = vunpack.c.h.b16 %v1052
  %v1126 = vunpack.c.l.b16 %v1053
  %v1127 = vunpack.c.h.b16 %v1053
  %v1128 = vunpack.c.l.b16 %v1054
  %v1129 = vunpack.c.h.b16 %v1054
  %v1130 = vunpack.c.l.b16 %v1055
  %v1131 = vunpack.c.h.b16 %v1055
  %v1132 = vunpack.c.l.b16 %v1056
  %v1133 = vunpack.c.h.b16 %v1056
  %v1134 = vunpack.c.l.b16 %v1057
  %v1135 = vunpack.c.h.b16 %v1057
  %v1136 = vunpack.c.l.b16 %v1058
  %v1137 = vunpack.c.h.b16 %v1058
  %v1138 = vunpack.c.l.b16 %v1059
  %v1139 = vunpack.c.h.b16 %v1059
  %v1140 = vunpack.c.l.b16 %v1060
  %v1141 = vunpack.c.h.b16 %v1060
  %v1142 = vunpack.c.l.b16 %v1061
  %v1143 = vunpack.c.h.b16 %v1061
  %v1144 = vunpack.c.l.b16 %v1062
  %v1145 = vunpack.c.h.b16 %v1062
  %v1146 = vunpack.c.l.b16 %v1063
  %v1147 = vunpack.c.h.b16 %v1063
  %v1148 = vunpack.c.l.b16 %v1064
  %v1149 = vunpack.c.h.b16 %v1064
  %v1150 = vunpack.c.l.b16 %v1065
  %v1151 = vunpack.c.h.b16 %v1065
  %v1152 = vunpack.c.l.b16 %v1066
  %v1153 = vunpack.c.h.b16 %v1066
  %v1154 = vunpack.c.l.b16 %v1067
  %v1155 = vunpack.c.h.b16 %v1067
  %v1156 = vunpack.c.l.b16 %v1068
  %v1157 = vunpack.c.h.b16 %v1068
  %v1158 = vunpack.c.l.b16 %v1069
  %v1159 = vunpack.c.h.b16 %v1069
  %v1160 = vunpack.c.l.b16 %v1070
  %v1161 = vunpack.c.h.b16 %v1070
  %v1162 = vunpack.c.l.b16 %v1071
  %v1163 = vunpack.c.h.b16 %v1071
  %v1164 = vunpack.c.l.b16 %v1072
  %v1165 = vunpack.c.h.b16 %v1072
  %v1166 = vunpack.c.l.b16 %v1073
  %v1167 = vunpack.c.h.b16 %v1073
  %v1168 = vunpack.c.l.b16 %v1074
  %v1169 = vunpack.c.h.b16 %v1074
  %v1170 = vunpack.c.l.b16 %v1075
  %v1171 = vunpack.c.h.b16 %v1075
  %v1172 = vunpack.c.l.b16 %v1076
  %v1173 = vunpack.c.h.b16 %v1076
  %v1174 = vunpack.c.l.b16 %v1077
  %v1175 = vunpack.c.h.b16 %v1077
  %v1176 = vunpack.c.l.b16 %v1078
  %v1177 = vunpack.c.h.b16 %v1078
  %v1178 = vunpack.c.l.b16 %v1079
  %v1179 = vunpack.c.h.b16 %v1079
  %v1180 = vunpack.c.l.b16 %v1080
  %v1181 = vunpack.c.h.b16 %v1080
  %v1182 = vunpack.c.l.b16 %v1081
  %v1183 = vunpack.c.h.b16 %v1081
  %v1184 = vunpack.c.l.b16 %v1082
  %v1185 = vunpack.c.h.b16 %v1082
  %v1186 = vpack.c.b16 %v1126, %v1122
  %v1187 = vpack.c.b16 %v1127, %v1123
  %v1188 = vpack.c.b16 %v1128, %v1124
  %v1189 = vpack.c.b16 %v1129, %v1125
  %v1190 = vpack.c.b16 %v1134, %v1130
  %v1191 = vpack.c.b16 %v1135, %v1131
  %v1192 = vpack.c.b16 %v1136, %v1132
  %v1193 = vpack.c.b16 %v1137, %v1133
  %v1194 = vpack.c.b16 %v1142, %v1138
  %v1195 = vpack.c.b16 %v1143, %v1139
  %v1196 = vpack.c.b16 %v1144, %v1140
  %v1197 = vpack.c.b16 %v1145, %v1141
  %v1198 = vpack.c.b16 %v1150, %v1146
  %v1199 = vpack.c.b16 %v1151, %v1147
  %v1200 = vpack.c.b16 %v1152, %v1148
  %v1201 = vpack.c.b16 %v1153, %v1149
  %v1202 = vpack.c.b16 %v1158, %v1154
  %v1203 = vpack.c.b16 %v1159, %v1155
  %v1204 = vpack.c.b16 %v1160, %v1156
  %v1205 = vpack.c.b16 %v1161, %v1157
  %v1206 = vpack.c.b16 %v1166, %v1162
  %v1207 = vpack.c.b16 %v1167, %v1163
  %v1208 = vpack.c.b16 %v1168, %v1164
  %v1209 = vpack.c.b16 %v1169, %v1165
  %v1210 = vpack.c.b16 %v1174, %v1170
  %v1211 = vpack.c.b16 %v1175, %v1171
  %v1212 = vpack.c.b16 %v1176, %v1172
  %v1213 = vpack.c.b16 %v1177, %v1173
  %v1214 = vpack.c.b16 %v1182, %v1178
  %v1215 = vpack.c.b16 %v1183, %v1179
  %v1216 = vpack.c.b16 %v1184, %v1180
  %v1217 = vpack.c.b16 %v1185, %v1181
  %1250 = vmatprep.subr.bf16.mxu0 %v1215
  %1251 = vmatpush1.bf16.msra.mxu0 %v1214
  %1252 = vmatprep.subr.bf16.mxu0 %v1211
  %1253 = vmatpush1.bf16.msra.mxu0 %v1210
  %1254 = vmatprep.subr.bf16.mxu0 %v1207
  %1255 = vmatpush1.bf16.msra.mxu0 %v1206
  %1256 = vmatprep.subr.bf16.mxu0 %v1203
  %1257 = vmatpush1.bf16.msra.mxu0 %v1202
  %1258 = vmatprep.subr.bf16.mxu0 %v1199
  %1259 = vmatpush1.bf16.msra.mxu0 %v1198
  %1260 = vmatprep.subr.bf16.mxu0 %v1195
  %1261 = vmatpush1.bf16.msra.mxu0 %v1194
  %1262 = vmatprep.subr.bf16.mxu0 %v1191
  %1263 = vmatpush1.bf16.msra.mxu0 %v1190
  %1264 = vmatprep.subr.bf16.mxu0 %v1187
  %1265 = vmatpush1.bf16.msra.mxu0 %v1186
  %1266 = vmatprep.subr.bf16.mxu0 0
  %1267 = vmatpush2.bf16.msra.mxu0 0
  %1268 = vmatprep.subr.bf16.mxu0 0
  %1269 = vmatpush2.bf16.msra.mxu0 0
  %1270 = vmatprep.subr.bf16.mxu0 0
  %1271 = vmatpush2.bf16.msra.mxu0 0
  %1272 = vmatprep.subr.bf16.mxu0 0
  %1273 = vmatpush2.bf16.msra.mxu0 0
  %1274 = vmatprep.subr.bf16.mxu0 0
  %1275 = vmatpush2.bf16.msra.mxu0 0
  %1276 = vmatprep.subr.bf16.mxu0 0
  %1277 = vmatpush2.bf16.msra.mxu0 0
  %1278 = vmatprep.subr.bf16.mxu0 0
  %1279 = vmatpush2.bf16.msra.mxu0 0
  %1280 = vmatprep.subr.bf16.mxu0 0
  %1281 = vmatpush2.bf16.msra.mxu0 0
  %1282 = vmatprep.mubr.bf16.mxu0 0
  %1283 = vmatmul.mubr.bf16.gmra.mxu0 %v1048
  %v1284 = vpop.f32.mrf.mxu0
  %v1285 = vadd.f32 %v1086, %v1284
  %v1286 = vpop.f32.mrf.mxu0
  %v1287 = vadd.f32 %v1087, %v1286
  %v1288 = vpop.f32.mrf.mxu0
  %v1289 = vpop.f32.mrf.mxu0
  %1290 = vdwg.mxu0
  %1291 = vmatprep.subr.bf16.mxu0 %v1217
  %1292 = vmatpush1.bf16.msra.mxu0 %v1216
  %1293 = vmatprep.subr.bf16.mxu0 %v1213
  %1294 = vmatpush1.bf16.msra.mxu0 %v1212
  %1295 = vmatprep.subr.bf16.mxu0 %v1209
  %1296 = vmatpush1.bf16.msra.mxu0 %v1208
  %1297 = vmatprep.subr.bf16.mxu0 %v1205
  %1298 = vmatpush1.bf16.msra.mxu0 %v1204
  %1299 = vmatprep.subr.bf16.mxu0 %v1201
  %1300 = vmatpush1.bf16.msra.mxu0 %v1200
  %1301 = vmatprep.subr.bf16.mxu0 %v1197
  %1302 = vmatpush1.bf16.msra.mxu0 %v1196
  %1303 = vmatprep.subr.bf16.mxu0 %v1193
  %1304 = vmatpush1.bf16.msra.mxu0 %v1192
  %1305 = vmatprep.subr.bf16.mxu0 %v1189
  %1306 = vmatpush1.bf16.msra.mxu0 %v1188
  %1307 = vmatprep.subr.bf16.mxu0 0
  %1308 = vmatpush2.bf16.msra.mxu0 0
  %1309 = vmatprep.subr.bf16.mxu0 0
  %1310 = vmatpush2.bf16.msra.mxu0 0
  %1311 = vmatprep.subr.bf16.mxu0 0
  %1312 = vmatpush2.bf16.msra.mxu0 0
  %1313 = vmatprep.subr.bf16.mxu0 0
  %1314 = vmatpush2.bf16.msra.mxu0 0
  %1315 = vmatprep.subr.bf16.mxu0 0
  %1316 = vmatpush2.bf16.msra.mxu0 0
  %1317 = vmatprep.subr.bf16.mxu0 0
  %1318 = vmatpush2.bf16.msra.mxu0 0
  %1319 = vmatprep.subr.bf16.mxu0 0
  %1320 = vmatpush2.bf16.msra.mxu0 0
  %1321 = vmatprep.subr.bf16.mxu0 0
  %1322 = vmatpush2.bf16.msra.mxu0 0
  %1323 = vmatprep.mubr.bf16.mxu0 0
  %1324 = vmatmul.mubr.bf16.gmra.mxu0 %v1048
  %v1325 = vpop.f32.mrf.mxu0
  %v1326 = vadd.f32 %v1088, %v1325
  %v1327 = vpop.f32.mrf.mxu0
  %v1328 = vadd.f32 %v1089, %v1327
  %v1329 = vpop.f32.mrf.mxu0
  %v1330 = vpop.f32.mrf.mxu0
  %1331 = vdwg.mxu0
  %v1332 = vxor.u32 %v1285, 2147483648
  %v1333 = vmul.f32 %v1332, 1.442695
  %v1334 = vpow.pop %v1333
  %v1335 = vadd.f32 %v1334, 1.0
  %v1336 = vrcp.pop %v1335
  %v1337 = vmul.f32 1.0, %v1336
  %v1338 = vxor.u32 %v1287, 2147483648
  %v1339 = vmul.f32 %v1338, 1.442695
  %v1340 = vpow.pop %v1339
  %v1341 = vadd.f32 %v1340, 1.0
  %v1342 = vrcp.pop %v1341
  %v1343 = vmul.f32 1.0, %v1342
  %v1344 = vtanh.pop %v1326
  %v1345 = vxor.u32 %v1328, 2147483648
  %v1346 = vmul.f32 %v1345, 1.442695
  %v1347 = vpow.pop %v1346
  %v1348 = vadd.f32 %v1347, 1.0
  %v1349 = vrcp.pop %v1348
  %v1350 = vmul.f32 1.0, %v1349
  %v1351 = vmul.f32 %v1343, %v1045
  %v1352 = vmul.f32 %v1337, %v1344
  %v1353 = vadd.f32 %v1351, %v1352
  %v1354 = vtanh.pop %v1353
  %v1355 = vmul.f32 %v1350, %v1354
  %v1356 = vpack.c.bf16 %v1355, %v1355
  %s1357 = scalar_lea.vmem %s2, 12
  %1358 = vst [vmem:[%s1357] sm:$0xf] %v1356
  %v1359 = vld [vmem:[#allocation4] sm:$0xff]
  %v1360 = vld [vmem:[#allocation4 + $0x8] sm:$0xff]
  %v1361 = vld [vmem:[#allocation4 + $0x10] sm:$0xff]
  %v1362 = vld [vmem:[#allocation4 + $0x18] sm:$0xff]
  %v1363 = vld [vmem:[#allocation4 + $0x20] sm:$0xff]
  %v1364 = vld [vmem:[#allocation4 + $0x28] sm:$0xff]
  %v1365 = vld [vmem:[#allocation4 + $0x30] sm:$0xff]
  %v1366 = vld [vmem:[#allocation4 + $0x38] sm:$0xff]
  %v1367 = vld [vmem:[#allocation4 + $0x40] sm:$0xff]
  %v1368 = vld [vmem:[#allocation4 + $0x48] sm:$0xff]
  %v1369 = vld [vmem:[#allocation4 + $0x50] sm:$0xff]
  %v1370 = vld [vmem:[#allocation4 + $0x58] sm:$0xff]
  %v1371 = vld [vmem:[#allocation4 + $0x60] sm:$0xff]
  %v1372 = vld [vmem:[#allocation4 + $0x68] sm:$0xff]
  %v1373 = vld [vmem:[#allocation4 + $0x70] sm:$0xff]
  %v1374 = vld [vmem:[#allocation4 + $0x78] sm:$0xff]
  %v1375 = vld [vmem:[#allocation4 + $0x80] sm:$0xff]
  %v1376 = vld [vmem:[#allocation4 + $0x88] sm:$0xff]
  %v1377 = vld [vmem:[#allocation4 + $0x90] sm:$0xff]
  %v1378 = vld [vmem:[#allocation4 + $0x98] sm:$0xff]
  %v1379 = vld [vmem:[#allocation4 + $0xa0] sm:$0xff]
  %v1380 = vld [vmem:[#allocation4 + $0xa8] sm:$0xff]
  %v1381 = vld [vmem:[#allocation4 + $0xb0] sm:$0xff]
  %v1382 = vld [vmem:[#allocation4 + $0xb8] sm:$0xff]
  %v1383 = vld [vmem:[#allocation4 + $0xc0] sm:$0xff]
  %v1384 = vld [vmem:[#allocation4 + $0xc8] sm:$0xff]
  %v1385 = vld [vmem:[#allocation4 + $0xd0] sm:$0xff]
  %v1386 = vld [vmem:[#allocation4 + $0xd8] sm:$0xff]
  %v1387 = vld [vmem:[#allocation4 + $0xe0] sm:$0xff]
  %v1388 = vld [vmem:[#allocation4 + $0xe8] sm:$0xff]
  %v1389 = vld [vmem:[#allocation4 + $0xf0] sm:$0xff]
  %v1390 = vld [vmem:[#allocation4 + $0xf8] sm:$0xff]
  %s1391 = scalar_lea.vmem %s0, 64
  %v1392 = vld [vmem:[%s1391] sm:$0xff]
  %v1393 = vld [vmem:[%s1391 + $0x8] sm:$0xff]
  %v1394 = vunpack.c.l.bf16 %v1392
  %v1395 = vunpack.c.h.bf16 %v1392
  %v1396 = vunpack.c.l.bf16 %v1393
  %v1397 = vunpack.c.h.bf16 %v1393
  %v1430 = vunpack.c.l.b16 %v1359
  %v1431 = vunpack.c.h.b16 %v1359
  %v1432 = vunpack.c.l.b16 %v1360
  %v1433 = vunpack.c.h.b16 %v1360
  %v1434 = vunpack.c.l.b16 %v1361
  %v1435 = vunpack.c.h.b16 %v1361
  %v1436 = vunpack.c.l.b16 %v1362
  %v1437 = vunpack.c.h.b16 %v1362
  %v1438 = vunpack.c.l.b16 %v1363
  %v1439 = vunpack.c.h.b16 %v1363
  %v1440 = vunpack.c.l.b16 %v1364
  %v1441 = vunpack.c.h.b16 %v1364
  %v1442 = vunpack.c.l.b16 %v1365
  %v1443 = vunpack.c.h.b16 %v1365
  %v1444 = vunpack.c.l.b16 %v1366
  %v1445 = vunpack.c.h.b16 %v1366
  %v1446 = vunpack.c.l.b16 %v1367
  %v1447 = vunpack.c.h.b16 %v1367
  %v1448 = vunpack.c.l.b16 %v1368
  %v1449 = vunpack.c.h.b16 %v1368
  %v1450 = vunpack.c.l.b16 %v1369
  %v1451 = vunpack.c.h.b16 %v1369
  %v1452 = vunpack.c.l.b16 %v1370
  %v1453 = vunpack.c.h.b16 %v1370
  %v1454 = vunpack.c.l.b16 %v1371
  %v1455 = vunpack.c.h.b16 %v1371
  %v1456 = vunpack.c.l.b16 %v1372
  %v1457 = vunpack.c.h.b16 %v1372
  %v1458 = vunpack.c.l.b16 %v1373
  %v1459 = vunpack.c.h.b16 %v1373
  %v1460 = vunpack.c.l.b16 %v1374
  %v1461 = vunpack.c.h.b16 %v1374
  %v1462 = vunpack.c.l.b16 %v1375
  %v1463 = vunpack.c.h.b16 %v1375
  %v1464 = vunpack.c.l.b16 %v1376
  %v1465 = vunpack.c.h.b16 %v1376
  %v1466 = vunpack.c.l.b16 %v1377
  %v1467 = vunpack.c.h.b16 %v1377
  %v1468 = vunpack.c.l.b16 %v1378
  %v1469 = vunpack.c.h.b16 %v1378
  %v1470 = vunpack.c.l.b16 %v1379
  %v1471 = vunpack.c.h.b16 %v1379
  %v1472 = vunpack.c.l.b16 %v1380
  %v1473 = vunpack.c.h.b16 %v1380
  %v1474 = vunpack.c.l.b16 %v1381
  %v1475 = vunpack.c.h.b16 %v1381
  %v1476 = vunpack.c.l.b16 %v1382
  %v1477 = vunpack.c.h.b16 %v1382
  %v1478 = vunpack.c.l.b16 %v1383
  %v1479 = vunpack.c.h.b16 %v1383
  %v1480 = vunpack.c.l.b16 %v1384
  %v1481 = vunpack.c.h.b16 %v1384
  %v1482 = vunpack.c.l.b16 %v1385
  %v1483 = vunpack.c.h.b16 %v1385
  %v1484 = vunpack.c.l.b16 %v1386
  %v1485 = vunpack.c.h.b16 %v1386
  %v1486 = vunpack.c.l.b16 %v1387
  %v1487 = vunpack.c.h.b16 %v1387
  %v1488 = vunpack.c.l.b16 %v1388
  %v1489 = vunpack.c.h.b16 %v1388
  %v1490 = vunpack.c.l.b16 %v1389
  %v1491 = vunpack.c.h.b16 %v1389
  %v1492 = vunpack.c.l.b16 %v1390
  %v1493 = vunpack.c.h.b16 %v1390
  %v1494 = vpack.c.b16 %v1434, %v1430
  %v1495 = vpack.c.b16 %v1435, %v1431
  %v1496 = vpack.c.b16 %v1436, %v1432
  %v1497 = vpack.c.b16 %v1437, %v1433
  %v1498 = vpack.c.b16 %v1442, %v1438
  %v1499 = vpack.c.b16 %v1443, %v1439
  %v1500 = vpack.c.b16 %v1444, %v1440
  %v1501 = vpack.c.b16 %v1445, %v1441
  %v1502 = vpack.c.b16 %v1450, %v1446
  %v1503 = vpack.c.b16 %v1451, %v1447
  %v1504 = vpack.c.b16 %v1452, %v1448
  %v1505 = vpack.c.b16 %v1453, %v1449
  %v1506 = vpack.c.b16 %v1458, %v1454
  %v1507 = vpack.c.b16 %v1459, %v1455
  %v1508 = vpack.c.b16 %v1460, %v1456
  %v1509 = vpack.c.b16 %v1461, %v1457
  %v1510 = vpack.c.b16 %v1466, %v1462
  %v1511 = vpack.c.b16 %v1467, %v1463
  %v1512 = vpack.c.b16 %v1468, %v1464
  %v1513 = vpack.c.b16 %v1469, %v1465
  %v1514 = vpack.c.b16 %v1474, %v1470
  %v1515 = vpack.c.b16 %v1475, %v1471
  %v1516 = vpack.c.b16 %v1476, %v1472
  %v1517 = vpack.c.b16 %v1477, %v1473
  %v1518 = vpack.c.b16 %v1482, %v1478
  %v1519 = vpack.c.b16 %v1483, %v1479
  %v1520 = vpack.c.b16 %v1484, %v1480
  %v1521 = vpack.c.b16 %v1485, %v1481
  %v1522 = vpack.c.b16 %v1490, %v1486
  %v1523 = vpack.c.b16 %v1491, %v1487
  %v1524 = vpack.c.b16 %v1492, %v1488
  %v1525 = vpack.c.b16 %v1493, %v1489
  %1558 = vmatprep.subr.bf16.mxu0 %v1523
  %1559 = vmatpush1.bf16.msra.mxu0 %v1522
  %1560 = vmatprep.subr.bf16.mxu0 %v1519
  %1561 = vmatpush1.bf16.msra.mxu0 %v1518
  %1562 = vmatprep.subr.bf16.mxu0 %v1515
  %1563 = vmatpush1.bf16.msra.mxu0 %v1514
  %1564 = vmatprep.subr.bf16.mxu0 %v1511
  %1565 = vmatpush1.bf16.msra.mxu0 %v1510
  %1566 = vmatprep.subr.bf16.mxu0 %v1507
  %1567 = vmatpush1.bf16.msra.mxu0 %v1506
  %1568 = vmatprep.subr.bf16.mxu0 %v1503
  %1569 = vmatpush1.bf16.msra.mxu0 %v1502
  %1570 = vmatprep.subr.bf16.mxu0 %v1499
  %1571 = vmatpush1.bf16.msra.mxu0 %v1498
  %1572 = vmatprep.subr.bf16.mxu0 %v1495
  %1573 = vmatpush1.bf16.msra.mxu0 %v1494
  %1574 = vmatprep.subr.bf16.mxu0 0
  %1575 = vmatpush2.bf16.msra.mxu0 0
  %1576 = vmatprep.subr.bf16.mxu0 0
  %1577 = vmatpush2.bf16.msra.mxu0 0
  %1578 = vmatprep.subr.bf16.mxu0 0
  %1579 = vmatpush2.bf16.msra.mxu0 0
  %1580 = vmatprep.subr.bf16.mxu0 0
  %1581 = vmatpush2.bf16.msra.mxu0 0
  %1582 = vmatprep.subr.bf16.mxu0 0
  %1583 = vmatpush2.bf16.msra.mxu0 0
  %1584 = vmatprep.subr.bf16.mxu0 0
  %1585 = vmatpush2.bf16.msra.mxu0 0
  %1586 = vmatprep.subr.bf16.mxu0 0
  %1587 = vmatpush2.bf16.msra.mxu0 0
  %1588 = vmatprep.subr.bf16.mxu0 0
  %1589 = vmatpush2.bf16.msra.mxu0 0
  %1590 = vmatprep.mubr.bf16.mxu0 0
  %1591 = vmatmul.mubr.bf16.gmra.mxu0 %v1356
  %v1592 = vpop.f32.mrf.mxu0
  %v1593 = vadd.f32 %v1394, %v1592
  %v1594 = vpop.f32.mrf.mxu0
  %v1595 = vadd.f32 %v1395, %v1594
  %v1596 = vpop.f32.mrf.mxu0
  %v1597 = vpop.f32.mrf.mxu0
  %1598 = vdwg.mxu0
  %1599 = vmatprep.subr.bf16.mxu0 %v1525
  %1600 = vmatpush1.bf16.msra.mxu0 %v1524
  %1601 = vmatprep.subr.bf16.mxu0 %v1521
  %1602 = vmatpush1.bf16.msra.mxu0 %v1520
  %1603 = vmatprep.subr.bf16.mxu0 %v1517
  %1604 = vmatpush1.bf16.msra.mxu0 %v1516
  %1605 = vmatprep.subr.bf16.mxu0 %v1513
  %1606 = vmatpush1.bf16.msra.mxu0 %v1512
  %1607 = vmatprep.subr.bf16.mxu0 %v1509
  %1608 = vmatpush1.bf16.msra.mxu0 %v1508
  %1609 = vmatprep.subr.bf16.mxu0 %v1505
  %1610 = vmatpush1.bf16.msra.mxu0 %v1504
  %1611 = vmatprep.subr.bf16.mxu0 %v1501
  %1612 = vmatpush1.bf16.msra.mxu0 %v1500
  %1613 = vmatprep.subr.bf16.mxu0 %v1497
  %1614 = vmatpush1.bf16.msra.mxu0 %v1496
  %1615 = vmatprep.subr.bf16.mxu0 0
  %1616 = vmatpush2.bf16.msra.mxu0 0
  %1617 = vmatprep.subr.bf16.mxu0 0
  %1618 = vmatpush2.bf16.msra.mxu0 0
  %1619 = vmatprep.subr.bf16.mxu0 0
  %1620 = vmatpush2.bf16.msra.mxu0 0
  %1621 = vmatprep.subr.bf16.mxu0 0
  %1622 = vmatpush2.bf16.msra.mxu0 0
  %1623 = vmatprep.subr.bf16.mxu0 0
  %1624 = vmatpush2.bf16.msra.mxu0 0
  %1625 = vmatprep.subr.bf16.mxu0 0
  %1626 = vmatpush2.bf16.msra.mxu0 0
  %1627 = vmatprep.subr.bf16.mxu0 0
  %1628 = vmatpush2.bf16.msra.mxu0 0
  %1629 = vmatprep.subr.bf16.mxu0 0
  %1630 = vmatpush2.bf16.msra.mxu0 0
  %1631 = vmatprep.mubr.bf16.mxu0 0
  %1632 = vmatmul.mubr.bf16.gmra.mxu0 %v1356
  %v1633 = vpop.f32.mrf.mxu0
  %v1634 = vadd.f32 %v1396, %v1633
  %v1635 = vpop.f32.mrf.mxu0
  %v1636 = vadd.f32 %v1397, %v1635
  %v1637 = vpop.f32.mrf.mxu0
  %v1638 = vpop.f32.mrf.mxu0
  %1639 = vdwg.mxu0
  %v1640 = vxor.u32 %v1593, 2147483648
  %v1641 = vmul.f32 %v1640, 1.442695
  %v1642 = vpow.pop %v1641
  %v1643 = vadd.f32 %v1642, 1.0
  %v1644 = vrcp.pop %v1643
  %v1645 = vmul.f32 1.0, %v1644
  %v1646 = vxor.u32 %v1595, 2147483648
  %v1647 = vmul.f32 %v1646, 1.442695
  %v1648 = vpow.pop %v1647
  %v1649 = vadd.f32 %v1648, 1.0
  %v1650 = vrcp.pop %v1649
  %v1651 = vmul.f32 1.0, %v1650
  %v1652 = vtanh.pop %v1634
  %v1653 = vxor.u32 %v1636, 2147483648
  %v1654 = vmul.f32 %v1653, 1.442695
  %v1655 = vpow.pop %v1654
  %v1656 = vadd.f32 %v1655, 1.0
  %v1657 = vrcp.pop %v1656
  %v1658 = vmul.f32 1.0, %v1657
  %v1659 = vmul.f32 %v1651, %v1353
  %v1660 = vmul.f32 %v1645, %v1652
  %v1661 = vadd.f32 %v1659, %v1660
  %v1662 = vtanh.pop %v1661
  %v1663 = vmul.f32 %v1658, %v1662
  %v1664 = vpack.c.bf16 %v1663, %v1663
  %s1665 = scalar_lea.vmem %s2, 16
  %1666 = vst [vmem:[%s1665] sm:$0xf] %v1664
  %v1667 = vld [vmem:[#allocation4] sm:$0xff]
  %v1668 = vld [vmem:[#allocation4 + $0x8] sm:$0xff]
  %v1669 = vld [vmem:[#allocation4 + $0x10] sm:$0xff]
  %v1670 = vld [vmem:[#allocation4 + $0x18] sm:$0xff]
  %v1671 = vld [vmem:[#allocation4 + $0x20] sm:$0xff]
  %v1672 = vld [vmem:[#allocation4 + $0x28] sm:$0xff]
  %v1673 = vld [vmem:[#allocation4 + $0x30] sm:$0xff]
  %v1674 = vld [vmem:[#allocation4 + $0x38] sm:$0xff]
  %v1675 = vld [vmem:[#allocation4 + $0x40] sm:$0xff]
  %v1676 = vld [vmem:[#allocation4 + $0x48] sm:$0xff]
  %v1677 = vld [vmem:[#allocation4 + $0x50] sm:$0xff]
  %v1678 = vld [vmem:[#allocation4 + $0x58] sm:$0xff]
  %v1679 = vld [vmem:[#allocation4 + $0x60] sm:$0xff]
  %v1680 = vld [vmem:[#allocation4 + $0x68] sm:$0xff]
  %v1681 = vld [vmem:[#allocation4 + $0x70] sm:$0xff]
  %v1682 = vld [vmem:[#allocation4 + $0x78] sm:$0xff]
  %v1683 = vld [vmem:[#allocation4 + $0x80] sm:$0xff]
  %v1684 = vld [vmem:[#allocation4 + $0x88] sm:$0xff]
  %v1685 = vld [vmem:[#allocation4 + $0x90] sm:$0xff]
  %v1686 = vld [vmem:[#allocation4 + $0x98] sm:$0xff]
  %v1687 = vld [vmem:[#allocation4 + $0xa0] sm:$0xff]
  %v1688 = vld [vmem:[#allocation4 + $0xa8] sm:$0xff]
  %v1689 = vld [vmem:[#allocation4 + $0xb0] sm:$0xff]
  %v1690 = vld [vmem:[#allocation4 + $0xb8] sm:$0xff]
  %v1691 = vld [vmem:[#allocation4 + $0xc0] sm:$0xff]
  %v1692 = vld [vmem:[#allocation4 + $0xc8] sm:$0xff]
  %v1693 = vld [vmem:[#allocation4 + $0xd0] sm:$0xff]
  %v1694 = vld [vmem:[#allocation4 + $0xd8] sm:$0xff]
  %v1695 = vld [vmem:[#allocation4 + $0xe0] sm:$0xff]
  %v1696 = vld [vmem:[#allocation4 + $0xe8] sm:$0xff]
  %v1697 = vld [vmem:[#allocation4 + $0xf0] sm:$0xff]
  %v1698 = vld [vmem:[#allocation4 + $0xf8] sm:$0xff]
  %s1699 = scalar_lea.vmem %s0, 80
  %v1700 = vld [vmem:[%s1699] sm:$0xff]
  %v1701 = vld [vmem:[%s1699 + $0x8] sm:$0xff]
  %v1702 = vunpack.c.l.bf16 %v1700
  %v1703 = vunpack.c.h.bf16 %v1700
  %v1704 = vunpack.c.l.bf16 %v1701
  %v1705 = vunpack.c.h.bf16 %v1701
  %v1738 = vunpack.c.l.b16 %v1667
  %v1739 = vunpack.c.h.b16 %v1667
  %v1740 = vunpack.c.l.b16 %v1668
  %v1741 = vunpack.c.h.b16 %v1668
  %v1742 = vunpack.c.l.b16 %v1669
  %v1743 = vunpack.c.h.b16 %v1669
  %v1744 = vunpack.c.l.b16 %v1670
  %v1745 = vunpack.c.h.b16 %v1670
  %v1746 = vunpack.c.l.b16 %v1671
  %v1747 = vunpack.c.h.b16 %v1671
  %v1748 = vunpack.c.l.b16 %v1672
  %v1749 = vunpack.c.h.b16 %v1672
  %v1750 = vunpack.c.l.b16 %v1673
  %v1751 = vunpack.c.h.b16 %v1673
  %v1752 = vunpack.c.l.b16 %v1674
  %v1753 = vunpack.c.h.b16 %v1674
  %v1754 = vunpack.c.l.b16 %v1675
  %v1755 = vunpack.c.h.b16 %v1675
  %v1756 = vunpack.c.l.b16 %v1676
  %v1757 = vunpack.c.h.b16 %v1676
  %v1758 = vunpack.c.l.b16 %v1677
  %v1759 = vunpack.c.h.b16 %v1677
  %v1760 = vunpack.c.l.b16 %v1678
  %v1761 = vunpack.c.h.b16 %v1678
  %v1762 = vunpack.c.l.b16 %v1679
  %v1763 = vunpack.c.h.b16 %v1679
  %v1764 = vunpack.c.l.b16 %v1680
  %v1765 = vunpack.c.h.b16 %v1680
  %v1766 = vunpack.c.l.b16 %v1681
  %v1767 = vunpack.c.h.b16 %v1681
  %v1768 = vunpack.c.l.b16 %v1682
  %v1769 = vunpack.c.h.b16 %v1682
  %v1770 = vunpack.c.l.b16 %v1683
  %v1771 = vunpack.c.h.b16 %v1683
  %v1772 = vunpack.c.l.b16 %v1684
  %v1773 = vunpack.c.h.b16 %v1684
  %v1774 = vunpack.c.l.b16 %v1685
  %v1775 = vunpack.c.h.b16 %v1685
  %v1776 = vunpack.c.l.b16 %v1686
  %v1777 = vunpack.c.h.b16 %v1686
  %v1778 = vunpack.c.l.b16 %v1687
  %v1779 = vunpack.c.h.b16 %v1687
  %v1780 = vunpack.c.l.b16 %v1688
  %v1781 = vunpack.c.h.b16 %v1688
  %v1782 = vunpack.c.l.b16 %v1689
  %v1783 = vunpack.c.h.b16 %v1689
  %v1784 = vunpack.c.l.b16 %v1690
  %v1785 = vunpack.c.h.b16 %v1690
  %v1786 = vunpack.c.l.b16 %v1691
  %v1787 = vunpack.c.h.b16 %v1691
  %v1788 = vunpack.c.l.b16 %v1692
  %v1789 = vunpack.c.h.b16 %v1692
  %v1790 = vunpack.c.l.b16 %v1693
  %v1791 = vunpack.c.h.b16 %v1693
  %v1792 = vunpack.c.l.b16 %v1694
  %v1793 = vunpack.c.h.b16 %v1694
  %v1794 = vunpack.c.l.b16 %v1695
  %v1795 = vunpack.c.h.b16 %v1695
  %v1796 = vunpack.c.l.b16 %v1696
  %v1797 = vunpack.c.h.b16 %v1696
  %v1798 = vunpack.c.l.b16 %v1697
  %v1799 = vunpack.c.h.b16 %v1697
  %v1800 = vunpack.c.l.b16 %v1698
  %v1801 = vunpack.c.h.b16 %v1698
  %v1802 = vpack.c.b16 %v1742, %v1738
  %v1803 = vpack.c.b16 %v1743, %v1739
  %v1804 = vpack.c.b16 %v1744, %v1740
  %v1805 = vpack.c.b16 %v1745, %v1741
  %v1806 = vpack.c.b16 %v1750, %v1746
  %v1807 = vpack.c.b16 %v1751, %v1747
  %v1808 = vpack.c.b16 %v1752, %v1748
  %v1809 = vpack.c.b16 %v1753, %v1749
  %v1810 = vpack.c.b16 %v1758, %v1754
  %v1811 = vpack.c.b16 %v1759, %v1755
  %v1812 = vpack.c.b16 %v1760, %v1756
  %v1813 = vpack.c.b16 %v1761, %v1757
  %v1814 = vpack.c.b16 %v1766, %v1762
  %v1815 = vpack.c.b16 %v1767, %v1763
  %v1816 = vpack.c.b16 %v1768, %v1764
  %v1817 = vpack.c.b16 %v1769, %v1765
  %v1818 = vpack.c.b16 %v1774, %v1770
  %v1819 = vpack.c.b16 %v1775, %v1771
  %v1820 = vpack.c.b16 %v1776, %v1772
  %v1821 = vpack.c.b16 %v1777, %v1773
  %v1822 = vpack.c.b16 %v1782, %v1778
  %v1823 = vpack.c.b16 %v1783, %v1779
  %v1824 = vpack.c.b16 %v1784, %v1780
  %v1825 = vpack.c.b16 %v1785, %v1781
  %v1826 = vpack.c.b16 %v1790, %v1786
  %v1827 = vpack.c.b16 %v1791, %v1787
  %v1828 = vpack.c.b16 %v1792, %v1788
  %v1829 = vpack.c.b16 %v1793, %v1789
  %v1830 = vpack.c.b16 %v1798, %v1794
  %v1831 = vpack.c.b16 %v1799, %v1795
  %v1832 = vpack.c.b16 %v1800, %v1796
  %v1833 = vpack.c.b16 %v1801, %v1797
  %1866 = vmatprep.subr.bf16.mxu0 %v1831
  %1867 = vmatpush1.bf16.msra.mxu0 %v1830
  %1868 = vmatprep.subr.bf16.mxu0 %v1827
  %1869 = vmatpush1.bf16.msra.mxu0 %v1826
  %1870 = vmatprep.subr.bf16.mxu0 %v1823
  %1871 = vmatpush1.bf16.msra.mxu0 %v1822
  %1872 = vmatprep.subr.bf16.mxu0 %v1819
  %1873 = vmatpush1.bf16.msra.mxu0 %v1818
  %1874 = vmatprep.subr.bf16.mxu0 %v1815
  %1875 = vmatpush1.bf16.msra.mxu0 %v1814
  %1876 = vmatprep.subr.bf16.mxu0 %v1811
  %1877 = vmatpush1.bf16.msra.mxu0 %v1810
  %1878 = vmatprep.subr.bf16.mxu0 %v1807
  %1879 = vmatpush1.bf16.msra.mxu0 %v1806
  %1880 = vmatprep.subr.bf16.mxu0 %v1803
  %1881 = vmatpush1.bf16.msra.mxu0 %v1802
  %1882 = vmatprep.subr.bf16.mxu0 0
  %1883 = vmatpush2.bf16.msra.mxu0 0
  %1884 = vmatprep.subr.bf16.mxu0 0
  %1885 = vmatpush2.bf16.msra.mxu0 0
  %1886 = vmatprep.subr.bf16.mxu0 0
  %1887 = vmatpush2.bf16.msra.mxu0 0
  %1888 = vmatprep.subr.bf16.mxu0 0
  %1889 = vmatpush2.bf16.msra.mxu0 0
  %1890 = vmatprep.subr.bf16.mxu0 0
  %1891 = vmatpush2.bf16.msra.mxu0 0
  %1892 = vmatprep.subr.bf16.mxu0 0
  %1893 = vmatpush2.bf16.msra.mxu0 0
  %1894 = vmatprep.subr.bf16.mxu0 0
  %1895 = vmatpush2.bf16.msra.mxu0 0
  %1896 = vmatprep.subr.bf16.mxu0 0
  %1897 = vmatpush2.bf16.msra.mxu0 0
  %1898 = vmatprep.mubr.bf16.mxu0 0
  %1899 = vmatmul.mubr.bf16.gmra.mxu0 %v1664
  %v1900 = vpop.f32.mrf.mxu0
  %v1901 = vadd.f32 %v1702, %v1900
  %v1902 = vpop.f32.mrf.mxu0
  %v1903 = vadd.f32 %v1703, %v1902
  %v1904 = vpop.f32.mrf.mxu0
  %v1905 = vpop.f32.mrf.mxu0
  %1906 = vdwg.mxu0
  %1907 = vmatprep.subr.bf16.mxu0 %v1833
  %1908 = vmatpush1.bf16.msra.mxu0 %v1832
  %1909 = vmatprep.subr.bf16.mxu0 %v1829
  %1910 = vmatpush1.bf16.msra.mxu0 %v1828
  %1911 = vmatprep.subr.bf16.mxu0 %v1825
  %1912 = vmatpush1.bf16.msra.mxu0 %v1824
  %1913 = vmatprep.subr.bf16.mxu0 %v1821
  %1914 = vmatpush1.bf16.msra.mxu0 %v1820
  %1915 = vmatprep.subr.bf16.mxu0 %v1817
  %1916 = vmatpush1.bf16.msra.mxu0 %v1816
  %1917 = vmatprep.subr.bf16.mxu0 %v1813
  %1918 = vmatpush1.bf16.msra.mxu0 %v1812
  %1919 = vmatprep.subr.bf16.mxu0 %v1809
  %1920 = vmatpush1.bf16.msra.mxu0 %v1808
  %1921 = vmatprep.subr.bf16.mxu0 %v1805
  %1922 = vmatpush1.bf16.msra.mxu0 %v1804
  %1923 = vmatprep.subr.bf16.mxu0 0
  %1924 = vmatpush2.bf16.msra.mxu0 0
  %1925 = vmatprep.subr.bf16.mxu0 0
  %1926 = vmatpush2.bf16.msra.mxu0 0
  %1927 = vmatprep.subr.bf16.mxu0 0
  %1928 = vmatpush2.bf16.msra.mxu0 0
  %1929 = vmatprep.subr.bf16.mxu0 0
  %1930 = vmatpush2.bf16.msra.mxu0 0
  %1931 = vmatprep.subr.bf16.mxu0 0
  %1932 = vmatpush2.bf16.msra.mxu0 0
  %1933 = vmatprep.subr.bf16.mxu0 0
  %1934 = vmatpush2.bf16.msra.mxu0 0
  %1935 = vmatprep.subr.bf16.mxu0 0
  %1936 = vmatpush2.bf16.msra.mxu0 0
  %1937 = vmatprep.subr.bf16.mxu0 0
  %1938 = vmatpush2.bf16.msra.mxu0 0
  %1939 = vmatprep.mubr.bf16.mxu0 0
  %1940 = vmatmul.mubr.bf16.gmra.mxu0 %v1664
  %v1941 = vpop.f32.mrf.mxu0
  %v1942 = vadd.f32 %v1704, %v1941
  %v1943 = vpop.f32.mrf.mxu0
  %v1944 = vadd.f32 %v1705, %v1943
  %v1945 = vpop.f32.mrf.mxu0
  %v1946 = vpop.f32.mrf.mxu0
  %1947 = vdwg.mxu0
  %v1948 = vxor.u32 %v1901, 2147483648
  %v1949 = vmul.f32 %v1948, 1.442695
  %v1950 = vpow.pop %v1949
  %v1951 = vadd.f32 %v1950, 1.0
  %v1952 = vrcp.pop %v1951
  %v1953 = vmul.f32 1.0, %v1952
  %v1954 = vxor.u32 %v1903, 2147483648
  %v1955 = vmul.f32 %v1954, 1.442695
  %v1956 = vpow.pop %v1955
  %v1957 = vadd.f32 %v1956, 1.0
  %v1958 = vrcp.pop %v1957
  %v1959 = vmul.f32 1.0, %v1958
  %v1960 = vtanh.pop %v1942
  %v1961 = vxor.u32 %v1944, 2147483648
  %v1962 = vmul.f32 %v1961, 1.442695
  %v1963 = vpow.pop %v1962
  %v1964 = vadd.f32 %v1963, 1.0
  %v1965 = vrcp.pop %v1964
  %v1966 = vmul.f32 1.0, %v1965
  %v1967 = vmul.f32 %v1959, %v1661
  %v1968 = vmul.f32 %v1953, %v1960
  %v1969 = vadd.f32 %v1967, %v1968
  %v1970 = vtanh.pop %v1969
  %v1971 = vmul.f32 %v1966, %v1970
  %v1972 = vpack.c.bf16 %v1971, %v1971
  %s1973 = scalar_lea.vmem %s2, 20
  %1974 = vst [vmem:[%s1973] sm:$0xf] %v1972
  %v1975 = vld [vmem:[#allocation4] sm:$0xff]
  %v1976 = vld [vmem:[#allocation4 + $0x8] sm:$0xff]
  %v1977 = vld [vmem:[#allocation4 + $0x10] sm:$0xff]
  %v1978 = vld [vmem:[#allocation4 + $0x18] sm:$0xff]
  %v1979 = vld [vmem:[#allocation4 + $0x20] sm:$0xff]
  %v1980 = vld [vmem:[#allocation4 + $0x28] sm:$0xff]
  %v1981 = vld [vmem:[#allocation4 + $0x30] sm:$0xff]
  %v1982 = vld [vmem:[#allocation4 + $0x38] sm:$0xff]
  %v1983 = vld [vmem:[#allocation4 + $0x40] sm:$0xff]
  %v1984 = vld [vmem:[#allocation4 + $0x48] sm:$0xff]
  %v1985 = vld [vmem:[#allocation4 + $0x50] sm:$0xff]
  %v1986 = vld [vmem:[#allocation4 + $0x58] sm:$0xff]
  %v1987 = vld [vmem:[#allocation4 + $0x60] sm:$0xff]
  %v1988 = vld [vmem:[#allocation4 + $0x68] sm:$0xff]
  %v1989 = vld [vmem:[#allocation4 + $0x70] sm:$0xff]
  %v1990 = vld [vmem:[#allocation4 + $0x78] sm:$0xff]
  %v1991 = vld [vmem:[#allocation4 + $0x80] sm:$0xff]
  %v1992 = vld [vmem:[#allocation4 + $0x88] sm:$0xff]
  %v1993 = vld [vmem:[#allocation4 + $0x90] sm:$0xff]
  %v1994 = vld [vmem:[#allocation4 + $0x98] sm:$0xff]
  %v1995 = vld [vmem:[#allocation4 + $0xa0] sm:$0xff]
  %v1996 = vld [vmem:[#allocation4 + $0xa8] sm:$0xff]
  %v1997 = vld [vmem:[#allocation4 + $0xb0] sm:$0xff]
  %v1998 = vld [vmem:[#allocation4 + $0xb8] sm:$0xff]
  %v1999 = vld [vmem:[#allocation4 + $0xc0] sm:$0xff]
  %v2000 = vld [vmem:[#allocation4 + $0xc8] sm:$0xff]
  %v2001 = vld [vmem:[#allocation4 + $0xd0] sm:$0xff]
  %v2002 = vld [vmem:[#allocation4 + $0xd8] sm:$0xff]
  %v2003 = vld [vmem:[#allocation4 + $0xe0] sm:$0xff]
  %v2004 = vld [vmem:[#allocation4 + $0xe8] sm:$0xff]
  %v2005 = vld [vmem:[#allocation4 + $0xf0] sm:$0xff]
  %v2006 = vld [vmem:[#allocation4 + $0xf8] sm:$0xff]
  %s2007 = scalar_lea.vmem %s0, 96
  %v2008 = vld [vmem:[%s2007] sm:$0xff]
  %v2009 = vld [vmem:[%s2007 + $0x8] sm:$0xff]
  %v2010 = vunpack.c.l.bf16 %v2008
  %v2011 = vunpack.c.h.bf16 %v2008
  %v2012 = vunpack.c.l.bf16 %v2009
  %v2013 = vunpack.c.h.bf16 %v2009
  %v2046 = vunpack.c.l.b16 %v1975
  %v2047 = vunpack.c.h.b16 %v1975
  %v2048 = vunpack.c.l.b16 %v1976
  %v2049 = vunpack.c.h.b16 %v1976
  %v2050 = vunpack.c.l.b16 %v1977
  %v2051 = vunpack.c.h.b16 %v1977
  %v2052 = vunpack.c.l.b16 %v1978
  %v2053 = vunpack.c.h.b16 %v1978
  %v2054 = vunpack.c.l.b16 %v1979
  %v2055 = vunpack.c.h.b16 %v1979
  %v2056 = vunpack.c.l.b16 %v1980
  %v2057 = vunpack.c.h.b16 %v1980
  %v2058 = vunpack.c.l.b16 %v1981
  %v2059 = vunpack.c.h.b16 %v1981
  %v2060 = vunpack.c.l.b16 %v1982
  %v2061 = vunpack.c.h.b16 %v1982
  %v2062 = vunpack.c.l.b16 %v1983
  %v2063 = vunpack.c.h.b16 %v1983
  %v2064 = vunpack.c.l.b16 %v1984
  %v2065 = vunpack.c.h.b16 %v1984
  %v2066 = vunpack.c.l.b16 %v1985
  %v2067 = vunpack.c.h.b16 %v1985
  %v2068 = vunpack.c.l.b16 %v1986
  %v2069 = vunpack.c.h.b16 %v1986
  %v2070 = vunpack.c.l.b16 %v1987
  %v2071 = vunpack.c.h.b16 %v1987
  %v2072 = vunpack.c.l.b16 %v1988
  %v2073 = vunpack.c.h.b16 %v1988
  %v2074 = vunpack.c.l.b16 %v1989
  %v2075 = vunpack.c.h.b16 %v1989
  %v2076 = vunpack.c.l.b16 %v1990
  %v2077 = vunpack.c.h.b16 %v1990
  %v2078 = vunpack.c.l.b16 %v1991
  %v2079 = vunpack.c.h.b16 %v1991
  %v2080 = vunpack.c.l.b16 %v1992
  %v2081 = vunpack.c.h.b16 %v1992
  %v2082 = vunpack.c.l.b16 %v1993
  %v2083 = vunpack.c.h.b16 %v1993
  %v2084 = vunpack.c.l.b16 %v1994
  %v2085 = vunpack.c.h.b16 %v1994
  %v2086 = vunpack.c.l.b16 %v1995
  %v2087 = vunpack.c.h.b16 %v1995
  %v2088 = vunpack.c.l.b16 %v1996
  %v2089 = vunpack.c.h.b16 %v1996
  %v2090 = vunpack.c.l.b16 %v1997
  %v2091 = vunpack.c.h.b16 %v1997
  %v2092 = vunpack.c.l.b16 %v1998
  %v2093 = vunpack.c.h.b16 %v1998
  %v2094 = vunpack.c.l.b16 %v1999
  %v2095 = vunpack.c.h.b16 %v1999
  %v2096 = vunpack.c.l.b16 %v2000
  %v2097 = vunpack.c.h.b16 %v2000
  %v2098 = vunpack.c.l.b16 %v2001
  %v2099 = vunpack.c.h.b16 %v2001
  %v2100 = vunpack.c.l.b16 %v2002
  %v2101 = vunpack.c.h.b16 %v2002
  %v2102 = vunpack.c.l.b16 %v2003
  %v2103 = vunpack.c.h.b16 %v2003
  %v2104 = vunpack.c.l.b16 %v2004
  %v2105 = vunpack.c.h.b16 %v2004
  %v2106 = vunpack.c.l.b16 %v2005
  %v2107 = vunpack.c.h.b16 %v2005
  %v2108 = vunpack.c.l.b16 %v2006
  %v2109 = vunpack.c.h.b16 %v2006
  %v2110 = vpack.c.b16 %v2050, %v2046
  %v2111 = vpack.c.b16 %v2051, %v2047
  %v2112 = vpack.c.b16 %v2052, %v2048
  %v2113 = vpack.c.b16 %v2053, %v2049
  %v2114 = vpack.c.b16 %v2058, %v2054
  %v2115 = vpack.c.b16 %v2059, %v2055
  %v2116 = vpack.c.b16 %v2060, %v2056
  %v2117 = vpack.c.b16 %v2061, %v2057
  %v2118 = vpack.c.b16 %v2066, %v2062
  %v2119 = vpack.c.b16 %v2067, %v2063
  %v2120 = vpack.c.b16 %v2068, %v2064
  %v2121 = vpack.c.b16 %v2069, %v2065
  %v2122 = vpack.c.b16 %v2074, %v2070
  %v2123 = vpack.c.b16 %v2075, %v2071
  %v2124 = vpack.c.b16 %v2076, %v2072
  %v2125 = vpack.c.b16 %v2077, %v2073
  %v2126 = vpack.c.b16 %v2082, %v2078
  %v2127 = vpack.c.b16 %v2083, %v2079
  %v2128 = vpack.c.b16 %v2084, %v2080
  %v2129 = vpack.c.b16 %v2085, %v2081
  %v2130 = vpack.c.b16 %v2090, %v2086
  %v2131 = vpack.c.b16 %v2091, %v2087
  %v2132 = vpack.c.b16 %v2092, %v2088
  %v2133 = vpack.c.b16 %v2093, %v2089
  %v2134 = vpack.c.b16 %v2098, %v2094
  %v2135 = vpack.c.b16 %v2099, %v2095
  %v2136 = vpack.c.b16 %v2100, %v2096
  %v2137 = vpack.c.b16 %v2101, %v2097
  %v2138 = vpack.c.b16 %v2106, %v2102
  %v2139 = vpack.c.b16 %v2107, %v2103
  %v2140 = vpack.c.b16 %v2108, %v2104
  %v2141 = vpack.c.b16 %v2109, %v2105
  %2174 = vmatprep.subr.bf16.mxu0 %v2139
  %2175 = vmatpush1.bf16.msra.mxu0 %v2138
  %2176 = vmatprep.subr.bf16.mxu0 %v2135
  %2177 = vmatpush1.bf16.msra.mxu0 %v2134
  %2178 = vmatprep.subr.bf16.mxu0 %v2131
  %2179 = vmatpush1.bf16.msra.mxu0 %v2130
  %2180 = vmatprep.subr.bf16.mxu0 %v2127
  %2181 = vmatpush1.bf16.msra.mxu0 %v2126
  %2182 = vmatprep.subr.bf16.mxu0 %v2123
  %2183 = vmatpush1.bf16.msra.mxu0 %v2122
  %2184 = vmatprep.subr.bf16.mxu0 %v2119
  %2185 = vmatpush1.bf16.msra.mxu0 %v2118
  %2186 = vmatprep.subr.bf16.mxu0 %v2115
  %2187 = vmatpush1.bf16.msra.mxu0 %v2114
  %2188 = vmatprep.subr.bf16.mxu0 %v2111
  %2189 = vmatpush1.bf16.msra.mxu0 %v2110
  %2190 = vmatprep.subr.bf16.mxu0 0
  %2191 = vmatpush2.bf16.msra.mxu0 0
  %2192 = vmatprep.subr.bf16.mxu0 0
  %2193 = vmatpush2.bf16.msra.mxu0 0
  %2194 = vmatprep.subr.bf16.mxu0 0
  %2195 = vmatpush2.bf16.msra.mxu0 0
  %2196 = vmatprep.subr.bf16.mxu0 0
  %2197 = vmatpush2.bf16.msra.mxu0 0
  %2198 = vmatprep.subr.bf16.mxu0 0
  %2199 = vmatpush2.bf16.msra.mxu0 0
  %2200 = vmatprep.subr.bf16.mxu0 0
  %2201 = vmatpush2.bf16.msra.mxu0 0
  %2202 = vmatprep.subr.bf16.mxu0 0
  %2203 = vmatpush2.bf16.msra.mxu0 0
  %2204 = vmatprep.subr.bf16.mxu0 0
  %2205 = vmatpush2.bf16.msra.mxu0 0
  %2206 = vmatprep.mubr.bf16.mxu0 0
  %2207 = vmatmul.mubr.bf16.gmra.mxu0 %v1972
  %v2208 = vpop.f32.mrf.mxu0
  %v2209 = vadd.f32 %v2010, %v2208
  %v2210 = vpop.f32.mrf.mxu0
  %v2211 = vadd.f32 %v2011, %v2210
  %v2212 = vpop.f32.mrf.mxu0
  %v2213 = vpop.f32.mrf.mxu0
  %2214 = vdwg.mxu0
  %2215 = vmatprep.subr.bf16.mxu0 %v2141
  %2216 = vmatpush1.bf16.msra.mxu0 %v2140
  %2217 = vmatprep.subr.bf16.mxu0 %v2137
  %2218 = vmatpush1.bf16.msra.mxu0 %v2136
  %2219 = vmatprep.subr.bf16.mxu0 %v2133
  %2220 = vmatpush1.bf16.msra.mxu0 %v2132
  %2221 = vmatprep.subr.bf16.mxu0 %v2129
  %2222 = vmatpush1.bf16.msra.mxu0 %v2128
  %2223 = vmatprep.subr.bf16.mxu0 %v2125
  %2224 = vmatpush1.bf16.msra.mxu0 %v2124
  %2225 = vmatprep.subr.bf16.mxu0 %v2121
  %2226 = vmatpush1.bf16.msra.mxu0 %v2120
  %2227 = vmatprep.subr.bf16.mxu0 %v2117
  %2228 = vmatpush1.bf16.msra.mxu0 %v2116
  %2229 = vmatprep.subr.bf16.mxu0 %v2113
  %2230 = vmatpush1.bf16.msra.mxu0 %v2112
  %2231 = vmatprep.subr.bf16.mxu0 0
  %2232 = vmatpush2.bf16.msra.mxu0 0
  %2233 = vmatprep.subr.bf16.mxu0 0
  %2234 = vmatpush2.bf16.msra.mxu0 0
  %2235 = vmatprep.subr.bf16.mxu0 0
  %2236 = vmatpush2.bf16.msra.mxu0 0
  %2237 = vmatprep.subr.bf16.mxu0 0
  %2238 = vmatpush2.bf16.msra.mxu0 0
  %2239 = vmatprep.subr.bf16.mxu0 0
  %2240 = vmatpush2.bf16.msra.mxu0 0
  %2241 = vmatprep.subr.bf16.mxu0 0
  %2242 = vmatpush2.bf16.msra.mxu0 0
  %2243 = vmatprep.subr.bf16.mxu0 0
  %2244 = vmatpush2.bf16.msra.mxu0 0
  %2245 = vmatprep.subr.bf16.mxu0 0
  %2246 = vmatpush2.bf16.msra.mxu0 0
  %2247 = vmatprep.mubr.bf16.mxu0 0
  %2248 = vmatmul.mubr.bf16.gmra.mxu0 %v1972
  %v2249 = vpop.f32.mrf.mxu0
  %v2250 = vadd.f32 %v2012, %v2249
  %v2251 = vpop.f32.mrf.mxu0
  %v2252 = vadd.f32 %v2013, %v2251
  %v2253 = vpop.f32.mrf.mxu0
  %v2254 = vpop.f32.mrf.mxu0
  %2255 = vdwg.mxu0
  %v2256 = vxor.u32 %v2209, 2147483648
  %v2257 = vmul.f32 %v2256, 1.442695
  %v2258 = vpow.pop %v2257
  %v2259 = vadd.f32 %v2258, 1.0
  %v2260 = vrcp.pop %v2259
  %v2261 = vmul.f32 1.0, %v2260
  %v2262 = vxor.u32 %v2211, 2147483648
  %v2263 = vmul.f32 %v2262, 1.442695
  %v2264 = vpow.pop %v2263
  %v2265 = vadd.f32 %v2264, 1.0
  %v2266 = vrcp.pop %v2265
  %v2267 = vmul.f32 1.0, %v2266
  %v2268 = vtanh.pop %v2250
  %v2269 = vxor.u32 %v2252, 2147483648
  %v2270 = vmul.f32 %v2269, 1.442695
  %v2271 = vpow.pop %v2270
  %v2272 = vadd.f32 %v2271, 1.0
  %v2273 = vrcp.pop %v2272
  %v2274 = vmul.f32 1.0, %v2273
  %v2275 = vmul.f32 %v2267, %v1969
  %v2276 = vmul.f32 %v2261, %v2268
  %v2277 = vadd.f32 %v2275, %v2276
  %v2278 = vtanh.pop %v2277
  %v2279 = vmul.f32 %v2274, %v2278
  %v2280 = vpack.c.bf16 %v2279, %v2279
  %s2281 = scalar_lea.vmem %s2, 24
  %2282 = vst [vmem:[%s2281] sm:$0xf] %v2280
  %v2283 = vld [vmem:[#allocation4] sm:$0xff]
  %v2284 = vld [vmem:[#allocation4 + $0x8] sm:$0xff]
  %v2285 = vld [vmem:[#allocation4 + $0x10] sm:$0xff]
  %v2286 = vld [vmem:[#allocation4 + $0x18] sm:$0xff]
  %v2287 = vld [vmem:[#allocation4 + $0x20] sm:$0xff]
  %v2288 = vld [vmem:[#allocation4 + $0x28] sm:$0xff]
  %v2289 = vld [vmem:[#allocation4 + $0x30] sm:$0xff]
  %v2290 = vld [vmem:[#allocation4 + $0x38] sm:$0xff]
  %v2291 = vld [vmem:[#allocation4 + $0x40] sm:$0xff]
  %v2292 = vld [vmem:[#allocation4 + $0x48] sm:$0xff]
  %v2293 = vld [vmem:[#allocation4 + $0x50] sm:$0xff]
  %v2294 = vld [vmem:[#allocation4 + $0x58] sm:$0xff]
  %v2295 = vld [vmem:[#allocation4 + $0x60] sm:$0xff]
  %v2296 = vld [vmem:[#allocation4 + $0x68] sm:$0xff]
  %v2297 = vld [vmem:[#allocation4 + $0x70] sm:$0xff]
  %v2298 = vld [vmem:[#allocation4 + $0x78] sm:$0xff]
  %v2299 = vld [vmem:[#allocation4 + $0x80] sm:$0xff]
  %v2300 = vld [vmem:[#allocation4 + $0x88] sm:$0xff]
  %v2301 = vld [vmem:[#allocation4 + $0x90] sm:$0xff]
  %v2302 = vld [vmem:[#allocation4 + $0x98] sm:$0xff]
  %v2303 = vld [vmem:[#allocation4 + $0xa0] sm:$0xff]
  %v2304 = vld [vmem:[#allocation4 + $0xa8] sm:$0xff]
  %v2305 = vld [vmem:[#allocation4 + $0xb0] sm:$0xff]
  %v2306 = vld [vmem:[#allocation4 + $0xb8] sm:$0xff]
  %v2307 = vld [vmem:[#allocation4 + $0xc0] sm:$0xff]
  %v2308 = vld [vmem:[#allocation4 + $0xc8] sm:$0xff]
  %v2309 = vld [vmem:[#allocation4 + $0xd0] sm:$0xff]
  %v2310 = vld [vmem:[#allocation4 + $0xd8] sm:$0xff]
  %v2311 = vld [vmem:[#allocation4 + $0xe0] sm:$0xff]
  %v2312 = vld [vmem:[#allocation4 + $0xe8] sm:$0xff]
  %v2313 = vld [vmem:[#allocation4 + $0xf0] sm:$0xff]
  %v2314 = vld [vmem:[#allocation4 + $0xf8] sm:$0xff]
  %s2315 = scalar_lea.vmem %s0, 112
  %v2316 = vld [vmem:[%s2315] sm:$0xff]
  %v2317 = vld [vmem:[%s2315 + $0x8] sm:$0xff]
  %v2318 = vunpack.c.l.bf16 %v2316
  %v2319 = vunpack.c.h.bf16 %v2316
  %v2320 = vunpack.c.l.bf16 %v2317
  %v2321 = vunpack.c.h.bf16 %v2317
  %v2354 = vunpack.c.l.b16 %v2283
  %v2355 = vunpack.c.h.b16 %v2283
  %v2356 = vunpack.c.l.b16 %v2284
  %v2357 = vunpack.c.h.b16 %v2284
  %v2358 = vunpack.c.l.b16 %v2285
  %v2359 = vunpack.c.h.b16 %v2285
  %v2360 = vunpack.c.l.b16 %v2286
  %v2361 = vunpack.c.h.b16 %v2286
  %v2362 = vunpack.c.l.b16 %v2287
  %v2363 = vunpack.c.h.b16 %v2287
  %v2364 = vunpack.c.l.b16 %v2288
  %v2365 = vunpack.c.h.b16 %v2288
  %v2366 = vunpack.c.l.b16 %v2289
  %v2367 = vunpack.c.h.b16 %v2289
  %v2368 = vunpack.c.l.b16 %v2290
  %v2369 = vunpack.c.h.b16 %v2290
  %v2370 = vunpack.c.l.b16 %v2291
  %v2371 = vunpack.c.h.b16 %v2291
  %v2372 = vunpack.c.l.b16 %v2292
  %v2373 = vunpack.c.h.b16 %v2292
  %v2374 = vunpack.c.l.b16 %v2293
  %v2375 = vunpack.c.h.b16 %v2293
  %v2376 = vunpack.c.l.b16 %v2294
  %v2377 = vunpack.c.h.b16 %v2294
  %v2378 = vunpack.c.l.b16 %v2295
  %v2379 = vunpack.c.h.b16 %v2295
  %v2380 = vunpack.c.l.b16 %v2296
  %v2381 = vunpack.c.h.b16 %v2296
  %v2382 = vunpack.c.l.b16 %v2297
  %v2383 = vunpack.c.h.b16 %v2297
  %v2384 = vunpack.c.l.b16 %v2298
  %v2385 = vunpack.c.h.b16 %v2298
  %v2386 = vunpack.c.l.b16 %v2299
  %v2387 = vunpack.c.h.b16 %v2299
  %v2388 = vunpack.c.l.b16 %v2300
  %v2389 = vunpack.c.h.b16 %v2300
  %v2390 = vunpack.c.l.b16 %v2301
  %v2391 = vunpack.c.h.b16 %v2301
  %v2392 = vunpack.c.l.b16 %v2302
  %v2393 = vunpack.c.h.b16 %v2302
  %v2394 = vunpack.c.l.b16 %v2303
  %v2395 = vunpack.c.h.b16 %v2303
  %v2396 = vunpack.c.l.b16 %v2304
  %v2397 = vunpack.c.h.b16 %v2304
  %v2398 = vunpack.c.l.b16 %v2305
  %v2399 = vunpack.c.h.b16 %v2305
  %v2400 = vunpack.c.l.b16 %v2306
  %v2401 = vunpack.c.h.b16 %v2306
  %v2402 = vunpack.c.l.b16 %v2307
  %v2403 = vunpack.c.h.b16 %v2307
  %v2404 = vunpack.c.l.b16 %v2308
  %v2405 = vunpack.c.h.b16 %v2308
  %v2406 = vunpack.c.l.b16 %v2309
  %v2407 = vunpack.c.h.b16 %v2309
  %v2408 = vunpack.c.l.b16 %v2310
  %v2409 = vunpack.c.h.b16 %v2310
  %v2410 = vunpack.c.l.b16 %v2311
  %v2411 = vunpack.c.h.b16 %v2311
  %v2412 = vunpack.c.l.b16 %v2312
  %v2413 = vunpack.c.h.b16 %v2312
  %v2414 = vunpack.c.l.b16 %v2313
  %v2415 = vunpack.c.h.b16 %v2313
  %v2416 = vunpack.c.l.b16 %v2314
  %v2417 = vunpack.c.h.b16 %v2314
  %v2418 = vpack.c.b16 %v2358, %v2354
  %v2419 = vpack.c.b16 %v2359, %v2355
  %v2420 = vpack.c.b16 %v2360, %v2356
  %v2421 = vpack.c.b16 %v2361, %v2357
  %v2422 = vpack.c.b16 %v2366, %v2362
  %v2423 = vpack.c.b16 %v2367, %v2363
  %v2424 = vpack.c.b16 %v2368, %v2364
  %v2425 = vpack.c.b16 %v2369, %v2365
  %v2426 = vpack.c.b16 %v2374, %v2370
  %v2427 = vpack.c.b16 %v2375, %v2371
  %v2428 = vpack.c.b16 %v2376, %v2372
  %v2429 = vpack.c.b16 %v2377, %v2373
  %v2430 = vpack.c.b16 %v2382, %v2378
  %v2431 = vpack.c.b16 %v2383, %v2379
  %v2432 = vpack.c.b16 %v2384, %v2380
  %v2433 = vpack.c.b16 %v2385, %v2381
  %v2434 = vpack.c.b16 %v2390, %v2386
  %v2435 = vpack.c.b16 %v2391, %v2387
  %v2436 = vpack.c.b16 %v2392, %v2388
  %v2437 = vpack.c.b16 %v2393, %v2389
  %v2438 = vpack.c.b16 %v2398, %v2394
  %v2439 = vpack.c.b16 %v2399, %v2395
  %v2440 = vpack.c.b16 %v2400, %v2396
  %v2441 = vpack.c.b16 %v2401, %v2397
  %v2442 = vpack.c.b16 %v2406, %v2402
  %v2443 = vpack.c.b16 %v2407, %v2403
  %v2444 = vpack.c.b16 %v2408, %v2404
  %v2445 = vpack.c.b16 %v2409, %v2405
  %v2446 = vpack.c.b16 %v2414, %v2410
  %v2447 = vpack.c.b16 %v2415, %v2411
  %v2448 = vpack.c.b16 %v2416, %v2412
  %v2449 = vpack.c.b16 %v2417, %v2413
  %2482 = vmatprep.subr.bf16.mxu0 %v2447
  %2483 = vmatpush1.bf16.msra.mxu0 %v2446
  %2484 = vmatprep.subr.bf16.mxu0 %v2443
  %2485 = vmatpush1.bf16.msra.mxu0 %v2442
  %2486 = vmatprep.subr.bf16.mxu0 %v2439
  %2487 = vmatpush1.bf16.msra.mxu0 %v2438
  %2488 = vmatprep.subr.bf16.mxu0 %v2435
  %2489 = vmatpush1.bf16.msra.mxu0 %v2434
  %2490 = vmatprep.subr.bf16.mxu0 %v2431
  %2491 = vmatpush1.bf16.msra.mxu0 %v2430
  %2492 = vmatprep.subr.bf16.mxu0 %v2427
  %2493 = vmatpush1.bf16.msra.mxu0 %v2426
  %2494 = vmatprep.subr.bf16.mxu0 %v2423
  %2495 = vmatpush1.bf16.msra.mxu0 %v2422
  %2496 = vmatprep.subr.bf16.mxu0 %v2419
  %2497 = vmatpush1.bf16.msra.mxu0 %v2418
  %2498 = vmatprep.subr.bf16.mxu0 0
  %2499 = vmatpush2.bf16.msra.mxu0 0
  %2500 = vmatprep.subr.bf16.mxu0 0
  %2501 = vmatpush2.bf16.msra.mxu0 0
  %2502 = vmatprep.subr.bf16.mxu0 0
  %2503 = vmatpush2.bf16.msra.mxu0 0
  %2504 = vmatprep.subr.bf16.mxu0 0
  %2505 = vmatpush2.bf16.msra.mxu0 0
  %2506 = vmatprep.subr.bf16.mxu0 0
  %2507 = vmatpush2.bf16.msra.mxu0 0
  %2508 = vmatprep.subr.bf16.mxu0 0
  %2509 = vmatpush2.bf16.msra.mxu0 0
  %2510 = vmatprep.subr.bf16.mxu0 0
  %2511 = vmatpush2.bf16.msra.mxu0 0
  %2512 = vmatprep.subr.bf16.mxu0 0
  %2513 = vmatpush2.bf16.msra.mxu0 0
  %2514 = vmatprep.mubr.bf16.mxu0 0
  %2515 = vmatmul.mubr.bf16.gmra.mxu0 %v2280
  %v2516 = vpop.f32.mrf.mxu0
  %v2517 = vadd.f32 %v2318, %v2516
  %v2518 = vpop.f32.mrf.mxu0
  %v2519 = vadd.f32 %v2319, %v2518
  %v2520 = vpop.f32.mrf.mxu0
  %v2521 = vpop.f32.mrf.mxu0
  %2522 = vdwg.mxu0
  %2523 = vmatprep.subr.bf16.mxu0 %v2449
  %2524 = vmatpush1.bf16.msra.mxu0 %v2448
  %2525 = vmatprep.subr.bf16.mxu0 %v2445
  %2526 = vmatpush1.bf16.msra.mxu0 %v2444
  %2527 = vmatprep.subr.bf16.mxu0 %v2441
  %2528 = vmatpush1.bf16.msra.mxu0 %v2440
  %2529 = vmatprep.subr.bf16.mxu0 %v2437
  %2530 = vmatpush1.bf16.msra.mxu0 %v2436
  %2531 = vmatprep.subr.bf16.mxu0 %v2433
  %2532 = vmatpush1.bf16.msra.mxu0 %v2432
  %2533 = vmatprep.subr.bf16.mxu0 %v2429
  %2534 = vmatpush1.bf16.msra.mxu0 %v2428
  %2535 = vmatprep.subr.bf16.mxu0 %v2425
  %2536 = vmatpush1.bf16.msra.mxu0 %v2424
  %2537 = vmatprep.subr.bf16.mxu0 %v2421
  %2538 = vmatpush1.bf16.msra.mxu0 %v2420
  %2539 = vmatprep.subr.bf16.mxu0 0
  %2540 = vmatpush2.bf16.msra.mxu0 0
  %2541 = vmatprep.subr.bf16.mxu0 0
  %2542 = vmatpush2.bf16.msra.mxu0 0
  %2543 = vmatprep.subr.bf16.mxu0 0
  %2544 = vmatpush2.bf16.msra.mxu0 0
  %2545 = vmatprep.subr.bf16.mxu0 0
  %2546 = vmatpush2.bf16.msra.mxu0 0
  %2547 = vmatprep.subr.bf16.mxu0 0
  %2548 = vmatpush2.bf16.msra.mxu0 0
  %2549 = vmatprep.subr.bf16.mxu0 0
  %2550 = vmatpush2.bf16.msra.mxu0 0
  %2551 = vmatprep.subr.bf16.mxu0 0
  %2552 = vmatpush2.bf16.msra.mxu0 0
  %2553 = vmatprep.subr.bf16.mxu0 0
  %2554 = vmatpush2.bf16.msra.mxu0 0
  %2555 = vmatprep.mubr.bf16.mxu0 0
  %2556 = vmatmul.mubr.bf16.gmra.mxu0 %v2280
  %v2557 = vpop.f32.mrf.mxu0
  %v2558 = vadd.f32 %v2320, %v2557
  %v2559 = vpop.f32.mrf.mxu0
  %v2560 = vadd.f32 %v2321, %v2559
  %v2561 = vpop.f32.mrf.mxu0
  %v2562 = vpop.f32.mrf.mxu0
  %2563 = vdwg.mxu0
  %v2564 = vxor.u32 %v2517, 2147483648
  %v2565 = vmul.f32 %v2564, 1.442695
  %v2566 = vpow.pop %v2565
  %v2567 = vadd.f32 %v2566, 1.0
  %v2568 = vrcp.pop %v2567
  %v2569 = vmul.f32 1.0, %v2568
  %v2570 = vxor.u32 %v2519, 2147483648
  %v2571 = vmul.f32 %v2570, 1.442695
  %v2572 = vpow.pop %v2571
  %v2573 = vadd.f32 %v2572, 1.0
  %v2574 = vrcp.pop %v2573
  %v2575 = vmul.f32 1.0, %v2574
  %v2576 = vtanh.pop %v2558
  %v2577 = vxor.u32 %v2560, 2147483648
  %v2578 = vmul.f32 %v2577, 1.442695
  %v2579 = vpow.pop %v2578
  %v2580 = vadd.f32 %v2579, 1.0
  %v2581 = vrcp.pop %v2580
  %v2582 = vmul.f32 1.0, %v2581
  %v2583 = vmul.f32 %v2575, %v2277
  %v2584 = vmul.f32 %v2569, %v2576
  %v2585 = vadd.f32 %v2583, %v2584
  %v2586 = vtanh.pop %v2585
  %v2587 = vmul.f32 %v2582, %v2586
  %v2588 = vpack.c.bf16 %v2587, %v2587
  %s2589 = scalar_lea.vmem %s2, 28
  %2590 = vst [vmem:[%s2589] sm:$0xf] %v2588
  %v2591 = vld [vmem:[#allocation4] sm:$0xff]
  %v2592 = vld [vmem:[#allocation4 + $0x8] sm:$0xff]
  %v2593 = vld [vmem:[#allocation4 + $0x10] sm:$0xff]
  %v2594 = vld [vmem:[#allocation4 + $0x18] sm:$0xff]
  %v2595 = vld [vmem:[#allocation4 + $0x20] sm:$0xff]
  %v2596 = vld [vmem:[#allocation4 + $0x28] sm:$0xff]
  %v2597 = vld [vmem:[#allocation4 + $0x30] sm:$0xff]
  %v2598 = vld [vmem:[#allocation4 + $0x38] sm:$0xff]
  %v2599 = vld [vmem:[#allocation4 + $0x40] sm:$0xff]
  %v2600 = vld [vmem:[#allocation4 + $0x48] sm:$0xff]
  %v2601 = vld [vmem:[#allocation4 + $0x50] sm:$0xff]
  %v2602 = vld [vmem:[#allocation4 + $0x58] sm:$0xff]
  %v2603 = vld [vmem:[#allocation4 + $0x60] sm:$0xff]
  %v2604 = vld [vmem:[#allocation4 + $0x68] sm:$0xff]
  %v2605 = vld [vmem:[#allocation4 + $0x70] sm:$0xff]
  %v2606 = vld [vmem:[#allocation4 + $0x78] sm:$0xff]
  %v2607 = vld [vmem:[#allocation4 + $0x80] sm:$0xff]
  %v2608 = vld [vmem:[#allocation4 + $0x88] sm:$0xff]
  %v2609 = vld [vmem:[#allocation4 + $0x90] sm:$0xff]
  %v2610 = vld [vmem:[#allocation4 + $0x98] sm:$0xff]
  %v2611 = vld [vmem:[#allocation4 + $0xa0] sm:$0xff]
  %v2612 = vld [vmem:[#allocation4 + $0xa8] sm:$0xff]
  %v2613 = vld [vmem:[#allocation4 + $0xb0] sm:$0xff]
  %v2614 = vld [vmem:[#allocation4 + $0xb8] sm:$0xff]
  %v2615 = vld [vmem:[#allocation4 + $0xc0] sm:$0xff]
  %v2616 = vld [vmem:[#allocation4 + $0xc8] sm:$0xff]
  %v2617 = vld [vmem:[#allocation4 + $0xd0] sm:$0xff]
  %v2618 = vld [vmem:[#allocation4 + $0xd8] sm:$0xff]
  %v2619 = vld [vmem:[#allocation4 + $0xe0] sm:$0xff]
  %v2620 = vld [vmem:[#allocation4 + $0xe8] sm:$0xff]
  %v2621 = vld [vmem:[#allocation4 + $0xf0] sm:$0xff]
  %v2622 = vld [vmem:[#allocation4 + $0xf8] sm:$0xff]
  %s2623 = scalar_lea.vmem %s0, 128
  %v2624 = vld [vmem:[%s2623] sm:$0xff]
  %v2625 = vld [vmem:[%s2623 + $0x8] sm:$0xff]
  %v2626 = vunpack.c.l.bf16 %v2624
  %v2627 = vunpack.c.h.bf16 %v2624
  %v2628 = vunpack.c.l.bf16 %v2625
  %v2629 = vunpack.c.h.bf16 %v2625
  %v2662 = vunpack.c.l.b16 %v2591
  %v2663 = vunpack.c.h.b16 %v2591
  %v2664 = vunpack.c.l.b16 %v2592
  %v2665 = vunpack.c.h.b16 %v2592
  %v2666 = vunpack.c.l.b16 %v2593
  %v2667 = vunpack.c.h.b16 %v2593
  %v2668 = vunpack.c.l.b16 %v2594
  %v2669 = vunpack.c.h.b16 %v2594
  %v2670 = vunpack.c.l.b16 %v2595
  %v2671 = vunpack.c.h.b16 %v2595
  %v2672 = vunpack.c.l.b16 %v2596
  %v2673 = vunpack.c.h.b16 %v2596
  %v2674 = vunpack.c.l.b16 %v2597
  %v2675 = vunpack.c.h.b16 %v2597
  %v2676 = vunpack.c.l.b16 %v2598
  %v2677 = vunpack.c.h.b16 %v2598
  %v2678 = vunpack.c.l.b16 %v2599
  %v2679 = vunpack.c.h.b16 %v2599
  %v2680 = vunpack.c.l.b16 %v2600
  %v2681 = vunpack.c.h.b16 %v2600
  %v2682 = vunpack.c.l.b16 %v2601
  %v2683 = vunpack.c.h.b16 %v2601
  %v2684 = vunpack.c.l.b16 %v2602
  %v2685 = vunpack.c.h.b16 %v2602
  %v2686 = vunpack.c.l.b16 %v2603
  %v2687 = vunpack.c.h.b16 %v2603
  %v2688 = vunpack.c.l.b16 %v2604
  %v2689 = vunpack.c.h.b16 %v2604
  %v2690 = vunpack.c.l.b16 %v2605
  %v2691 = vunpack.c.h.b16 %v2605
  %v2692 = vunpack.c.l.b16 %v2606
  %v2693 = vunpack.c.h.b16 %v2606
  %v2694 = vunpack.c.l.b16 %v2607
  %v2695 = vunpack.c.h.b16 %v2607
  %v2696 = vunpack.c.l.b16 %v2608
  %v2697 = vunpack.c.h.b16 %v2608
  %v2698 = vunpack.c.l.b16 %v2609
  %v2699 = vunpack.c.h.b16 %v2609
  %v2700 = vunpack.c.l.b16 %v2610
  %v2701 = vunpack.c.h.b16 %v2610
  %v2702 = vunpack.c.l.b16 %v2611
  %v2703 = vunpack.c.h.b16 %v2611
  %v2704 = vunpack.c.l.b16 %v2612
  %v2705 = vunpack.c.h.b16 %v2612
  %v2706 = vunpack.c.l.b16 %v2613
  %v2707 = vunpack.c.h.b16 %v2613
  %v2708 = vunpack.c.l.b16 %v2614
  %v2709 = vunpack.c.h.b16 %v2614
  %v2710 = vunpack.c.l.b16 %v2615
  %v2711 = vunpack.c.h.b16 %v2615
  %v2712 = vunpack.c.l.b16 %v2616
  %v2713 = vunpack.c.h.b16 %v2616
  %v2714 = vunpack.c.l.b16 %v2617
  %v2715 = vunpack.c.h.b16 %v2617
  %v2716 = vunpack.c.l.b16 %v2618
  %v2717 = vunpack.c.h.b16 %v2618
  %v2718 = vunpack.c.l.b16 %v2619
  %v2719 = vunpack.c.h.b16 %v2619
  %v2720 = vunpack.c.l.b16 %v2620
  %v2721 = vunpack.c.h.b16 %v2620
  %v2722 = vunpack.c.l.b16 %v2621
  %v2723 = vunpack.c.h.b16 %v2621
  %v2724 = vunpack.c.l.b16 %v2622
  %v2725 = vunpack.c.h.b16 %v2622
  %v2726 = vpack.c.b16 %v2666, %v2662
  %v2727 = vpack.c.b16 %v2667, %v2663
  %v2728 = vpack.c.b16 %v2668, %v2664
  %v2729 = vpack.c.b16 %v2669, %v2665
  %v2730 = vpack.c.b16 %v2674, %v2670
  %v2731 = vpack.c.b16 %v2675, %v2671
  %v2732 = vpack.c.b16 %v2676, %v2672
  %v2733 = vpack.c.b16 %v2677, %v2673
  %v2734 = vpack.c.b16 %v2682, %v2678
  %v2735 = vpack.c.b16 %v2683, %v2679
  %v2736 = vpack.c.b16 %v2684, %v2680
  %v2737 = vpack.c.b16 %v2685, %v2681
  %v2738 = vpack.c.b16 %v2690, %v2686
  %v2739 = vpack.c.b16 %v2691, %v2687
  %v2740 = vpack.c.b16 %v2692, %v2688
  %v2741 = vpack.c.b16 %v2693, %v2689
  %v2742 = vpack.c.b16 %v2698, %v2694
  %v2743 = vpack.c.b16 %v2699, %v2695
  %v2744 = vpack.c.b16 %v2700, %v2696
  %v2745 = vpack.c.b16 %v2701, %v2697
  %v2746 = vpack.c.b16 %v2706, %v2702
  %v2747 = vpack.c.b16 %v2707, %v2703
  %v2748 = vpack.c.b16 %v2708, %v2704
  %v2749 = vpack.c.b16 %v2709, %v2705
  %v2750 = vpack.c.b16 %v2714, %v2710
  %v2751 = vpack.c.b16 %v2715, %v2711
  %v2752 = vpack.c.b16 %v2716, %v2712
  %v2753 = vpack.c.b16 %v2717, %v2713
  %v2754 = vpack.c.b16 %v2722, %v2718
  %v2755 = vpack.c.b16 %v2723, %v2719
  %v2756 = vpack.c.b16 %v2724, %v2720
  %v2757 = vpack.c.b16 %v2725, %v2721
  %2790 = vmatprep.subr.bf16.mxu0 %v2755
  %2791 = vmatpush1.bf16.msra.mxu0 %v2754
  %2792 = vmatprep.subr.bf16.mxu0 %v2751
  %2793 = vmatpush1.bf16.msra.mxu0 %v2750
  %2794 = vmatprep.subr.bf16.mxu0 %v2747
  %2795 = vmatpush1.bf16.msra.mxu0 %v2746
  %2796 = vmatprep.subr.bf16.mxu0 %v2743
  %2797 = vmatpush1.bf16.msra.mxu0 %v2742
  %2798 = vmatprep.subr.bf16.mxu0 %v2739
  %2799 = vmatpush1.bf16.msra.mxu0 %v2738
  %2800 = vmatprep.subr.bf16.mxu0 %v2735
  %2801 = vmatpush1.bf16.msra.mxu0 %v2734
  %2802 = vmatprep.subr.bf16.mxu0 %v2731
  %2803 = vmatpush1.bf16.msra.mxu0 %v2730
  %2804 = vmatprep.subr.bf16.mxu0 %v2727
  %2805 = vmatpush1.bf16.msra.mxu0 %v2726
  %2806 = vmatprep.subr.bf16.mxu0 0
  %2807 = vmatpush2.bf16.msra.mxu0 0
  %2808 = vmatprep.subr.bf16.mxu0 0
  %2809 = vmatpush2.bf16.msra.mxu0 0
  %2810 = vmatprep.subr.bf16.mxu0 0
  %2811 = vmatpush2.bf16.msra.mxu0 0
  %2812 = vmatprep.subr.bf16.mxu0 0
  %2813 = vmatpush2.bf16.msra.mxu0 0
  %2814 = vmatprep.subr.bf16.mxu0 0
  %2815 = vmatpush2.bf16.msra.mxu0 0
  %2816 = vmatprep.subr.bf16.mxu0 0
  %2817 = vmatpush2.bf16.msra.mxu0 0
  %2818 = vmatprep.subr.bf16.mxu0 0
  %2819 = vmatpush2.bf16.msra.mxu0 0
  %2820 = vmatprep.subr.bf16.mxu0 0
  %2821 = vmatpush2.bf16.msra.mxu0 0
  %2822 = vmatprep.mubr.bf16.mxu0 0
  %2823 = vmatmul.mubr.bf16.gmra.mxu0 %v2588
  %v2824 = vpop.f32.mrf.mxu0
  %v2825 = vadd.f32 %v2626, %v2824
  %v2826 = vpop.f32.mrf.mxu0
  %v2827 = vadd.f32 %v2627, %v2826
  %v2828 = vpop.f32.mrf.mxu0
  %v2829 = vpop.f32.mrf.mxu0
  %2830 = vdwg.mxu0
  %2831 = vmatprep.subr.bf16.mxu0 %v2757
  %2832 = vmatpush1.bf16.msra.mxu0 %v2756
  %2833 = vmatprep.subr.bf16.mxu0 %v2753
  %2834 = vmatpush1.bf16.msra.mxu0 %v2752
  %2835 = vmatprep.subr.bf16.mxu0 %v2749
  %2836 = vmatpush1.bf16.msra.mxu0 %v2748
  %2837 = vmatprep.subr.bf16.mxu0 %v2745
  %2838 = vmatpush1.bf16.msra.mxu0 %v2744
  %2839 = vmatprep.subr.bf16.mxu0 %v2741
  %2840 = vmatpush1.bf16.msra.mxu0 %v2740
  %2841 = vmatprep.subr.bf16.mxu0 %v2737
  %2842 = vmatpush1.bf16.msra.mxu0 %v2736
  %2843 = vmatprep.subr.bf16.mxu0 %v2733
  %2844 = vmatpush1.bf16.msra.mxu0 %v2732
  %2845 = vmatprep.subr.bf16.mxu0 %v2729
  %2846 = vmatpush1.bf16.msra.mxu0 %v2728
  %2847 = vmatprep.subr.bf16.mxu0 0
  %2848 = vmatpush2.bf16.msra.mxu0 0
  %2849 = vmatprep.subr.bf16.mxu0 0
  %2850 = vmatpush2.bf16.msra.mxu0 0
  %2851 = vmatprep.subr.bf16.mxu0 0
  %2852 = vmatpush2.bf16.msra.mxu0 0
  %2853 = vmatprep.subr.bf16.mxu0 0
  %2854 = vmatpush2.bf16.msra.mxu0 0
  %2855 = vmatprep.subr.bf16.mxu0 0
  %2856 = vmatpush2.bf16.msra.mxu0 0
  %2857 = vmatprep.subr.bf16.mxu0 0
  %2858 = vmatpush2.bf16.msra.mxu0 0
  %2859 = vmatprep.subr.bf16.mxu0 0
  %2860 = vmatpush2.bf16.msra.mxu0 0
  %2861 = vmatprep.subr.bf16.mxu0 0
  %2862 = vmatpush2.bf16.msra.mxu0 0
  %2863 = vmatprep.mubr.bf16.mxu0 0
  %2864 = vmatmul.mubr.bf16.gmra.mxu0 %v2588
  %v2865 = vpop.f32.mrf.mxu0
  %v2866 = vadd.f32 %v2628, %v2865
  %v2867 = vpop.f32.mrf.mxu0
  %v2868 = vadd.f32 %v2629, %v2867
  %v2869 = vpop.f32.mrf.mxu0
  %v2870 = vpop.f32.mrf.mxu0
  %2871 = vdwg.mxu0
  %v2872 = vxor.u32 %v2825, 2147483648
  %v2873 = vmul.f32 %v2872, 1.442695
  %v2874 = vpow.pop %v2873
  %v2875 = vadd.f32 %v2874, 1.0
  %v2876 = vrcp.pop %v2875
  %v2877 = vmul.f32 1.0, %v2876
  %v2878 = vxor.u32 %v2827, 2147483648
  %v2879 = vmul.f32 %v2878, 1.442695
  %v2880 = vpow.pop %v2879
  %v2881 = vadd.f32 %v2880, 1.0
  %v2882 = vrcp.pop %v2881
  %v2883 = vmul.f32 1.0, %v2882
  %v2884 = vtanh.pop %v2866
  %v2885 = vxor.u32 %v2868, 2147483648
  %v2886 = vmul.f32 %v2885, 1.442695
  %v2887 = vpow.pop %v2886
  %v2888 = vadd.f32 %v2887, 1.0
  %v2889 = vrcp.pop %v2888
  %v2890 = vmul.f32 1.0, %v2889
  %v2891 = vmul.f32 %v2883, %v2585
  %v2892 = vmul.f32 %v2877, %v2884
  %v2893 = vadd.f32 %v2891, %v2892
  %v2894 = vtanh.pop %v2893
  %v2895 = vmul.f32 %v2890, %v2894
  %v2896 = vpack.c.bf16 %v2895, %v2895
  %s2897 = scalar_lea.vmem %s2, 32
  %2898 = vst [vmem:[%s2897] sm:$0xf] %v2896
  %v2899 = vld [vmem:[#allocation4] sm:$0xff]
  %v2900 = vld [vmem:[#allocation4 + $0x8] sm:$0xff]
  %v2901 = vld [vmem:[#allocation4 + $0x10] sm:$0xff]
  %v2902 = vld [vmem:[#allocation4 + $0x18] sm:$0xff]
  %v2903 = vld [vmem:[#allocation4 + $0x20] sm:$0xff]
  %v2904 = vld [vmem:[#allocation4 + $0x28] sm:$0xff]
  %v2905 = vld [vmem:[#allocation4 + $0x30] sm:$0xff]
  %v2906 = vld [vmem:[#allocation4 + $0x38] sm:$0xff]
  %v2907 = vld [vmem:[#allocation4 + $0x40] sm:$0xff]
  %v2908 = vld [vmem:[#allocation4 + $0x48] sm:$0xff]
  %v2909 = vld [vmem:[#allocation4 + $0x50] sm:$0xff]
  %v2910 = vld [vmem:[#allocation4 + $0x58] sm:$0xff]
  %v2911 = vld [vmem:[#allocation4 + $0x60] sm:$0xff]
  %v2912 = vld [vmem:[#allocation4 + $0x68] sm:$0xff]
  %v2913 = vld [vmem:[#allocation4 + $0x70] sm:$0xff]
  %v2914 = vld [vmem:[#allocation4 + $0x78] sm:$0xff]
  %v2915 = vld [vmem:[#allocation4 + $0x80] sm:$0xff]
  %v2916 = vld [vmem:[#allocation4 + $0x88] sm:$0xff]
  %v2917 = vld [vmem:[#allocation4 + $0x90] sm:$0xff]
  %v2918 = vld [vmem:[#allocation4 + $0x98] sm:$0xff]
  %v2919 = vld [vmem:[#allocation4 + $0xa0] sm:$0xff]
  %v2920 = vld [vmem:[#allocation4 + $0xa8] sm:$0xff]
  %v2921 = vld [vmem:[#allocation4 + $0xb0] sm:$0xff]
  %v2922 = vld [vmem:[#allocation4 + $0xb8] sm:$0xff]
  %v2923 = vld [vmem:[#allocation4 + $0xc0] sm:$0xff]
  %v2924 = vld [vmem:[#allocation4 + $0xc8] sm:$0xff]
  %v2925 = vld [vmem:[#allocation4 + $0xd0] sm:$0xff]
  %v2926 = vld [vmem:[#allocation4 + $0xd8] sm:$0xff]
  %v2927 = vld [vmem:[#allocation4 + $0xe0] sm:$0xff]
  %v2928 = vld [vmem:[#allocation4 + $0xe8] sm:$0xff]
  %v2929 = vld [vmem:[#allocation4 + $0xf0] sm:$0xff]
  %v2930 = vld [vmem:[#allocation4 + $0xf8] sm:$0xff]
  %s2931 = scalar_lea.vmem %s0, 144
  %v2932 = vld [vmem:[%s2931] sm:$0xff]
  %v2933 = vld [vmem:[%s2931 + $0x8] sm:$0xff]
  %v2934 = vunpack.c.l.bf16 %v2932
  %v2935 = vunpack.c.h.bf16 %v2932
  %v2936 = vunpack.c.l.bf16 %v2933
  %v2937 = vunpack.c.h.bf16 %v2933
  %v2970 = vunpack.c.l.b16 %v2899
  %v2971 = vunpack.c.h.b16 %v2899
  %v2972 = vunpack.c.l.b16 %v2900
  %v2973 = vunpack.c.h.b16 %v2900
  %v2974 = vunpack.c.l.b16 %v2901
  %v2975 = vunpack.c.h.b16 %v2901
  %v2976 = vunpack.c.l.b16 %v2902
  %v2977 = vunpack.c.h.b16 %v2902
  %v2978 = vunpack.c.l.b16 %v2903
  %v2979 = vunpack.c.h.b16 %v2903
  %v2980 = vunpack.c.l.b16 %v2904
  %v2981 = vunpack.c.h.b16 %v2904
  %v2982 = vunpack.c.l.b16 %v2905
  %v2983 = vunpack.c.h.b16 %v2905
  %v2984 = vunpack.c.l.b16 %v2906
  %v2985 = vunpack.c.h.b16 %v2906
  %v2986 = vunpack.c.l.b16 %v2907
  %v2987 = vunpack.c.h.b16 %v2907
  %v2988 = vunpack.c.l.b16 %v2908
  %v2989 = vunpack.c.h.b16 %v2908
  %v2990 = vunpack.c.l.b16 %v2909
  %v2991 = vunpack.c.h.b16 %v2909
  %v2992 = vunpack.c.l.b16 %v2910
  %v2993 = vunpack.c.h.b16 %v2910
  %v2994 = vunpack.c.l.b16 %v2911
  %v2995 = vunpack.c.h.b16 %v2911
  %v2996 = vunpack.c.l.b16 %v2912
  %v2997 = vunpack.c.h.b16 %v2912
  %v2998 = vunpack.c.l.b16 %v2913
  %v2999 = vunpack.c.h.b16 %v2913
  %v3000 = vunpack.c.l.b16 %v2914
  %v3001 = vunpack.c.h.b16 %v2914
  %v3002 = vunpack.c.l.b16 %v2915
  %v3003 = vunpack.c.h.b16 %v2915
  %v3004 = vunpack.c.l.b16 %v2916
  %v3005 = vunpack.c.h.b16 %v2916
  %v3006 = vunpack.c.l.b16 %v2917
  %v3007 = vunpack.c.h.b16 %v2917
  %v3008 = vunpack.c.l.b16 %v2918
  %v3009 = vunpack.c.h.b16 %v2918
  %v3010 = vunpack.c.l.b16 %v2919
  %v3011 = vunpack.c.h.b16 %v2919
  %v3012 = vunpack.c.l.b16 %v2920
  %v3013 = vunpack.c.h.b16 %v2920
  %v3014 = vunpack.c.l.b16 %v2921
  %v3015 = vunpack.c.h.b16 %v2921
  %v3016 = vunpack.c.l.b16 %v2922
  %v3017 = vunpack.c.h.b16 %v2922
  %v3018 = vunpack.c.l.b16 %v2923
  %v3019 = vunpack.c.h.b16 %v2923
  %v3020 = vunpack.c.l.b16 %v2924
  %v3021 = vunpack.c.h.b16 %v2924
  %v3022 = vunpack.c.l.b16 %v2925
  %v3023 = vunpack.c.h.b16 %v2925
  %v3024 = vunpack.c.l.b16 %v2926
  %v3025 = vunpack.c.h.b16 %v2926
  %v3026 = vunpack.c.l.b16 %v2927
  %v3027 = vunpack.c.h.b16 %v2927
  %v3028 = vunpack.c.l.b16 %v2928
  %v3029 = vunpack.c.h.b16 %v2928
  %v3030 = vunpack.c.l.b16 %v2929
  %v3031 = vunpack.c.h.b16 %v2929
  %v3032 = vunpack.c.l.b16 %v2930
  %v3033 = vunpack.c.h.b16 %v2930
  %v3034 = vpack.c.b16 %v2974, %v2970
  %v3035 = vpack.c.b16 %v2975, %v2971
  %v3036 = vpack.c.b16 %v2976, %v2972
  %v3037 = vpack.c.b16 %v2977, %v2973
  %v3038 = vpack.c.b16 %v2982, %v2978
  %v3039 = vpack.c.b16 %v2983, %v2979
  %v3040 = vpack.c.b16 %v2984, %v2980
  %v3041 = vpack.c.b16 %v2985, %v2981
  %v3042 = vpack.c.b16 %v2990, %v2986
  %v3043 = vpack.c.b16 %v2991, %v2987
  %v3044 = vpack.c.b16 %v2992, %v2988
  %v3045 = vpack.c.b16 %v2993, %v2989
  %v3046 = vpack.c.b16 %v2998, %v2994
  %v3047 = vpack.c.b16 %v2999, %v2995
  %v3048 = vpack.c.b16 %v3000, %v2996
  %v3049 = vpack.c.b16 %v3001, %v2997
  %v3050 = vpack.c.b16 %v3006, %v3002
  %v3051 = vpack.c.b16 %v3007, %v3003
  %v3052 = vpack.c.b16 %v3008, %v3004
  %v3053 = vpack.c.b16 %v3009, %v3005
  %v3054 = vpack.c.b16 %v3014, %v3010
  %v3055 = vpack.c.b16 %v3015, %v3011
  %v3056 = vpack.c.b16 %v3016, %v3012
  %v3057 = vpack.c.b16 %v3017, %v3013
  %v3058 = vpack.c.b16 %v3022, %v3018
  %v3059 = vpack.c.b16 %v3023, %v3019
  %v3060 = vpack.c.b16 %v3024, %v3020
  %v3061 = vpack.c.b16 %v3025, %v3021
  %v3062 = vpack.c.b16 %v3030, %v3026
  %v3063 = vpack.c.b16 %v3031, %v3027
  %v3064 = vpack.c.b16 %v3032, %v3028
  %v3065 = vpack.c.b16 %v3033, %v3029
  %3098 = vmatprep.subr.bf16.mxu0 %v3063
  %3099 = vmatpush1.bf16.msra.mxu0 %v3062
  %3100 = vmatprep.subr.bf16.mxu0 %v3059
  %3101 = vmatpush1.bf16.msra.mxu0 %v3058
  %3102 = vmatprep.subr.bf16.mxu0 %v3055
  %3103 = vmatpush1.bf16.msra.mxu0 %v3054
  %3104 = vmatprep.subr.bf16.mxu0 %v3051
  %3105 = vmatpush1.bf16.msra.mxu0 %v3050
  %3106 = vmatprep.subr.bf16.mxu0 %v3047
  %3107 = vmatpush1.bf16.msra.mxu0 %v3046
  %3108 = vmatprep.subr.bf16.mxu0 %v3043
  %3109 = vmatpush1.bf16.msra.mxu0 %v3042
  %3110 = vmatprep.subr.bf16.mxu0 %v3039
  %3111 = vmatpush1.bf16.msra.mxu0 %v3038
  %3112 = vmatprep.subr.bf16.mxu0 %v3035
  %3113 = vmatpush1.bf16.msra.mxu0 %v3034
  %3114 = vmatprep.subr.bf16.mxu0 0
  %3115 = vmatpush2.bf16.msra.mxu0 0
  %3116 = vmatprep.subr.bf16.mxu0 0
  %3117 = vmatpush2.bf16.msra.mxu0 0
  %3118 = vmatprep.subr.bf16.mxu0 0
  %3119 = vmatpush2.bf16.msra.mxu0 0
  %3120 = vmatprep.subr.bf16.mxu0 0
  %3121 = vmatpush2.bf16.msra.mxu0 0
  %3122 = vmatprep.subr.bf16.mxu0 0
  %3123 = vmatpush2.bf16.msra.mxu0 0
  %3124 = vmatprep.subr.bf16.mxu0 0
  %3125 = vmatpush2.bf16.msra.mxu0 0
  %3126 = vmatprep.subr.bf16.mxu0 0
  %3127 = vmatpush2.bf16.msra.mxu0 0
  %3128 = vmatprep.subr.bf16.mxu0 0
  %3129 = vmatpush2.bf16.msra.mxu0 0
  %3130 = vmatprep.mubr.bf16.mxu0 0
  %3131 = vmatmul.mubr.bf16.gmra.mxu0 %v2896
  %v3132 = vpop.f32.mrf.mxu0
  %v3133 = vadd.f32 %v2934, %v3132
  %v3134 = vpop.f32.mrf.mxu0
  %v3135 = vadd.f32 %v2935, %v3134
  %v3136 = vpop.f32.mrf.mxu0
  %v3137 = vpop.f32.mrf.mxu0
  %3138 = vdwg.mxu0
  %3139 = vmatprep.subr.bf16.mxu0 %v3065
  %3140 = vmatpush1.bf16.msra.mxu0 %v3064
  %3141 = vmatprep.subr.bf16.mxu0 %v3061
  %3142 = vmatpush1.bf16.msra.mxu0 %v3060
  %3143 = vmatprep.subr.bf16.mxu0 %v3057
  %3144 = vmatpush1.bf16.msra.mxu0 %v3056
  %3145 = vmatprep.subr.bf16.mxu0 %v3053
  %3146 = vmatpush1.bf16.msra.mxu0 %v3052
  %3147 = vmatprep.subr.bf16.mxu0 %v3049
  %3148 = vmatpush1.bf16.msra.mxu0 %v3048
  %3149 = vmatprep.subr.bf16.mxu0 %v3045
  %3150 = vmatpush1.bf16.msra.mxu0 %v3044
  %3151 = vmatprep.subr.bf16.mxu0 %v3041
  %3152 = vmatpush1.bf16.msra.mxu0 %v3040
  %3153 = vmatprep.subr.bf16.mxu0 %v3037
  %3154 = vmatpush1.bf16.msra.mxu0 %v3036
  %3155 = vmatprep.subr.bf16.mxu0 0
  %3156 = vmatpush2.bf16.msra.mxu0 0
  %3157 = vmatprep.subr.bf16.mxu0 0
  %3158 = vmatpush2.bf16.msra.mxu0 0
  %3159 = vmatprep.subr.bf16.mxu0 0
  %3160 = vmatpush2.bf16.msra.mxu0 0
  %3161 = vmatprep.subr.bf16.mxu0 0
  %3162 = vmatpush2.bf16.msra.mxu0 0
  %3163 = vmatprep.subr.bf16.mxu0 0
  %3164 = vmatpush2.bf16.msra.mxu0 0
  %3165 = vmatprep.subr.bf16.mxu0 0
  %3166 = vmatpush2.bf16.msra.mxu0 0
  %3167 = vmatprep.subr.bf16.mxu0 0
  %3168 = vmatpush2.bf16.msra.mxu0 0
  %3169 = vmatprep.subr.bf16.mxu0 0
  %3170 = vmatpush2.bf16.msra.mxu0 0
  %3171 = vmatprep.mubr.bf16.mxu0 0
  %3172 = vmatmul.mubr.bf16.gmra.mxu0 %v2896
  %v3173 = vpop.f32.mrf.mxu0
  %v3174 = vadd.f32 %v2936, %v3173
  %v3175 = vpop.f32.mrf.mxu0
  %v3176 = vadd.f32 %v2937, %v3175
  %v3177 = vpop.f32.mrf.mxu0
  %v3178 = vpop.f32.mrf.mxu0
  %3179 = vdwg.mxu0
  %v3180 = vxor.u32 %v3133, 2147483648
  %v3181 = vmul.f32 %v3180, 1.442695
  %v3182 = vpow.pop %v3181
  %v3183 = vadd.f32 %v3182, 1.0
  %v3184 = vrcp.pop %v3183
  %v3185 = vmul.f32 1.0, %v3184
  %v3186 = vxor.u32 %v3135, 2147483648
  %v3187 = vmul.f32 %v3186, 1.442695
  %v3188 = vpow.pop %v3187
  %v3189 = vadd.f32 %v3188, 1.0
  %v3190 = vrcp.pop %v3189
  %v3191 = vmul.f32 1.0, %v3190
  %v3192 = vtanh.pop %v3174
  %v3193 = vxor.u32 %v3176, 2147483648
  %v3194 = vmul.f32 %v3193, 1.442695
  %v3195 = vpow.pop %v3194
  %v3196 = vadd.f32 %v3195, 1.0
  %v3197 = vrcp.pop %v3196
  %v3198 = vmul.f32 1.0, %v3197
  %v3199 = vmul.f32 %v3191, %v2893
  %v3200 = vmul.f32 %v3185, %v3192
  %v3201 = vadd.f32 %v3199, %v3200
  %v3202 = vtanh.pop %v3201
  %v3203 = vmul.f32 %v3198, %v3202
  %v3204 = vpack.c.bf16 %v3203, %v3203
  %s3205 = scalar_lea.vmem %s2, 36
  %3206 = vst [vmem:[%s3205] sm:$0xf] %v3204
  %v3207 = vld [vmem:[#allocation4] sm:$0xff]
  %v3208 = vld [vmem:[#allocation4 + $0x8] sm:$0xff]
  %v3209 = vld [vmem:[#allocation4 + $0x10] sm:$0xff]
  %v3210 = vld [vmem:[#allocation4 + $0x18] sm:$0xff]
  %v3211 = vld [vmem:[#allocation4 + $0x20] sm:$0xff]
  %v3212 = vld [vmem:[#allocation4 + $0x28] sm:$0xff]
  %v3213 = vld [vmem:[#allocation4 + $0x30] sm:$0xff]
  %v3214 = vld [vmem:[#allocation4 + $0x38] sm:$0xff]
  %v3215 = vld [vmem:[#allocation4 + $0x40] sm:$0xff]
  %v3216 = vld [vmem:[#allocation4 + $0x48] sm:$0xff]
  %v3217 = vld [vmem:[#allocation4 + $0x50] sm:$0xff]
  %v3218 = vld [vmem:[#allocation4 + $0x58] sm:$0xff]
  %v3219 = vld [vmem:[#allocation4 + $0x60] sm:$0xff]
  %v3220 = vld [vmem:[#allocation4 + $0x68] sm:$0xff]
  %v3221 = vld [vmem:[#allocation4 + $0x70] sm:$0xff]
  %v3222 = vld [vmem:[#allocation4 + $0x78] sm:$0xff]
  %v3223 = vld [vmem:[#allocation4 + $0x80] sm:$0xff]
  %v3224 = vld [vmem:[#allocation4 + $0x88] sm:$0xff]
  %v3225 = vld [vmem:[#allocation4 + $0x90] sm:$0xff]
  %v3226 = vld [vmem:[#allocation4 + $0x98] sm:$0xff]
  %v3227 = vld [vmem:[#allocation4 + $0xa0] sm:$0xff]
  %v3228 = vld [vmem:[#allocation4 + $0xa8] sm:$0xff]
  %v3229 = vld [vmem:[#allocation4 + $0xb0] sm:$0xff]
  %v3230 = vld [vmem:[#allocation4 + $0xb8] sm:$0xff]
  %v3231 = vld [vmem:[#allocation4 + $0xc0] sm:$0xff]
  %v3232 = vld [vmem:[#allocation4 + $0xc8] sm:$0xff]
  %v3233 = vld [vmem:[#allocation4 + $0xd0] sm:$0xff]
  %v3234 = vld [vmem:[#allocation4 + $0xd8] sm:$0xff]
  %v3235 = vld [vmem:[#allocation4 + $0xe0] sm:$0xff]
  %v3236 = vld [vmem:[#allocation4 + $0xe8] sm:$0xff]
  %v3237 = vld [vmem:[#allocation4 + $0xf0] sm:$0xff]
  %v3238 = vld [vmem:[#allocation4 + $0xf8] sm:$0xff]
  %s3239 = scalar_lea.vmem %s0, 160
  %v3240 = vld [vmem:[%s3239] sm:$0xff]
  %v3241 = vld [vmem:[%s3239 + $0x8] sm:$0xff]
  %v3242 = vunpack.c.l.bf16 %v3240
  %v3243 = vunpack.c.h.bf16 %v3240
  %v3244 = vunpack.c.l.bf16 %v3241
  %v3245 = vunpack.c.h.bf16 %v3241
  %v3278 = vunpack.c.l.b16 %v3207
  %v3279 = vunpack.c.h.b16 %v3207
  %v3280 = vunpack.c.l.b16 %v3208
  %v3281 = vunpack.c.h.b16 %v3208
  %v3282 = vunpack.c.l.b16 %v3209
  %v3283 = vunpack.c.h.b16 %v3209
  %v3284 = vunpack.c.l.b16 %v3210
  %v3285 = vunpack.c.h.b16 %v3210
  %v3286 = vunpack.c.l.b16 %v3211
  %v3287 = vunpack.c.h.b16 %v3211
  %v3288 = vunpack.c.l.b16 %v3212
  %v3289 = vunpack.c.h.b16 %v3212
  %v3290 = vunpack.c.l.b16 %v3213
  %v3291 = vunpack.c.h.b16 %v3213
  %v3292 = vunpack.c.l.b16 %v3214
  %v3293 = vunpack.c.h.b16 %v3214
  %v3294 = vunpack.c.l.b16 %v3215
  %v3295 = vunpack.c.h.b16 %v3215
  %v3296 = vunpack.c.l.b16 %v3216
  %v3297 = vunpack.c.h.b16 %v3216
  %v3298 = vunpack.c.l.b16 %v3217
  %v3299 = vunpack.c.h.b16 %v3217
  %v3300 = vunpack.c.l.b16 %v3218
  %v3301 = vunpack.c.h.b16 %v3218
  %v3302 = vunpack.c.l.b16 %v3219
  %v3303 = vunpack.c.h.b16 %v3219
  %v3304 = vunpack.c.l.b16 %v3220
  %v3305 = vunpack.c.h.b16 %v3220
  %v3306 = vunpack.c.l.b16 %v3221
  %v3307 = vunpack.c.h.b16 %v3221
  %v3308 = vunpack.c.l.b16 %v3222
  %v3309 = vunpack.c.h.b16 %v3222
  %v3310 = vunpack.c.l.b16 %v3223
  %v3311 = vunpack.c.h.b16 %v3223
  %v3312 = vunpack.c.l.b16 %v3224
  %v3313 = vunpack.c.h.b16 %v3224
  %v3314 = vunpack.c.l.b16 %v3225
  %v3315 = vunpack.c.h.b16 %v3225
  %v3316 = vunpack.c.l.b16 %v3226
  %v3317 = vunpack.c.h.b16 %v3226
  %v3318 = vunpack.c.l.b16 %v3227
  %v3319 = vunpack.c.h.b16 %v3227
  %v3320 = vunpack.c.l.b16 %v3228
  %v3321 = vunpack.c.h.b16 %v3228
  %v3322 = vunpack.c.l.b16 %v3229
  %v3323 = vunpack.c.h.b16 %v3229
  %v3324 = vunpack.c.l.b16 %v3230
  %v3325 = vunpack.c.h.b16 %v3230
  %v3326 = vunpack.c.l.b16 %v3231
  %v3327 = vunpack.c.h.b16 %v3231
  %v3328 = vunpack.c.l.b16 %v3232
  %v3329 = vunpack.c.h.b16 %v3232
  %v3330 = vunpack.c.l.b16 %v3233
  %v3331 = vunpack.c.h.b16 %v3233
  %v3332 = vunpack.c.l.b16 %v3234
  %v3333 = vunpack.c.h.b16 %v3234
  %v3334 = vunpack.c.l.b16 %v3235
  %v3335 = vunpack.c.h.b16 %v3235
  %v3336 = vunpack.c.l.b16 %v3236
  %v3337 = vunpack.c.h.b16 %v3236
  %v3338 = vunpack.c.l.b16 %v3237
  %v3339 = vunpack.c.h.b16 %v3237
  %v3340 = vunpack.c.l.b16 %v3238
  %v3341 = vunpack.c.h.b16 %v3238
  %v3342 = vpack.c.b16 %v3282, %v3278
  %v3343 = vpack.c.b16 %v3283, %v3279
  %v3344 = vpack.c.b16 %v3284, %v3280
  %v3345 = vpack.c.b16 %v3285, %v3281
  %v3346 = vpack.c.b16 %v3290, %v3286
  %v3347 = vpack.c.b16 %v3291, %v3287
  %v3348 = vpack.c.b16 %v3292, %v3288
  %v3349 = vpack.c.b16 %v3293, %v3289
  %v3350 = vpack.c.b16 %v3298, %v3294
  %v3351 = vpack.c.b16 %v3299, %v3295
  %v3352 = vpack.c.b16 %v3300, %v3296
  %v3353 = vpack.c.b16 %v3301, %v3297
  %v3354 = vpack.c.b16 %v3306, %v3302
  %v3355 = vpack.c.b16 %v3307, %v3303
  %v3356 = vpack.c.b16 %v3308, %v3304
  %v3357 = vpack.c.b16 %v3309, %v3305
  %v3358 = vpack.c.b16 %v3314, %v3310
  %v3359 = vpack.c.b16 %v3315, %v3311
  %v3360 = vpack.c.b16 %v3316, %v3312
  %v3361 = vpack.c.b16 %v3317, %v3313
  %v3362 = vpack.c.b16 %v3322, %v3318
  %v3363 = vpack.c.b16 %v3323, %v3319
  %v3364 = vpack.c.b16 %v3324, %v3320
  %v3365 = vpack.c.b16 %v3325, %v3321
  %v3366 = vpack.c.b16 %v3330, %v3326
  %v3367 = vpack.c.b16 %v3331, %v3327
  %v3368 = vpack.c.b16 %v3332, %v3328
  %v3369 = vpack.c.b16 %v3333, %v3329
  %v3370 = vpack.c.b16 %v3338, %v3334
  %v3371 = vpack.c.b16 %v3339, %v3335
  %v3372 = vpack.c.b16 %v3340, %v3336
  %v3373 = vpack.c.b16 %v3341, %v3337
  %3406 = vmatprep.subr.bf16.mxu0 %v3371
  %3407 = vmatpush1.bf16.msra.mxu0 %v3370
  %3408 = vmatprep.subr.bf16.mxu0 %v3367
  %3409 = vmatpush1.bf16.msra.mxu0 %v3366
  %3410 = vmatprep.subr.bf16.mxu0 %v3363
  %3411 = vmatpush1.bf16.msra.mxu0 %v3362
  %3412 = vmatprep.subr.bf16.mxu0 %v3359
  %3413 = vmatpush1.bf16.msra.mxu0 %v3358
  %3414 = vmatprep.subr.bf16.mxu0 %v3355
  %3415 = vmatpush1.bf16.msra.mxu0 %v3354
  %3416 = vmatprep.subr.bf16.mxu0 %v3351
  %3417 = vmatpush1.bf16.msra.mxu0 %v3350
  %3418 = vmatprep.subr.bf16.mxu0 %v3347
  %3419 = vmatpush1.bf16.msra.mxu0 %v3346
  %3420 = vmatprep.subr.bf16.mxu0 %v3343
  %3421 = vmatpush1.bf16.msra.mxu0 %v3342
  %3422 = vmatprep.subr.bf16.mxu0 0
  %3423 = vmatpush2.bf16.msra.mxu0 0
  %3424 = vmatprep.subr.bf16.mxu0 0
  %3425 = vmatpush2.bf16.msra.mxu0 0
  %3426 = vmatprep.subr.bf16.mxu0 0
  %3427 = vmatpush2.bf16.msra.mxu0 0
  %3428 = vmatprep.subr.bf16.mxu0 0
  %3429 = vmatpush2.bf16.msra.mxu0 0
  %3430 = vmatprep.subr.bf16.mxu0 0
  %3431 = vmatpush2.bf16.msra.mxu0 0
  %3432 = vmatprep.subr.bf16.mxu0 0
  %3433 = vmatpush2.bf16.msra.mxu0 0
  %3434 = vmatprep.subr.bf16.mxu0 0
  %3435 = vmatpush2.bf16.msra.mxu0 0
  %3436 = vmatprep.subr.bf16.mxu0 0
  %3437 = vmatpush2.bf16.msra.mxu0 0
  %3438 = vmatprep.mubr.bf16.mxu0 0
  %3439 = vmatmul.mubr.bf16.gmra.mxu0 %v3204
  %v3440 = vpop.f32.mrf.mxu0
  %v3441 = vadd.f32 %v3242, %v3440
  %v3442 = vpop.f32.mrf.mxu0
  %v3443 = vadd.f32 %v3243, %v3442
  %v3444 = vpop.f32.mrf.mxu0
  %v3445 = vpop.f32.mrf.mxu0
  %3446 = vdwg.mxu0
  %3447 = vmatprep.subr.bf16.mxu0 %v3373
  %3448 = vmatpush1.bf16.msra.mxu0 %v3372
  %3449 = vmatprep.subr.bf16.mxu0 %v3369
  %3450 = vmatpush1.bf16.msra.mxu0 %v3368
  %3451 = vmatprep.subr.bf16.mxu0 %v3365
  %3452 = vmatpush1.bf16.msra.mxu0 %v3364
  %3453 = vmatprep.subr.bf16.mxu0 %v3361
  %3454 = vmatpush1.bf16.msra.mxu0 %v3360
  %3455 = vmatprep.subr.bf16.mxu0 %v3357
  %3456 = vmatpush1.bf16.msra.mxu0 %v3356
  %3457 = vmatprep.subr.bf16.mxu0 %v3353
  %3458 = vmatpush1.bf16.msra.mxu0 %v3352
  %3459 = vmatprep.subr.bf16.mxu0 %v3349
  %3460 = vmatpush1.bf16.msra.mxu0 %v3348
  %3461 = vmatprep.subr.bf16.mxu0 %v3345
  %3462 = vmatpush1.bf16.msra.mxu0 %v3344
  %3463 = vmatprep.subr.bf16.mxu0 0
  %3464 = vmatpush2.bf16.msra.mxu0 0
  %3465 = vmatprep.subr.bf16.mxu0 0
  %3466 = vmatpush2.bf16.msra.mxu0 0
  %3467 = vmatprep.subr.bf16.mxu0 0
  %3468 = vmatpush2.bf16.msra.mxu0 0
  %3469 = vmatprep.subr.bf16.mxu0 0
  %3470 = vmatpush2.bf16.msra.mxu0 0
  %3471 = vmatprep.subr.bf16.mxu0 0
  %3472 = vmatpush2.bf16.msra.mxu0 0
  %3473 = vmatprep.subr.bf16.mxu0 0
  %3474 = vmatpush2.bf16.msra.mxu0 0
  %3475 = vmatprep.subr.bf16.mxu0 0
  %3476 = vmatpush2.bf16.msra.mxu0 0
  %3477 = vmatprep.subr.bf16.mxu0 0
  %3478 = vmatpush2.bf16.msra.mxu0 0
  %3479 = vmatprep.mubr.bf16.mxu0 0
  %3480 = vmatmul.mubr.bf16.gmra.mxu0 %v3204
  %v3481 = vpop.f32.mrf.mxu0
  %v3482 = vadd.f32 %v3244, %v3481
  %v3483 = vpop.f32.mrf.mxu0
  %v3484 = vadd.f32 %v3245, %v3483
  %v3485 = vpop.f32.mrf.mxu0
  %v3486 = vpop.f32.mrf.mxu0
  %3487 = vdwg.mxu0
  %v3488 = vxor.u32 %v3441, 2147483648
  %v3489 = vmul.f32 %v3488, 1.442695
  %v3490 = vpow.pop %v3489
  %v3491 = vadd.f32 %v3490, 1.0
  %v3492 = vrcp.pop %v3491
  %v3493 = vmul.f32 1.0, %v3492
  %v3494 = vxor.u32 %v3443, 2147483648
  %v3495 = vmul.f32 %v3494, 1.442695
  %v3496 = vpow.pop %v3495
  %v3497 = vadd.f32 %v3496, 1.0
  %v3498 = vrcp.pop %v3497
  %v3499 = vmul.f32 1.0, %v3498
  %v3500 = vtanh.pop %v3482
  %v3501 = vxor.u32 %v3484, 2147483648
  %v3502 = vmul.f32 %v3501, 1.442695
  %v3503 = vpow.pop %v3502
  %v3504 = vadd.f32 %v3503, 1.0
  %v3505 = vrcp.pop %v3504
  %v3506 = vmul.f32 1.0, %v3505
  %v3507 = vmul.f32 %v3499, %v3201
  %v3508 = vmul.f32 %v3493, %v3500
  %v3509 = vadd.f32 %v3507, %v3508
  %v3510 = vtanh.pop %v3509
  %v3511 = vmul.f32 %v3506, %v3510
  %v3512 = vpack.c.bf16 %v3511, %v3511
  %s3513 = scalar_lea.vmem %s2, 40
  %3514 = vst [vmem:[%s3513] sm:$0xf] %v3512
  %v3515 = vld [vmem:[#allocation4] sm:$0xff]
  %v3516 = vld [vmem:[#allocation4 + $0x8] sm:$0xff]
  %v3517 = vld [vmem:[#allocation4 + $0x10] sm:$0xff]
  %v3518 = vld [vmem:[#allocation4 + $0x18] sm:$0xff]
  %v3519 = vld [vmem:[#allocation4 + $0x20] sm:$0xff]
  %v3520 = vld [vmem:[#allocation4 + $0x28] sm:$0xff]
  %v3521 = vld [vmem:[#allocation4 + $0x30] sm:$0xff]
  %v3522 = vld [vmem:[#allocation4 + $0x38] sm:$0xff]
  %v3523 = vld [vmem:[#allocation4 + $0x40] sm:$0xff]
  %v3524 = vld [vmem:[#allocation4 + $0x48] sm:$0xff]
  %v3525 = vld [vmem:[#allocation4 + $0x50] sm:$0xff]
  %v3526 = vld [vmem:[#allocation4 + $0x58] sm:$0xff]
  %v3527 = vld [vmem:[#allocation4 + $0x60] sm:$0xff]
  %v3528 = vld [vmem:[#allocation4 + $0x68] sm:$0xff]
  %v3529 = vld [vmem:[#allocation4 + $0x70] sm:$0xff]
  %v3530 = vld [vmem:[#allocation4 + $0x78] sm:$0xff]
  %v3531 = vld [vmem:[#allocation4 + $0x80] sm:$0xff]
  %v3532 = vld [vmem:[#allocation4 + $0x88] sm:$0xff]
  %v3533 = vld [vmem:[#allocation4 + $0x90] sm:$0xff]
  %v3534 = vld [vmem:[#allocation4 + $0x98] sm:$0xff]
  %v3535 = vld [vmem:[#allocation4 + $0xa0] sm:$0xff]
  %v3536 = vld [vmem:[#allocation4 + $0xa8] sm:$0xff]
  %v3537 = vld [vmem:[#allocation4 + $0xb0] sm:$0xff]
  %v3538 = vld [vmem:[#allocation4 + $0xb8] sm:$0xff]
  %v3539 = vld [vmem:[#allocation4 + $0xc0] sm:$0xff]
  %v3540 = vld [vmem:[#allocation4 + $0xc8] sm:$0xff]
  %v3541 = vld [vmem:[#allocation4 + $0xd0] sm:$0xff]
  %v3542 = vld [vmem:[#allocation4 + $0xd8] sm:$0xff]
  %v3543 = vld [vmem:[#allocation4 + $0xe0] sm:$0xff]
  %v3544 = vld [vmem:[#allocation4 + $0xe8] sm:$0xff]
  %v3545 = vld [vmem:[#allocation4 + $0xf0] sm:$0xff]
  %v3546 = vld [vmem:[#allocation4 + $0xf8] sm:$0xff]
  %s3547 = scalar_lea.vmem %s0, 176
  %v3548 = vld [vmem:[%s3547] sm:$0xff]
  %v3549 = vld [vmem:[%s3547 + $0x8] sm:$0xff]
  %v3550 = vunpack.c.l.bf16 %v3548
  %v3551 = vunpack.c.h.bf16 %v3548
  %v3552 = vunpack.c.l.bf16 %v3549
  %v3553 = vunpack.c.h.bf16 %v3549
  %v3586 = vunpack.c.l.b16 %v3515
  %v3587 = vunpack.c.h.b16 %v3515
  %v3588 = vunpack.c.l.b16 %v3516
  %v3589 = vunpack.c.h.b16 %v3516
  %v3590 = vunpack.c.l.b16 %v3517
  %v3591 = vunpack.c.h.b16 %v3517
  %v3592 = vunpack.c.l.b16 %v3518
  %v3593 = vunpack.c.h.b16 %v3518
  %v3594 = vunpack.c.l.b16 %v3519
  %v3595 = vunpack.c.h.b16 %v3519
  %v3596 = vunpack.c.l.b16 %v3520
  %v3597 = vunpack.c.h.b16 %v3520
  %v3598 = vunpack.c.l.b16 %v3521
  %v3599 = vunpack.c.h.b16 %v3521
  %v3600 = vunpack.c.l.b16 %v3522
  %v3601 = vunpack.c.h.b16 %v3522
  %v3602 = vunpack.c.l.b16 %v3523
  %v3603 = vunpack.c.h.b16 %v3523
  %v3604 = vunpack.c.l.b16 %v3524
  %v3605 = vunpack.c.h.b16 %v3524
  %v3606 = vunpack.c.l.b16 %v3525
  %v3607 = vunpack.c.h.b16 %v3525
  %v3608 = vunpack.c.l.b16 %v3526
  %v3609 = vunpack.c.h.b16 %v3526
  %v3610 = vunpack.c.l.b16 %v3527
  %v3611 = vunpack.c.h.b16 %v3527
  %v3612 = vunpack.c.l.b16 %v3528
  %v3613 = vunpack.c.h.b16 %v3528
  %v3614 = vunpack.c.l.b16 %v3529
  %v3615 = vunpack.c.h.b16 %v3529
  %v3616 = vunpack.c.l.b16 %v3530
  %v3617 = vunpack.c.h.b16 %v3530
  %v3618 = vunpack.c.l.b16 %v3531
  %v3619 = vunpack.c.h.b16 %v3531
  %v3620 = vunpack.c.l.b16 %v3532
  %v3621 = vunpack.c.h.b16 %v3532
  %v3622 = vunpack.c.l.b16 %v3533
  %v3623 = vunpack.c.h.b16 %v3533
  %v3624 = vunpack.c.l.b16 %v3534
  %v3625 = vunpack.c.h.b16 %v3534
  %v3626 = vunpack.c.l.b16 %v3535
  %v3627 = vunpack.c.h.b16 %v3535
  %v3628 = vunpack.c.l.b16 %v3536
  %v3629 = vunpack.c.h.b16 %v3536
  %v3630 = vunpack.c.l.b16 %v3537
  %v3631 = vunpack.c.h.b16 %v3537
  %v3632 = vunpack.c.l.b16 %v3538
  %v3633 = vunpack.c.h.b16 %v3538
  %v3634 = vunpack.c.l.b16 %v3539
  %v3635 = vunpack.c.h.b16 %v3539
  %v3636 = vunpack.c.l.b16 %v3540
  %v3637 = vunpack.c.h.b16 %v3540
  %v3638 = vunpack.c.l.b16 %v3541
  %v3639 = vunpack.c.h.b16 %v3541
  %v3640 = vunpack.c.l.b16 %v3542
  %v3641 = vunpack.c.h.b16 %v3542
  %v3642 = vunpack.c.l.b16 %v3543
  %v3643 = vunpack.c.h.b16 %v3543
  %v3644 = vunpack.c.l.b16 %v3544
  %v3645 = vunpack.c.h.b16 %v3544
  %v3646 = vunpack.c.l.b16 %v3545
  %v3647 = vunpack.c.h.b16 %v3545
  %v3648 = vunpack.c.l.b16 %v3546
  %v3649 = vunpack.c.h.b16 %v3546
  %v3650 = vpack.c.b16 %v3590, %v3586
  %v3651 = vpack.c.b16 %v3591, %v3587
  %v3652 = vpack.c.b16 %v3592, %v3588
  %v3653 = vpack.c.b16 %v3593, %v3589
  %v3654 = vpack.c.b16 %v3598, %v3594
  %v3655 = vpack.c.b16 %v3599, %v3595
  %v3656 = vpack.c.b16 %v3600, %v3596
  %v3657 = vpack.c.b16 %v3601, %v3597
  %v3658 = vpack.c.b16 %v3606, %v3602
  %v3659 = vpack.c.b16 %v3607, %v3603
  %v3660 = vpack.c.b16 %v3608, %v3604
  %v3661 = vpack.c.b16 %v3609, %v3605
  %v3662 = vpack.c.b16 %v3614, %v3610
  %v3663 = vpack.c.b16 %v3615, %v3611
  %v3664 = vpack.c.b16 %v3616, %v3612
  %v3665 = vpack.c.b16 %v3617, %v3613
  %v3666 = vpack.c.b16 %v3622, %v3618
  %v3667 = vpack.c.b16 %v3623, %v3619
  %v3668 = vpack.c.b16 %v3624, %v3620
  %v3669 = vpack.c.b16 %v3625, %v3621
  %v3670 = vpack.c.b16 %v3630, %v3626
  %v3671 = vpack.c.b16 %v3631, %v3627
  %v3672 = vpack.c.b16 %v3632, %v3628
  %v3673 = vpack.c.b16 %v3633, %v3629
  %v3674 = vpack.c.b16 %v3638, %v3634
  %v3675 = vpack.c.b16 %v3639, %v3635
  %v3676 = vpack.c.b16 %v3640, %v3636
  %v3677 = vpack.c.b16 %v3641, %v3637
  %v3678 = vpack.c.b16 %v3646, %v3642
  %v3679 = vpack.c.b16 %v3647, %v3643
  %v3680 = vpack.c.b16 %v3648, %v3644
  %v3681 = vpack.c.b16 %v3649, %v3645
  %3714 = vmatprep.subr.bf16.mxu0 %v3679
  %3715 = vmatpush1.bf16.msra.mxu0 %v3678
  %3716 = vmatprep.subr.bf16.mxu0 %v3675
  %3717 = vmatpush1.bf16.msra.mxu0 %v3674
  %3718 = vmatprep.subr.bf16.mxu0 %v3671
  %3719 = vmatpush1.bf16.msra.mxu0 %v3670
  %3720 = vmatprep.subr.bf16.mxu0 %v3667
  %3721 = vmatpush1.bf16.msra.mxu0 %v3666
  %3722 = vmatprep.subr.bf16.mxu0 %v3663
  %3723 = vmatpush1.bf16.msra.mxu0 %v3662
  %3724 = vmatprep.subr.bf16.mxu0 %v3659
  %3725 = vmatpush1.bf16.msra.mxu0 %v3658
  %3726 = vmatprep.subr.bf16.mxu0 %v3655
  %3727 = vmatpush1.bf16.msra.mxu0 %v3654
  %3728 = vmatprep.subr.bf16.mxu0 %v3651
  %3729 = vmatpush1.bf16.msra.mxu0 %v3650
  %3730 = vmatprep.subr.bf16.mxu0 0
  %3731 = vmatpush2.bf16.msra.mxu0 0
  %3732 = vmatprep.subr.bf16.mxu0 0
  %3733 = vmatpush2.bf16.msra.mxu0 0
  %3734 = vmatprep.subr.bf16.mxu0 0
  %3735 = vmatpush2.bf16.msra.mxu0 0
  %3736 = vmatprep.subr.bf16.mxu0 0
  %3737 = vmatpush2.bf16.msra.mxu0 0
  %3738 = vmatprep.subr.bf16.mxu0 0
  %3739 = vmatpush2.bf16.msra.mxu0 0
  %3740 = vmatprep.subr.bf16.mxu0 0
  %3741 = vmatpush2.bf16.msra.mxu0 0
  %3742 = vmatprep.subr.bf16.mxu0 0
  %3743 = vmatpush2.bf16.msra.mxu0 0
  %3744 = vmatprep.subr.bf16.mxu0 0
  %3745 = vmatpush2.bf16.msra.mxu0 0
  %3746 = vmatprep.mubr.bf16.mxu0 0
  %3747 = vmatmul.mubr.bf16.gmra.mxu0 %v3512
  %v3748 = vpop.f32.mrf.mxu0
  %v3749 = vadd.f32 %v3550, %v3748
  %v3750 = vpop.f32.mrf.mxu0
  %v3751 = vadd.f32 %v3551, %v3750
  %v3752 = vpop.f32.mrf.mxu0
  %v3753 = vpop.f32.mrf.mxu0
  %3754 = vdwg.mxu0
  %3755 = vmatprep.subr.bf16.mxu0 %v3681
  %3756 = vmatpush1.bf16.msra.mxu0 %v3680
  %3757 = vmatprep.subr.bf16.mxu0 %v3677
  %3758 = vmatpush1.bf16.msra.mxu0 %v3676
  %3759 = vmatprep.subr.bf16.mxu0 %v3673
  %3760 = vmatpush1.bf16.msra.mxu0 %v3672
  %3761 = vmatprep.subr.bf16.mxu0 %v3669
  %3762 = vmatpush1.bf16.msra.mxu0 %v3668
  %3763 = vmatprep.subr.bf16.mxu0 %v3665
  %3764 = vmatpush1.bf16.msra.mxu0 %v3664
  %3765 = vmatprep.subr.bf16.mxu0 %v3661
  %3766 = vmatpush1.bf16.msra.mxu0 %v3660
  %3767 = vmatprep.subr.bf16.mxu0 %v3657
  %3768 = vmatpush1.bf16.msra.mxu0 %v3656
  %3769 = vmatprep.subr.bf16.mxu0 %v3653
  %3770 = vmatpush1.bf16.msra.mxu0 %v3652
  %3771 = vmatprep.subr.bf16.mxu0 0
  %3772 = vmatpush2.bf16.msra.mxu0 0
  %3773 = vmatprep.subr.bf16.mxu0 0
  %3774 = vmatpush2.bf16.msra.mxu0 0
  %3775 = vmatprep.subr.bf16.mxu0 0
  %3776 = vmatpush2.bf16.msra.mxu0 0
  %3777 = vmatprep.subr.bf16.mxu0 0
  %3778 = vmatpush2.bf16.msra.mxu0 0
  %3779 = vmatprep.subr.bf16.mxu0 0
  %3780 = vmatpush2.bf16.msra.mxu0 0
  %3781 = vmatprep.subr.bf16.mxu0 0
  %3782 = vmatpush2.bf16.msra.mxu0 0
  %3783 = vmatprep.subr.bf16.mxu0 0
  %3784 = vmatpush2.bf16.msra.mxu0 0
  %3785 = vmatprep.subr.bf16.mxu0 0
  %3786 = vmatpush2.bf16.msra.mxu0 0
  %3787 = vmatprep.mubr.bf16.mxu0 0
  %3788 = vmatmul.mubr.bf16.gmra.mxu0 %v3512
  %v3789 = vpop.f32.mrf.mxu0
  %v3790 = vadd.f32 %v3552, %v3789
  %v3791 = vpop.f32.mrf.mxu0
  %v3792 = vadd.f32 %v3553, %v3791
  %v3793 = vpop.f32.mrf.mxu0
  %v3794 = vpop.f32.mrf.mxu0
  %3795 = vdwg.mxu0
  %v3796 = vxor.u32 %v3749, 2147483648
  %v3797 = vmul.f32 %v3796, 1.442695
  %v3798 = vpow.pop %v3797
  %v3799 = vadd.f32 %v3798, 1.0
  %v3800 = vrcp.pop %v3799
  %v3801 = vmul.f32 1.0, %v3800
  %v3802 = vxor.u32 %v3751, 2147483648
  %v3803 = vmul.f32 %v3802, 1.442695
  %v3804 = vpow.pop %v3803
  %v3805 = vadd.f32 %v3804, 1.0
  %v3806 = vrcp.pop %v3805
  %v3807 = vmul.f32 1.0, %v3806
  %v3808 = vtanh.pop %v3790
  %v3809 = vxor.u32 %v3792, 2147483648
  %v3810 = vmul.f32 %v3809, 1.442695
  %v3811 = vpow.pop %v3810
  %v3812 = vadd.f32 %v3811, 1.0
  %v3813 = vrcp.pop %v3812
  %v3814 = vmul.f32 1.0, %v3813
  %v3815 = vmul.f32 %v3807, %v3509
  %v3816 = vmul.f32 %v3801, %v3808
  %v3817 = vadd.f32 %v3815, %v3816
  %v3818 = vtanh.pop %v3817
  %v3819 = vmul.f32 %v3814, %v3818
  %v3820 = vpack.c.bf16 %v3819, %v3819
  %s3821 = scalar_lea.vmem %s2, 44
  %3822 = vst [vmem:[%s3821] sm:$0xf] %v3820
  %v3823 = vld [vmem:[#allocation4] sm:$0xff]
  %v3824 = vld [vmem:[#allocation4 + $0x8] sm:$0xff]
  %v3825 = vld [vmem:[#allocation4 + $0x10] sm:$0xff]
  %v3826 = vld [vmem:[#allocation4 + $0x18] sm:$0xff]
  %v3827 = vld [vmem:[#allocation4 + $0x20] sm:$0xff]
  %v3828 = vld [vmem:[#allocation4 + $0x28] sm:$0xff]
  %v3829 = vld [vmem:[#allocation4 + $0x30] sm:$0xff]
  %v3830 = vld [vmem:[#allocation4 + $0x38] sm:$0xff]
  %v3831 = vld [vmem:[#allocation4 + $0x40] sm:$0xff]
  %v3832 = vld [vmem:[#allocation4 + $0x48] sm:$0xff]
  %v3833 = vld [vmem:[#allocation4 + $0x50] sm:$0xff]
  %v3834 = vld [vmem:[#allocation4 + $0x58] sm:$0xff]
  %v3835 = vld [vmem:[#allocation4 + $0x60] sm:$0xff]
  %v3836 = vld [vmem:[#allocation4 + $0x68] sm:$0xff]
  %v3837 = vld [vmem:[#allocation4 + $0x70] sm:$0xff]
  %v3838 = vld [vmem:[#allocation4 + $0x78] sm:$0xff]
  %v3839 = vld [vmem:[#allocation4 + $0x80] sm:$0xff]
  %v3840 = vld [vmem:[#allocation4 + $0x88] sm:$0xff]
  %v3841 = vld [vmem:[#allocation4 + $0x90] sm:$0xff]
  %v3842 = vld [vmem:[#allocation4 + $0x98] sm:$0xff]
  %v3843 = vld [vmem:[#allocation4 + $0xa0] sm:$0xff]
  %v3844 = vld [vmem:[#allocation4 + $0xa8] sm:$0xff]
  %v3845 = vld [vmem:[#allocation4 + $0xb0] sm:$0xff]
  %v3846 = vld [vmem:[#allocation4 + $0xb8] sm:$0xff]
  %v3847 = vld [vmem:[#allocation4 + $0xc0] sm:$0xff]
  %v3848 = vld [vmem:[#allocation4 + $0xc8] sm:$0xff]
  %v3849 = vld [vmem:[#allocation4 + $0xd0] sm:$0xff]
  %v3850 = vld [vmem:[#allocation4 + $0xd8] sm:$0xff]
  %v3851 = vld [vmem:[#allocation4 + $0xe0] sm:$0xff]
  %v3852 = vld [vmem:[#allocation4 + $0xe8] sm:$0xff]
  %v3853 = vld [vmem:[#allocation4 + $0xf0] sm:$0xff]
  %v3854 = vld [vmem:[#allocation4 + $0xf8] sm:$0xff]
  %s3855 = scalar_lea.vmem %s0, 192
  %v3856 = vld [vmem:[%s3855] sm:$0xff]
  %v3857 = vld [vmem:[%s3855 + $0x8] sm:$0xff]
  %v3858 = vunpack.c.l.bf16 %v3856
  %v3859 = vunpack.c.h.bf16 %v3856
  %v3860 = vunpack.c.l.bf16 %v3857
  %v3861 = vunpack.c.h.bf16 %v3857
  %v3894 = vunpack.c.l.b16 %v3823
  %v3895 = vunpack.c.h.b16 %v3823
  %v3896 = vunpack.c.l.b16 %v3824
  %v3897 = vunpack.c.h.b16 %v3824
  %v3898 = vunpack.c.l.b16 %v3825
  %v3899 = vunpack.c.h.b16 %v3825
  %v3900 = vunpack.c.l.b16 %v3826
  %v3901 = vunpack.c.h.b16 %v3826
  %v3902 = vunpack.c.l.b16 %v3827
  %v3903 = vunpack.c.h.b16 %v3827
  %v3904 = vunpack.c.l.b16 %v3828
  %v3905 = vunpack.c.h.b16 %v3828
  %v3906 = vunpack.c.l.b16 %v3829
  %v3907 = vunpack.c.h.b16 %v3829
  %v3908 = vunpack.c.l.b16 %v3830
  %v3909 = vunpack.c.h.b16 %v3830
  %v3910 = vunpack.c.l.b16 %v3831
  %v3911 = vunpack.c.h.b16 %v3831
  %v3912 = vunpack.c.l.b16 %v3832
  %v3913 = vunpack.c.h.b16 %v3832
  %v3914 = vunpack.c.l.b16 %v3833
  %v3915 = vunpack.c.h.b16 %v3833
  %v3916 = vunpack.c.l.b16 %v3834
  %v3917 = vunpack.c.h.b16 %v3834
  %v3918 = vunpack.c.l.b16 %v3835
  %v3919 = vunpack.c.h.b16 %v3835
  %v3920 = vunpack.c.l.b16 %v3836
  %v3921 = vunpack.c.h.b16 %v3836
  %v3922 = vunpack.c.l.b16 %v3837
  %v3923 = vunpack.c.h.b16 %v3837
  %v3924 = vunpack.c.l.b16 %v3838
  %v3925 = vunpack.c.h.b16 %v3838
  %v3926 = vunpack.c.l.b16 %v3839
  %v3927 = vunpack.c.h.b16 %v3839
  %v3928 = vunpack.c.l.b16 %v3840
  %v3929 = vunpack.c.h.b16 %v3840
  %v3930 = vunpack.c.l.b16 %v3841
  %v3931 = vunpack.c.h.b16 %v3841
  %v3932 = vunpack.c.l.b16 %v3842
  %v3933 = vunpack.c.h.b16 %v3842
  %v3934 = vunpack.c.l.b16 %v3843
  %v3935 = vunpack.c.h.b16 %v3843
  %v3936 = vunpack.c.l.b16 %v3844
  %v3937 = vunpack.c.h.b16 %v3844
  %v3938 = vunpack.c.l.b16 %v3845
  %v3939 = vunpack.c.h.b16 %v3845
  %v3940 = vunpack.c.l.b16 %v3846
  %v3941 = vunpack.c.h.b16 %v3846
  %v3942 = vunpack.c.l.b16 %v3847
  %v3943 = vunpack.c.h.b16 %v3847
  %v3944 = vunpack.c.l.b16 %v3848
  %v3945 = vunpack.c.h.b16 %v3848
  %v3946 = vunpack.c.l.b16 %v3849
  %v3947 = vunpack.c.h.b16 %v3849
  %v3948 = vunpack.c.l.b16 %v3850
  %v3949 = vunpack.c.h.b16 %v3850
  %v3950 = vunpack.c.l.b16 %v3851
  %v3951 = vunpack.c.h.b16 %v3851
  %v3952 = vunpack.c.l.b16 %v3852
  %v3953 = vunpack.c.h.b16 %v3852
  %v3954 = vunpack.c.l.b16 %v3853
  %v3955 = vunpack.c.h.b16 %v3853
  %v3956 = vunpack.c.l.b16 %v3854
  %v3957 = vunpack.c.h.b16 %v3854
  %v3958 = vpack.c.b16 %v3898, %v3894
  %v3959 = vpack.c.b16 %v3899, %v3895
  %v3960 = vpack.c.b16 %v3900, %v3896
  %v3961 = vpack.c.b16 %v3901, %v3897
  %v3962 = vpack.c.b16 %v3906, %v3902
  %v3963 = vpack.c.b16 %v3907, %v3903
  %v3964 = vpack.c.b16 %v3908, %v3904
  %v3965 = vpack.c.b16 %v3909, %v3905
  %v3966 = vpack.c.b16 %v3914, %v3910
  %v3967 = vpack.c.b16 %v3915, %v3911
  %v3968 = vpack.c.b16 %v3916, %v3912
  %v3969 = vpack.c.b16 %v3917, %v3913
  %v3970 = vpack.c.b16 %v3922, %v3918
  %v3971 = vpack.c.b16 %v3923, %v3919
  %v3972 = vpack.c.b16 %v3924, %v3920
  %v3973 = vpack.c.b16 %v3925, %v3921
  %v3974 = vpack.c.b16 %v3930, %v3926
  %v3975 = vpack.c.b16 %v3931, %v3927
  %v3976 = vpack.c.b16 %v3932, %v3928
  %v3977 = vpack.c.b16 %v3933, %v3929
  %v3978 = vpack.c.b16 %v3938, %v3934
  %v3979 = vpack.c.b16 %v3939, %v3935
  %v3980 = vpack.c.b16 %v3940, %v3936
  %v3981 = vpack.c.b16 %v3941, %v3937
  %v3982 = vpack.c.b16 %v3946, %v3942
  %v3983 = vpack.c.b16 %v3947, %v3943
  %v3984 = vpack.c.b16 %v3948, %v3944
  %v3985 = vpack.c.b16 %v3949, %v3945
  %v3986 = vpack.c.b16 %v3954, %v3950
  %v3987 = vpack.c.b16 %v3955, %v3951
  %v3988 = vpack.c.b16 %v3956, %v3952
  %v3989 = vpack.c.b16 %v3957, %v3953
  %4022 = vmatprep.subr.bf16.mxu0 %v3987
  %4023 = vmatpush1.bf16.msra.mxu0 %v3986
  %4024 = vmatprep.subr.bf16.mxu0 %v3983
  %4025 = vmatpush1.bf16.msra.mxu0 %v3982
  %4026 = vmatprep.subr.bf16.mxu0 %v3979
  %4027 = vmatpush1.bf16.msra.mxu0 %v3978
  %4028 = vmatprep.subr.bf16.mxu0 %v3975
  %4029 = vmatpush1.bf16.msra.mxu0 %v3974
  %4030 = vmatprep.subr.bf16.mxu0 %v3971
  %4031 = vmatpush1.bf16.msra.mxu0 %v3970
  %4032 = vmatprep.subr.bf16.mxu0 %v3967
  %4033 = vmatpush1.bf16.msra.mxu0 %v3966
  %4034 = vmatprep.subr.bf16.mxu0 %v3963
  %4035 = vmatpush1.bf16.msra.mxu0 %v3962
  %4036 = vmatprep.subr.bf16.mxu0 %v3959
  %4037 = vmatpush1.bf16.msra.mxu0 %v3958
  %4038 = vmatprep.subr.bf16.mxu0 0
  %4039 = vmatpush2.bf16.msra.mxu0 0
  %4040 = vmatprep.subr.bf16.mxu0 0
  %4041 = vmatpush2.bf16.msra.mxu0 0
  %4042 = vmatprep.subr.bf16.mxu0 0
  %4043 = vmatpush2.bf16.msra.mxu0 0
  %4044 = vmatprep.subr.bf16.mxu0 0
  %4045 = vmatpush2.bf16.msra.mxu0 0
  %4046 = vmatprep.subr.bf16.mxu0 0
  %4047 = vmatpush2.bf16.msra.mxu0 0
  %4048 = vmatprep.subr.bf16.mxu0 0
  %4049 = vmatpush2.bf16.msra.mxu0 0
  %4050 = vmatprep.subr.bf16.mxu0 0
  %4051 = vmatpush2.bf16.msra.mxu0 0
  %4052 = vmatprep.subr.bf16.mxu0 0
  %4053 = vmatpush2.bf16.msra.mxu0 0
  %4054 = vmatprep.mubr.bf16.mxu0 0
  %4055 = vmatmul.mubr.bf16.gmra.mxu0 %v3820
  %v4056 = vpop.f32.mrf.mxu0
  %v4057 = vadd.f32 %v3858, %v4056
  %v4058 = vpop.f32.mrf.mxu0
  %v4059 = vadd.f32 %v3859, %v4058
  %v4060 = vpop.f32.mrf.mxu0
  %v4061 = vpop.f32.mrf.mxu0
  %4062 = vdwg.mxu0
  %4063 = vmatprep.subr.bf16.mxu0 %v3989
  %4064 = vmatpush1.bf16.msra.mxu0 %v3988
  %4065 = vmatprep.subr.bf16.mxu0 %v3985
  %4066 = vmatpush1.bf16.msra.mxu0 %v3984
  %4067 = vmatprep.subr.bf16.mxu0 %v3981
  %4068 = vmatpush1.bf16.msra.mxu0 %v3980
  %4069 = vmatprep.subr.bf16.mxu0 %v3977
  %4070 = vmatpush1.bf16.msra.mxu0 %v3976
  %4071 = vmatprep.subr.bf16.mxu0 %v3973
  %4072 = vmatpush1.bf16.msra.mxu0 %v3972
  %4073 = vmatprep.subr.bf16.mxu0 %v3969
  %4074 = vmatpush1.bf16.msra.mxu0 %v3968
  %4075 = vmatprep.subr.bf16.mxu0 %v3965
  %4076 = vmatpush1.bf16.msra.mxu0 %v3964
  %4077 = vmatprep.subr.bf16.mxu0 %v3961
  %4078 = vmatpush1.bf16.msra.mxu0 %v3960
  %4079 = vmatprep.subr.bf16.mxu0 0
  %4080 = vmatpush2.bf16.msra.mxu0 0
  %4081 = vmatprep.subr.bf16.mxu0 0
  %4082 = vmatpush2.bf16.msra.mxu0 0
  %4083 = vmatprep.subr.bf16.mxu0 0
  %4084 = vmatpush2.bf16.msra.mxu0 0
  %4085 = vmatprep.subr.bf16.mxu0 0
  %4086 = vmatpush2.bf16.msra.mxu0 0
  %4087 = vmatprep.subr.bf16.mxu0 0
  %4088 = vmatpush2.bf16.msra.mxu0 0
  %4089 = vmatprep.subr.bf16.mxu0 0
  %4090 = vmatpush2.bf16.msra.mxu0 0
  %4091 = vmatprep.subr.bf16.mxu0 0
  %4092 = vmatpush2.bf16.msra.mxu0 0
  %4093 = vmatprep.subr.bf16.mxu0 0
  %4094 = vmatpush2.bf16.msra.mxu0 0
  %4095 = vmatprep.mubr.bf16.mxu0 0
  %4096 = vmatmul.mubr.bf16.gmra.mxu0 %v3820
  %v4097 = vpop.f32.mrf.mxu0
  %v4098 = vadd.f32 %v3860, %v4097
  %v4099 = vpop.f32.mrf.mxu0
  %v4100 = vadd.f32 %v3861, %v4099
  %v4101 = vpop.f32.mrf.mxu0
  %v4102 = vpop.f32.mrf.mxu0
  %4103 = vdwg.mxu0
  %v4104 = vxor.u32 %v4057, 2147483648
  %v4105 = vmul.f32 %v4104, 1.442695
  %v4106 = vpow.pop %v4105
  %v4107 = vadd.f32 %v4106, 1.0
  %v4108 = vrcp.pop %v4107
  %v4109 = vmul.f32 1.0, %v4108
  %v4110 = vxor.u32 %v4059, 2147483648
  %v4111 = vmul.f32 %v4110, 1.442695
  %v4112 = vpow.pop %v4111
  %v4113 = vadd.f32 %v4112, 1.0
  %v4114 = vrcp.pop %v4113
  %v4115 = vmul.f32 1.0, %v4114
  %v4116 = vtanh.pop %v4098
  %v4117 = vxor.u32 %v4100, 2147483648
  %v4118 = vmul.f32 %v4117, 1.442695
  %v4119 = vpow.pop %v4118
  %v4120 = vadd.f32 %v4119, 1.0
  %v4121 = vrcp.pop %v4120
  %v4122 = vmul.f32 1.0, %v4121
  %v4123 = vmul.f32 %v4115, %v3817
  %v4124 = vmul.f32 %v4109, %v4116
  %v4125 = vadd.f32 %v4123, %v4124
  %v4126 = vtanh.pop %v4125
  %v4127 = vmul.f32 %v4122, %v4126
  %v4128 = vpack.c.bf16 %v4127, %v4127
  %s4129 = scalar_lea.vmem %s2, 48
  %4130 = vst [vmem:[%s4129] sm:$0xf] %v4128
  %v4131 = vld [vmem:[#allocation4] sm:$0xff]
  %v4132 = vld [vmem:[#allocation4 + $0x8] sm:$0xff]
  %v4133 = vld [vmem:[#allocation4 + $0x10] sm:$0xff]
  %v4134 = vld [vmem:[#allocation4 + $0x18] sm:$0xff]
  %v4135 = vld [vmem:[#allocation4 + $0x20] sm:$0xff]
  %v4136 = vld [vmem:[#allocation4 + $0x28] sm:$0xff]
  %v4137 = vld [vmem:[#allocation4 + $0x30] sm:$0xff]
  %v4138 = vld [vmem:[#allocation4 + $0x38] sm:$0xff]
  %v4139 = vld [vmem:[#allocation4 + $0x40] sm:$0xff]
  %v4140 = vld [vmem:[#allocation4 + $0x48] sm:$0xff]
  %v4141 = vld [vmem:[#allocation4 + $0x50] sm:$0xff]
  %v4142 = vld [vmem:[#allocation4 + $0x58] sm:$0xff]
  %v4143 = vld [vmem:[#allocation4 + $0x60] sm:$0xff]
  %v4144 = vld [vmem:[#allocation4 + $0x68] sm:$0xff]
  %v4145 = vld [vmem:[#allocation4 + $0x70] sm:$0xff]
  %v4146 = vld [vmem:[#allocation4 + $0x78] sm:$0xff]
  %v4147 = vld [vmem:[#allocation4 + $0x80] sm:$0xff]
  %v4148 = vld [vmem:[#allocation4 + $0x88] sm:$0xff]
  %v4149 = vld [vmem:[#allocation4 + $0x90] sm:$0xff]
  %v4150 = vld [vmem:[#allocation4 + $0x98] sm:$0xff]
  %v4151 = vld [vmem:[#allocation4 + $0xa0] sm:$0xff]
  %v4152 = vld [vmem:[#allocation4 + $0xa8] sm:$0xff]
  %v4153 = vld [vmem:[#allocation4 + $0xb0] sm:$0xff]
  %v4154 = vld [vmem:[#allocation4 + $0xb8] sm:$0xff]
  %v4155 = vld [vmem:[#allocation4 + $0xc0] sm:$0xff]
  %v4156 = vld [vmem:[#allocation4 + $0xc8] sm:$0xff]
  %v4157 = vld [vmem:[#allocation4 + $0xd0] sm:$0xff]
  %v4158 = vld [vmem:[#allocation4 + $0xd8] sm:$0xff]
  %v4159 = vld [vmem:[#allocation4 + $0xe0] sm:$0xff]
  %v4160 = vld [vmem:[#allocation4 + $0xe8] sm:$0xff]
  %v4161 = vld [vmem:[#allocation4 + $0xf0] sm:$0xff]
  %v4162 = vld [vmem:[#allocation4 + $0xf8] sm:$0xff]
  %s4163 = scalar_lea.vmem %s0, 208
  %v4164 = vld [vmem:[%s4163] sm:$0xff]
  %v4165 = vld [vmem:[%s4163 + $0x8] sm:$0xff]
  %v4166 = vunpack.c.l.bf16 %v4164
  %v4167 = vunpack.c.h.bf16 %v4164
  %v4168 = vunpack.c.l.bf16 %v4165
  %v4169 = vunpack.c.h.bf16 %v4165
  %v4202 = vunpack.c.l.b16 %v4131
  %v4203 = vunpack.c.h.b16 %v4131
  %v4204 = vunpack.c.l.b16 %v4132
  %v4205 = vunpack.c.h.b16 %v4132
  %v4206 = vunpack.c.l.b16 %v4133
  %v4207 = vunpack.c.h.b16 %v4133
  %v4208 = vunpack.c.l.b16 %v4134
  %v4209 = vunpack.c.h.b16 %v4134
  %v4210 = vunpack.c.l.b16 %v4135
  %v4211 = vunpack.c.h.b16 %v4135
  %v4212 = vunpack.c.l.b16 %v4136
  %v4213 = vunpack.c.h.b16 %v4136
  %v4214 = vunpack.c.l.b16 %v4137
  %v4215 = vunpack.c.h.b16 %v4137
  %v4216 = vunpack.c.l.b16 %v4138
  %v4217 = vunpack.c.h.b16 %v4138
  %v4218 = vunpack.c.l.b16 %v4139
  %v4219 = vunpack.c.h.b16 %v4139
  %v4220 = vunpack.c.l.b16 %v4140
  %v4221 = vunpack.c.h.b16 %v4140
  %v4222 = vunpack.c.l.b16 %v4141
  %v4223 = vunpack.c.h.b16 %v4141
  %v4224 = vunpack.c.l.b16 %v4142
  %v4225 = vunpack.c.h.b16 %v4142
  %v4226 = vunpack.c.l.b16 %v4143
  %v4227 = vunpack.c.h.b16 %v4143
  %v4228 = vunpack.c.l.b16 %v4144
  %v4229 = vunpack.c.h.b16 %v4144
  %v4230 = vunpack.c.l.b16 %v4145
  %v4231 = vunpack.c.h.b16 %v4145
  %v4232 = vunpack.c.l.b16 %v4146
  %v4233 = vunpack.c.h.b16 %v4146
  %v4234 = vunpack.c.l.b16 %v4147
  %v4235 = vunpack.c.h.b16 %v4147
  %v4236 = vunpack.c.l.b16 %v4148
  %v4237 = vunpack.c.h.b16 %v4148
  %v4238 = vunpack.c.l.b16 %v4149
  %v4239 = vunpack.c.h.b16 %v4149
  %v4240 = vunpack.c.l.b16 %v4150
  %v4241 = vunpack.c.h.b16 %v4150
  %v4242 = vunpack.c.l.b16 %v4151
  %v4243 = vunpack.c.h.b16 %v4151
  %v4244 = vunpack.c.l.b16 %v4152
  %v4245 = vunpack.c.h.b16 %v4152
  %v4246 = vunpack.c.l.b16 %v4153
  %v4247 = vunpack.c.h.b16 %v4153
  %v4248 = vunpack.c.l.b16 %v4154
  %v4249 = vunpack.c.h.b16 %v4154
  %v4250 = vunpack.c.l.b16 %v4155
  %v4251 = vunpack.c.h.b16 %v4155
  %v4252 = vunpack.c.l.b16 %v4156
  %v4253 = vunpack.c.h.b16 %v4156
  %v4254 = vunpack.c.l.b16 %v4157
  %v4255 = vunpack.c.h.b16 %v4157
  %v4256 = vunpack.c.l.b16 %v4158
  %v4257 = vunpack.c.h.b16 %v4158
  %v4258 = vunpack.c.l.b16 %v4159
  %v4259 = vunpack.c.h.b16 %v4159
  %v4260 = vunpack.c.l.b16 %v4160
  %v4261 = vunpack.c.h.b16 %v4160
  %v4262 = vunpack.c.l.b16 %v4161
  %v4263 = vunpack.c.h.b16 %v4161
  %v4264 = vunpack.c.l.b16 %v4162
  %v4265 = vunpack.c.h.b16 %v4162
  %v4266 = vpack.c.b16 %v4206, %v4202
  %v4267 = vpack.c.b16 %v4207, %v4203
  %v4268 = vpack.c.b16 %v4208, %v4204
  %v4269 = vpack.c.b16 %v4209, %v4205
  %v4270 = vpack.c.b16 %v4214, %v4210
  %v4271 = vpack.c.b16 %v4215, %v4211
  %v4272 = vpack.c.b16 %v4216, %v4212
  %v4273 = vpack.c.b16 %v4217, %v4213
  %v4274 = vpack.c.b16 %v4222, %v4218
  %v4275 = vpack.c.b16 %v4223, %v4219
  %v4276 = vpack.c.b16 %v4224, %v4220
  %v4277 = vpack.c.b16 %v4225, %v4221
  %v4278 = vpack.c.b16 %v4230, %v4226
  %v4279 = vpack.c.b16 %v4231, %v4227
  %v4280 = vpack.c.b16 %v4232, %v4228
  %v4281 = vpack.c.b16 %v4233, %v4229
  %v4282 = vpack.c.b16 %v4238, %v4234
  %v4283 = vpack.c.b16 %v4239, %v4235
  %v4284 = vpack.c.b16 %v4240, %v4236
  %v4285 = vpack.c.b16 %v4241, %v4237
  %v4286 = vpack.c.b16 %v4246, %v4242
  %v4287 = vpack.c.b16 %v4247, %v4243
  %v4288 = vpack.c.b16 %v4248, %v4244
  %v4289 = vpack.c.b16 %v4249, %v4245
  %v4290 = vpack.c.b16 %v4254, %v4250
  %v4291 = vpack.c.b16 %v4255, %v4251
  %v4292 = vpack.c.b16 %v4256, %v4252
  %v4293 = vpack.c.b16 %v4257, %v4253
  %v4294 = vpack.c.b16 %v4262, %v4258
  %v4295 = vpack.c.b16 %v4263, %v4259
  %v4296 = vpack.c.b16 %v4264, %v4260
  %v4297 = vpack.c.b16 %v4265, %v4261
  %4330 = vmatprep.subr.bf16.mxu0 %v4295
  %4331 = vmatpush1.bf16.msra.mxu0 %v4294
  %4332 = vmatprep.subr.bf16.mxu0 %v4291
  %4333 = vmatpush1.bf16.msra.mxu0 %v4290
  %4334 = vmatprep.subr.bf16.mxu0 %v4287
  %4335 = vmatpush1.bf16.msra.mxu0 %v4286
  %4336 = vmatprep.subr.bf16.mxu0 %v4283
  %4337 = vmatpush1.bf16.msra.mxu0 %v4282
  %4338 = vmatprep.subr.bf16.mxu0 %v4279
  %4339 = vmatpush1.bf16.msra.mxu0 %v4278
  %4340 = vmatprep.subr.bf16.mxu0 %v4275
  %4341 = vmatpush1.bf16.msra.mxu0 %v4274
  %4342 = vmatprep.subr.bf16.mxu0 %v4271
  %4343 = vmatpush1.bf16.msra.mxu0 %v4270
  %4344 = vmatprep.subr.bf16.mxu0 %v4267
  %4345 = vmatpush1.bf16.msra.mxu0 %v4266
  %4346 = vmatprep.subr.bf16.mxu0 0
  %4347 = vmatpush2.bf16.msra.mxu0 0
  %4348 = vmatprep.subr.bf16.mxu0 0
  %4349 = vmatpush2.bf16.msra.mxu0 0
  %4350 = vmatprep.subr.bf16.mxu0 0
  %4351 = vmatpush2.bf16.msra.mxu0 0
  %4352 = vmatprep.subr.bf16.mxu0 0
  %4353 = vmatpush2.bf16.msra.mxu0 0
  %4354 = vmatprep.subr.bf16.mxu0 0
  %4355 = vmatpush2.bf16.msra.mxu0 0
  %4356 = vmatprep.subr.bf16.mxu0 0
  %4357 = vmatpush2.bf16.msra.mxu0 0
  %4358 = vmatprep.subr.bf16.mxu0 0
  %4359 = vmatpush2.bf16.msra.mxu0 0
  %4360 = vmatprep.subr.bf16.mxu0 0
  %4361 = vmatpush2.bf16.msra.mxu0 0
  %4362 = vmatprep.mubr.bf16.mxu0 0
  %4363 = vmatmul.mubr.bf16.gmra.mxu0 %v4128
  %v4364 = vpop.f32.mrf.mxu0
  %v4365 = vadd.f32 %v4166, %v4364
  %v4366 = vpop.f32.mrf.mxu0
  %v4367 = vadd.f32 %v4167, %v4366
  %v4368 = vpop.f32.mrf.mxu0
  %v4369 = vpop.f32.mrf.mxu0
  %4370 = vdwg.mxu0
  %4371 = vmatprep.subr.bf16.mxu0 %v4297
  %4372 = vmatpush1.bf16.msra.mxu0 %v4296
  %4373 = vmatprep.subr.bf16.mxu0 %v4293
  %4374 = vmatpush1.bf16.msra.mxu0 %v4292
  %4375 = vmatprep.subr.bf16.mxu0 %v4289
  %4376 = vmatpush1.bf16.msra.mxu0 %v4288
  %4377 = vmatprep.subr.bf16.mxu0 %v4285
  %4378 = vmatpush1.bf16.msra.mxu0 %v4284
  %4379 = vmatprep.subr.bf16.mxu0 %v4281
  %4380 = vmatpush1.bf16.msra.mxu0 %v4280
  %4381 = vmatprep.subr.bf16.mxu0 %v4277
  %4382 = vmatpush1.bf16.msra.mxu0 %v4276
  %4383 = vmatprep.subr.bf16.mxu0 %v4273
  %4384 = vmatpush1.bf16.msra.mxu0 %v4272
  %4385 = vmatprep.subr.bf16.mxu0 %v4269
  %4386 = vmatpush1.bf16.msra.mxu0 %v4268
  %4387 = vmatprep.subr.bf16.mxu0 0
  %4388 = vmatpush2.bf16.msra.mxu0 0
  %4389 = vmatprep.subr.bf16.mxu0 0
  %4390 = vmatpush2.bf16.msra.mxu0 0
  %4391 = vmatprep.subr.bf16.mxu0 0
  %4392 = vmatpush2.bf16.msra.mxu0 0
  %4393 = vmatprep.subr.bf16.mxu0 0
  %4394 = vmatpush2.bf16.msra.mxu0 0
  %4395 = vmatprep.subr.bf16.mxu0 0
  %4396 = vmatpush2.bf16.msra.mxu0 0
  %4397 = vmatprep.subr.bf16.mxu0 0
  %4398 = vmatpush2.bf16.msra.mxu0 0
  %4399 = vmatprep.subr.bf16.mxu0 0
  %4400 = vmatpush2.bf16.msra.mxu0 0
  %4401 = vmatprep.subr.bf16.mxu0 0
  %4402 = vmatpush2.bf16.msra.mxu0 0
  %4403 = vmatprep.mubr.bf16.mxu0 0
  %4404 = vmatmul.mubr.bf16.gmra.mxu0 %v4128
  %v4405 = vpop.f32.mrf.mxu0
  %v4406 = vadd.f32 %v4168, %v4405
  %v4407 = vpop.f32.mrf.mxu0
  %v4408 = vadd.f32 %v4169, %v4407
  %v4409 = vpop.f32.mrf.mxu0
  %v4410 = vpop.f32.mrf.mxu0
  %4411 = vdwg.mxu0
  %v4412 = vxor.u32 %v4365, 2147483648
  %v4413 = vmul.f32 %v4412, 1.442695
  %v4414 = vpow.pop %v4413
  %v4415 = vadd.f32 %v4414, 1.0
  %v4416 = vrcp.pop %v4415
  %v4417 = vmul.f32 1.0, %v4416
  %v4418 = vxor.u32 %v4367, 2147483648
  %v4419 = vmul.f32 %v4418, 1.442695
  %v4420 = vpow.pop %v4419
  %v4421 = vadd.f32 %v4420, 1.0
  %v4422 = vrcp.pop %v4421
  %v4423 = vmul.f32 1.0, %v4422
  %v4424 = vtanh.pop %v4406
  %v4425 = vxor.u32 %v4408, 2147483648
  %v4426 = vmul.f32 %v4425, 1.442695
  %v4427 = vpow.pop %v4426
  %v4428 = vadd.f32 %v4427, 1.0
  %v4429 = vrcp.pop %v4428
  %v4430 = vmul.f32 1.0, %v4429
  %v4431 = vmul.f32 %v4423, %v4125
  %v4432 = vmul.f32 %v4417, %v4424
  %v4433 = vadd.f32 %v4431, %v4432
  %v4434 = vtanh.pop %v4433
  %v4435 = vmul.f32 %v4430, %v4434
  %v4436 = vpack.c.bf16 %v4435, %v4435
  %s4437 = scalar_lea.vmem %s2, 52
  %4438 = vst [vmem:[%s4437] sm:$0xf] %v4436
  %v4439 = vld [vmem:[#allocation4] sm:$0xff]
  %v4440 = vld [vmem:[#allocation4 + $0x8] sm:$0xff]
  %v4441 = vld [vmem:[#allocation4 + $0x10] sm:$0xff]
  %v4442 = vld [vmem:[#allocation4 + $0x18] sm:$0xff]
  %v4443 = vld [vmem:[#allocation4 + $0x20] sm:$0xff]
  %v4444 = vld [vmem:[#allocation4 + $0x28] sm:$0xff]
  %v4445 = vld [vmem:[#allocation4 + $0x30] sm:$0xff]
  %v4446 = vld [vmem:[#allocation4 + $0x38] sm:$0xff]
  %v4447 = vld [vmem:[#allocation4 + $0x40] sm:$0xff]
  %v4448 = vld [vmem:[#allocation4 + $0x48] sm:$0xff]
  %v4449 = vld [vmem:[#allocation4 + $0x50] sm:$0xff]
  %v4450 = vld [vmem:[#allocation4 + $0x58] sm:$0xff]
  %v4451 = vld [vmem:[#allocation4 + $0x60] sm:$0xff]
  %v4452 = vld [vmem:[#allocation4 + $0x68] sm:$0xff]
  %v4453 = vld [vmem:[#allocation4 + $0x70] sm:$0xff]
  %v4454 = vld [vmem:[#allocation4 + $0x78] sm:$0xff]
  %v4455 = vld [vmem:[#allocation4 + $0x80] sm:$0xff]
  %v4456 = vld [vmem:[#allocation4 + $0x88] sm:$0xff]
  %v4457 = vld [vmem:[#allocation4 + $0x90] sm:$0xff]
  %v4458 = vld [vmem:[#allocation4 + $0x98] sm:$0xff]
  %v4459 = vld [vmem:[#allocation4 + $0xa0] sm:$0xff]
  %v4460 = vld [vmem:[#allocation4 + $0xa8] sm:$0xff]
  %v4461 = vld [vmem:[#allocation4 + $0xb0] sm:$0xff]
  %v4462 = vld [vmem:[#allocation4 + $0xb8] sm:$0xff]
  %v4463 = vld [vmem:[#allocation4 + $0xc0] sm:$0xff]
  %v4464 = vld [vmem:[#allocation4 + $0xc8] sm:$0xff]
  %v4465 = vld [vmem:[#allocation4 + $0xd0] sm:$0xff]
  %v4466 = vld [vmem:[#allocation4 + $0xd8] sm:$0xff]
  %v4467 = vld [vmem:[#allocation4 + $0xe0] sm:$0xff]
  %v4468 = vld [vmem:[#allocation4 + $0xe8] sm:$0xff]
  %v4469 = vld [vmem:[#allocation4 + $0xf0] sm:$0xff]
  %v4470 = vld [vmem:[#allocation4 + $0xf8] sm:$0xff]
  %s4471 = scalar_lea.vmem %s0, 224
  %v4472 = vld [vmem:[%s4471] sm:$0xff]
  %v4473 = vld [vmem:[%s4471 + $0x8] sm:$0xff]
  %v4474 = vunpack.c.l.bf16 %v4472
  %v4475 = vunpack.c.h.bf16 %v4472
  %v4476 = vunpack.c.l.bf16 %v4473
  %v4477 = vunpack.c.h.bf16 %v4473
  %v4510 = vunpack.c.l.b16 %v4439
  %v4511 = vunpack.c.h.b16 %v4439
  %v4512 = vunpack.c.l.b16 %v4440
  %v4513 = vunpack.c.h.b16 %v4440
  %v4514 = vunpack.c.l.b16 %v4441
  %v4515 = vunpack.c.h.b16 %v4441
  %v4516 = vunpack.c.l.b16 %v4442
  %v4517 = vunpack.c.h.b16 %v4442
  %v4518 = vunpack.c.l.b16 %v4443
  %v4519 = vunpack.c.h.b16 %v4443
  %v4520 = vunpack.c.l.b16 %v4444
  %v4521 = vunpack.c.h.b16 %v4444
  %v4522 = vunpack.c.l.b16 %v4445
  %v4523 = vunpack.c.h.b16 %v4445
  %v4524 = vunpack.c.l.b16 %v4446
  %v4525 = vunpack.c.h.b16 %v4446
  %v4526 = vunpack.c.l.b16 %v4447
  %v4527 = vunpack.c.h.b16 %v4447
  %v4528 = vunpack.c.l.b16 %v4448
  %v4529 = vunpack.c.h.b16 %v4448
  %v4530 = vunpack.c.l.b16 %v4449
  %v4531 = vunpack.c.h.b16 %v4449
  %v4532 = vunpack.c.l.b16 %v4450
  %v4533 = vunpack.c.h.b16 %v4450
  %v4534 = vunpack.c.l.b16 %v4451
  %v4535 = vunpack.c.h.b16 %v4451
  %v4536 = vunpack.c.l.b16 %v4452
  %v4537 = vunpack.c.h.b16 %v4452
  %v4538 = vunpack.c.l.b16 %v4453
  %v4539 = vunpack.c.h.b16 %v4453
  %v4540 = vunpack.c.l.b16 %v4454
  %v4541 = vunpack.c.h.b16 %v4454
  %v4542 = vunpack.c.l.b16 %v4455
  %v4543 = vunpack.c.h.b16 %v4455
  %v4544 = vunpack.c.l.b16 %v4456
  %v4545 = vunpack.c.h.b16 %v4456
  %v4546 = vunpack.c.l.b16 %v4457
  %v4547 = vunpack.c.h.b16 %v4457
  %v4548 = vunpack.c.l.b16 %v4458
  %v4549 = vunpack.c.h.b16 %v4458
  %v4550 = vunpack.c.l.b16 %v4459
  %v4551 = vunpack.c.h.b16 %v4459
  %v4552 = vunpack.c.l.b16 %v4460
  %v4553 = vunpack.c.h.b16 %v4460
  %v4554 = vunpack.c.l.b16 %v4461
  %v4555 = vunpack.c.h.b16 %v4461
  %v4556 = vunpack.c.l.b16 %v4462
  %v4557 = vunpack.c.h.b16 %v4462
  %v4558 = vunpack.c.l.b16 %v4463
  %v4559 = vunpack.c.h.b16 %v4463
  %v4560 = vunpack.c.l.b16 %v4464
  %v4561 = vunpack.c.h.b16 %v4464
  %v4562 = vunpack.c.l.b16 %v4465
  %v4563 = vunpack.c.h.b16 %v4465
  %v4564 = vunpack.c.l.b16 %v4466
  %v4565 = vunpack.c.h.b16 %v4466
  %v4566 = vunpack.c.l.b16 %v4467
  %v4567 = vunpack.c.h.b16 %v4467
  %v4568 = vunpack.c.l.b16 %v4468
  %v4569 = vunpack.c.h.b16 %v4468
  %v4570 = vunpack.c.l.b16 %v4469
  %v4571 = vunpack.c.h.b16 %v4469
  %v4572 = vunpack.c.l.b16 %v4470
  %v4573 = vunpack.c.h.b16 %v4470
  %v4574 = vpack.c.b16 %v4514, %v4510
  %v4575 = vpack.c.b16 %v4515, %v4511
  %v4576 = vpack.c.b16 %v4516, %v4512
  %v4577 = vpack.c.b16 %v4517, %v4513
  %v4578 = vpack.c.b16 %v4522, %v4518
  %v4579 = vpack.c.b16 %v4523, %v4519
  %v4580 = vpack.c.b16 %v4524, %v4520
  %v4581 = vpack.c.b16 %v4525, %v4521
  %v4582 = vpack.c.b16 %v4530, %v4526
  %v4583 = vpack.c.b16 %v4531, %v4527
  %v4584 = vpack.c.b16 %v4532, %v4528
  %v4585 = vpack.c.b16 %v4533, %v4529
  %v4586 = vpack.c.b16 %v4538, %v4534
  %v4587 = vpack.c.b16 %v4539, %v4535
  %v4588 = vpack.c.b16 %v4540, %v4536
  %v4589 = vpack.c.b16 %v4541, %v4537
  %v4590 = vpack.c.b16 %v4546, %v4542
  %v4591 = vpack.c.b16 %v4547, %v4543
  %v4592 = vpack.c.b16 %v4548, %v4544
  %v4593 = vpack.c.b16 %v4549, %v4545
  %v4594 = vpack.c.b16 %v4554, %v4550
  %v4595 = vpack.c.b16 %v4555, %v4551
  %v4596 = vpack.c.b16 %v4556, %v4552
  %v4597 = vpack.c.b16 %v4557, %v4553
  %v4598 = vpack.c.b16 %v4562, %v4558
  %v4599 = vpack.c.b16 %v4563, %v4559
  %v4600 = vpack.c.b16 %v4564, %v4560
  %v4601 = vpack.c.b16 %v4565, %v4561
  %v4602 = vpack.c.b16 %v4570, %v4566
  %v4603 = vpack.c.b16 %v4571, %v4567
  %v4604 = vpack.c.b16 %v4572, %v4568
  %v4605 = vpack.c.b16 %v4573, %v4569
  %4638 = vmatprep.subr.bf16.mxu0 %v4603
  %4639 = vmatpush1.bf16.msra.mxu0 %v4602
  %4640 = vmatprep.subr.bf16.mxu0 %v4599
  %4641 = vmatpush1.bf16.msra.mxu0 %v4598
  %4642 = vmatprep.subr.bf16.mxu0 %v4595
  %4643 = vmatpush1.bf16.msra.mxu0 %v4594
  %4644 = vmatprep.subr.bf16.mxu0 %v4591
  %4645 = vmatpush1.bf16.msra.mxu0 %v4590
  %4646 = vmatprep.subr.bf16.mxu0 %v4587
  %4647 = vmatpush1.bf16.msra.mxu0 %v4586
  %4648 = vmatprep.subr.bf16.mxu0 %v4583
  %4649 = vmatpush1.bf16.msra.mxu0 %v4582
  %4650 = vmatprep.subr.bf16.mxu0 %v4579
  %4651 = vmatpush1.bf16.msra.mxu0 %v4578
  %4652 = vmatprep.subr.bf16.mxu0 %v4575
  %4653 = vmatpush1.bf16.msra.mxu0 %v4574
  %4654 = vmatprep.subr.bf16.mxu0 0
  %4655 = vmatpush2.bf16.msra.mxu0 0
  %4656 = vmatprep.subr.bf16.mxu0 0
  %4657 = vmatpush2.bf16.msra.mxu0 0
  %4658 = vmatprep.subr.bf16.mxu0 0
  %4659 = vmatpush2.bf16.msra.mxu0 0
  %4660 = vmatprep.subr.bf16.mxu0 0
  %4661 = vmatpush2.bf16.msra.mxu0 0
  %4662 = vmatprep.subr.bf16.mxu0 0
  %4663 = vmatpush2.bf16.msra.mxu0 0
  %4664 = vmatprep.subr.bf16.mxu0 0
  %4665 = vmatpush2.bf16.msra.mxu0 0
  %4666 = vmatprep.subr.bf16.mxu0 0
  %4667 = vmatpush2.bf16.msra.mxu0 0
  %4668 = vmatprep.subr.bf16.mxu0 0
  %4669 = vmatpush2.bf16.msra.mxu0 0
  %4670 = vmatprep.mubr.bf16.mxu0 0
  %4671 = vmatmul.mubr.bf16.gmra.mxu0 %v4436
  %v4672 = vpop.f32.mrf.mxu0
  %v4673 = vadd.f32 %v4474, %v4672
  %v4674 = vpop.f32.mrf.mxu0
  %v4675 = vadd.f32 %v4475, %v4674
  %v4676 = vpop.f32.mrf.mxu0
  %v4677 = vpop.f32.mrf.mxu0
  %4678 = vdwg.mxu0
  %4679 = vmatprep.subr.bf16.mxu0 %v4605
  %4680 = vmatpush1.bf16.msra.mxu0 %v4604
  %4681 = vmatprep.subr.bf16.mxu0 %v4601
  %4682 = vmatpush1.bf16.msra.mxu0 %v4600
  %4683 = vmatprep.subr.bf16.mxu0 %v4597
  %4684 = vmatpush1.bf16.msra.mxu0 %v4596
  %4685 = vmatprep.subr.bf16.mxu0 %v4593
  %4686 = vmatpush1.bf16.msra.mxu0 %v4592
  %4687 = vmatprep.subr.bf16.mxu0 %v4589
  %4688 = vmatpush1.bf16.msra.mxu0 %v4588
  %4689 = vmatprep.subr.bf16.mxu0 %v4585
  %4690 = vmatpush1.bf16.msra.mxu0 %v4584
  %4691 = vmatprep.subr.bf16.mxu0 %v4581
  %4692 = vmatpush1.bf16.msra.mxu0 %v4580
  %4693 = vmatprep.subr.bf16.mxu0 %v4577
  %4694 = vmatpush1.bf16.msra.mxu0 %v4576
  %4695 = vmatprep.subr.bf16.mxu0 0
  %4696 = vmatpush2.bf16.msra.mxu0 0
  %4697 = vmatprep.subr.bf16.mxu0 0
  %4698 = vmatpush2.bf16.msra.mxu0 0
  %4699 = vmatprep.subr.bf16.mxu0 0
  %4700 = vmatpush2.bf16.msra.mxu0 0
  %4701 = vmatprep.subr.bf16.mxu0 0
  %4702 = vmatpush2.bf16.msra.mxu0 0
  %4703 = vmatprep.subr.bf16.mxu0 0
  %4704 = vmatpush2.bf16.msra.mxu0 0
  %4705 = vmatprep.subr.bf16.mxu0 0
  %4706 = vmatpush2.bf16.msra.mxu0 0
  %4707 = vmatprep.subr.bf16.mxu0 0
  %4708 = vmatpush2.bf16.msra.mxu0 0
  %4709 = vmatprep.subr.bf16.mxu0 0
  %4710 = vmatpush2.bf16.msra.mxu0 0
  %4711 = vmatprep.mubr.bf16.mxu0 0
  %4712 = vmatmul.mubr.bf16.gmra.mxu0 %v4436
  %v4713 = vpop.f32.mrf.mxu0
  %v4714 = vadd.f32 %v4476, %v4713
  %v4715 = vpop.f32.mrf.mxu0
  %v4716 = vadd.f32 %v4477, %v4715
  %v4717 = vpop.f32.mrf.mxu0
  %v4718 = vpop.f32.mrf.mxu0
  %4719 = vdwg.mxu0
  %v4720 = vxor.u32 %v4673, 2147483648
  %v4721 = vmul.f32 %v4720, 1.442695
  %v4722 = vpow.pop %v4721
  %v4723 = vadd.f32 %v4722, 1.0
  %v4724 = vrcp.pop %v4723
  %v4725 = vmul.f32 1.0, %v4724
  %v4726 = vxor.u32 %v4675, 2147483648
  %v4727 = vmul.f32 %v4726, 1.442695
  %v4728 = vpow.pop %v4727
  %v4729 = vadd.f32 %v4728, 1.0
  %v4730 = vrcp.pop %v4729
  %v4731 = vmul.f32 1.0, %v4730
  %v4732 = vtanh.pop %v4714
  %v4733 = vxor.u32 %v4716, 2147483648
  %v4734 = vmul.f32 %v4733, 1.442695
  %v4735 = vpow.pop %v4734
  %v4736 = vadd.f32 %v4735, 1.0
  %v4737 = vrcp.pop %v4736
  %v4738 = vmul.f32 1.0, %v4737
  %v4739 = vmul.f32 %v4731, %v4433
  %v4740 = vmul.f32 %v4725, %v4732
  %v4741 = vadd.f32 %v4739, %v4740
  %v4742 = vtanh.pop %v4741
  %v4743 = vmul.f32 %v4738, %v4742
  %v4744 = vpack.c.bf16 %v4743, %v4743
  %s4745 = scalar_lea.vmem %s2, 56
  %4746 = vst [vmem:[%s4745] sm:$0xf] %v4744
  %v4747 = vld [vmem:[#allocation4] sm:$0xff]
  %v4748 = vld [vmem:[#allocation4 + $0x8] sm:$0xff]
  %v4749 = vld [vmem:[#allocation4 + $0x10] sm:$0xff]
  %v4750 = vld [vmem:[#allocation4 + $0x18] sm:$0xff]
  %v4751 = vld [vmem:[#allocation4 + $0x20] sm:$0xff]
  %v4752 = vld [vmem:[#allocation4 + $0x28] sm:$0xff]
  %v4753 = vld [vmem:[#allocation4 + $0x30] sm:$0xff]
  %v4754 = vld [vmem:[#allocation4 + $0x38] sm:$0xff]
  %v4755 = vld [vmem:[#allocation4 + $0x40] sm:$0xff]
  %v4756 = vld [vmem:[#allocation4 + $0x48] sm:$0xff]
  %v4757 = vld [vmem:[#allocation4 + $0x50] sm:$0xff]
  %v4758 = vld [vmem:[#allocation4 + $0x58] sm:$0xff]
  %v4759 = vld [vmem:[#allocation4 + $0x60] sm:$0xff]
  %v4760 = vld [vmem:[#allocation4 + $0x68] sm:$0xff]
  %v4761 = vld [vmem:[#allocation4 + $0x70] sm:$0xff]
  %v4762 = vld [vmem:[#allocation4 + $0x78] sm:$0xff]
  %v4763 = vld [vmem:[#allocation4 + $0x80] sm:$0xff]
  %v4764 = vld [vmem:[#allocation4 + $0x88] sm:$0xff]
  %v4765 = vld [vmem:[#allocation4 + $0x90] sm:$0xff]
  %v4766 = vld [vmem:[#allocation4 + $0x98] sm:$0xff]
  %v4767 = vld [vmem:[#allocation4 + $0xa0] sm:$0xff]
  %v4768 = vld [vmem:[#allocation4 + $0xa8] sm:$0xff]
  %v4769 = vld [vmem:[#allocation4 + $0xb0] sm:$0xff]
  %v4770 = vld [vmem:[#allocation4 + $0xb8] sm:$0xff]
  %v4771 = vld [vmem:[#allocation4 + $0xc0] sm:$0xff]
  %v4772 = vld [vmem:[#allocation4 + $0xc8] sm:$0xff]
  %v4773 = vld [vmem:[#allocation4 + $0xd0] sm:$0xff]
  %v4774 = vld [vmem:[#allocation4 + $0xd8] sm:$0xff]
  %v4775 = vld [vmem:[#allocation4 + $0xe0] sm:$0xff]
  %v4776 = vld [vmem:[#allocation4 + $0xe8] sm:$0xff]
  %v4777 = vld [vmem:[#allocation4 + $0xf0] sm:$0xff]
  %v4778 = vld [vmem:[#allocation4 + $0xf8] sm:$0xff]
  %s4779 = scalar_lea.vmem %s0, 240
  %v4780 = vld [vmem:[%s4779] sm:$0xff]
  %v4781 = vld [vmem:[%s4779 + $0x8] sm:$0xff]
  %v4782 = vunpack.c.l.bf16 %v4780
  %v4783 = vunpack.c.h.bf16 %v4780
  %v4784 = vunpack.c.l.bf16 %v4781
  %v4785 = vunpack.c.h.bf16 %v4781
  %v4818 = vunpack.c.l.b16 %v4747
  %v4819 = vunpack.c.h.b16 %v4747
  %v4820 = vunpack.c.l.b16 %v4748
  %v4821 = vunpack.c.h.b16 %v4748
  %v4822 = vunpack.c.l.b16 %v4749
  %v4823 = vunpack.c.h.b16 %v4749
  %v4824 = vunpack.c.l.b16 %v4750
  %v4825 = vunpack.c.h.b16 %v4750
  %v4826 = vunpack.c.l.b16 %v4751
  %v4827 = vunpack.c.h.b16 %v4751
  %v4828 = vunpack.c.l.b16 %v4752
  %v4829 = vunpack.c.h.b16 %v4752
  %v4830 = vunpack.c.l.b16 %v4753
  %v4831 = vunpack.c.h.b16 %v4753
  %v4832 = vunpack.c.l.b16 %v4754
  %v4833 = vunpack.c.h.b16 %v4754
  %v4834 = vunpack.c.l.b16 %v4755
  %v4835 = vunpack.c.h.b16 %v4755
  %v4836 = vunpack.c.l.b16 %v4756
  %v4837 = vunpack.c.h.b16 %v4756
  %v4838 = vunpack.c.l.b16 %v4757
  %v4839 = vunpack.c.h.b16 %v4757
  %v4840 = vunpack.c.l.b16 %v4758
  %v4841 = vunpack.c.h.b16 %v4758
  %v4842 = vunpack.c.l.b16 %v4759
  %v4843 = vunpack.c.h.b16 %v4759
  %v4844 = vunpack.c.l.b16 %v4760
  %v4845 = vunpack.c.h.b16 %v4760
  %v4846 = vunpack.c.l.b16 %v4761
  %v4847 = vunpack.c.h.b16 %v4761
  %v4848 = vunpack.c.l.b16 %v4762
  %v4849 = vunpack.c.h.b16 %v4762
  %v4850 = vunpack.c.l.b16 %v4763
  %v4851 = vunpack.c.h.b16 %v4763
  %v4852 = vunpack.c.l.b16 %v4764
  %v4853 = vunpack.c.h.b16 %v4764
  %v4854 = vunpack.c.l.b16 %v4765
  %v4855 = vunpack.c.h.b16 %v4765
  %v4856 = vunpack.c.l.b16 %v4766
  %v4857 = vunpack.c.h.b16 %v4766
  %v4858 = vunpack.c.l.b16 %v4767
  %v4859 = vunpack.c.h.b16 %v4767
  %v4860 = vunpack.c.l.b16 %v4768
  %v4861 = vunpack.c.h.b16 %v4768
  %v4862 = vunpack.c.l.b16 %v4769
  %v4863 = vunpack.c.h.b16 %v4769
  %v4864 = vunpack.c.l.b16 %v4770
  %v4865 = vunpack.c.h.b16 %v4770
  %v4866 = vunpack.c.l.b16 %v4771
  %v4867 = vunpack.c.h.b16 %v4771
  %v4868 = vunpack.c.l.b16 %v4772
  %v4869 = vunpack.c.h.b16 %v4772
  %v4870 = vunpack.c.l.b16 %v4773
  %v4871 = vunpack.c.h.b16 %v4773
  %v4872 = vunpack.c.l.b16 %v4774
  %v4873 = vunpack.c.h.b16 %v4774
  %v4874 = vunpack.c.l.b16 %v4775
  %v4875 = vunpack.c.h.b16 %v4775
  %v4876 = vunpack.c.l.b16 %v4776
  %v4877 = vunpack.c.h.b16 %v4776
  %v4878 = vunpack.c.l.b16 %v4777
  %v4879 = vunpack.c.h.b16 %v4777
  %v4880 = vunpack.c.l.b16 %v4778
  %v4881 = vunpack.c.h.b16 %v4778
  %v4882 = vpack.c.b16 %v4822, %v4818
  %v4883 = vpack.c.b16 %v4823, %v4819
  %v4884 = vpack.c.b16 %v4824, %v4820
  %v4885 = vpack.c.b16 %v4825, %v4821
  %v4886 = vpack.c.b16 %v4830, %v4826
  %v4887 = vpack.c.b16 %v4831, %v4827
  %v4888 = vpack.c.b16 %v4832, %v4828
  %v4889 = vpack.c.b16 %v4833, %v4829
  %v4890 = vpack.c.b16 %v4838, %v4834
  %v4891 = vpack.c.b16 %v4839, %v4835
  %v4892 = vpack.c.b16 %v4840, %v4836
  %v4893 = vpack.c.b16 %v4841, %v4837
  %v4894 = vpack.c.b16 %v4846, %v4842
  %v4895 = vpack.c.b16 %v4847, %v4843
  %v4896 = vpack.c.b16 %v4848, %v4844
  %v4897 = vpack.c.b16 %v4849, %v4845
  %v4898 = vpack.c.b16 %v4854, %v4850
  %v4899 = vpack.c.b16 %v4855, %v4851
  %v4900 = vpack.c.b16 %v4856, %v4852
  %v4901 = vpack.c.b16 %v4857, %v4853
  %v4902 = vpack.c.b16 %v4862, %v4858
  %v4903 = vpack.c.b16 %v4863, %v4859
  %v4904 = vpack.c.b16 %v4864, %v4860
  %v4905 = vpack.c.b16 %v4865, %v4861
  %v4906 = vpack.c.b16 %v4870, %v4866
  %v4907 = vpack.c.b16 %v4871, %v4867
  %v4908 = vpack.c.b16 %v4872, %v4868
  %v4909 = vpack.c.b16 %v4873, %v4869
  %v4910 = vpack.c.b16 %v4878, %v4874
  %v4911 = vpack.c.b16 %v4879, %v4875
  %v4912 = vpack.c.b16 %v4880, %v4876
  %v4913 = vpack.c.b16 %v4881, %v4877
  %4946 = vmatprep.subr.bf16.mxu0 %v4911
  %4947 = vmatpush1.bf16.msra.mxu0 %v4910
  %4948 = vmatprep.subr.bf16.mxu0 %v4907
  %4949 = vmatpush1.bf16.msra.mxu0 %v4906
  %4950 = vmatprep.subr.bf16.mxu0 %v4903
  %4951 = vmatpush1.bf16.msra.mxu0 %v4902
  %4952 = vmatprep.subr.bf16.mxu0 %v4899
  %4953 = vmatpush1.bf16.msra.mxu0 %v4898
  %4954 = vmatprep.subr.bf16.mxu0 %v4895
  %4955 = vmatpush1.bf16.msra.mxu0 %v4894
  %4956 = vmatprep.subr.bf16.mxu0 %v4891
  %4957 = vmatpush1.bf16.msra.mxu0 %v4890
  %4958 = vmatprep.subr.bf16.mxu0 %v4887
  %4959 = vmatpush1.bf16.msra.mxu0 %v4886
  %4960 = vmatprep.subr.bf16.mxu0 %v4883
  %4961 = vmatpush1.bf16.msra.mxu0 %v4882
  %4962 = vmatprep.subr.bf16.mxu0 0
  %4963 = vmatpush2.bf16.msra.mxu0 0
  %4964 = vmatprep.subr.bf16.mxu0 0
  %4965 = vmatpush2.bf16.msra.mxu0 0
  %4966 = vmatprep.subr.bf16.mxu0 0
  %4967 = vmatpush2.bf16.msra.mxu0 0
  %4968 = vmatprep.subr.bf16.mxu0 0
  %4969 = vmatpush2.bf16.msra.mxu0 0
  %4970 = vmatprep.subr.bf16.mxu0 0
  %4971 = vmatpush2.bf16.msra.mxu0 0
  %4972 = vmatprep.subr.bf16.mxu0 0
  %4973 = vmatpush2.bf16.msra.mxu0 0
  %4974 = vmatprep.subr.bf16.mxu0 0
  %4975 = vmatpush2.bf16.msra.mxu0 0
  %4976 = vmatprep.subr.bf16.mxu0 0
  %4977 = vmatpush2.bf16.msra.mxu0 0
  %4978 = vmatprep.mubr.bf16.mxu0 0
  %4979 = vmatmul.mubr.bf16.gmra.mxu0 %v4744
  %v4980 = vpop.f32.mrf.mxu0
  %v4981 = vadd.f32 %v4782, %v4980
  %v4982 = vpop.f32.mrf.mxu0
  %v4983 = vadd.f32 %v4783, %v4982
  %v4984 = vpop.f32.mrf.mxu0
  %v4985 = vpop.f32.mrf.mxu0
  %4986 = vdwg.mxu0
  %4987 = vmatprep.subr.bf16.mxu0 %v4913
  %4988 = vmatpush1.bf16.msra.mxu0 %v4912
  %4989 = vmatprep.subr.bf16.mxu0 %v4909
  %4990 = vmatpush1.bf16.msra.mxu0 %v4908
  %4991 = vmatprep.subr.bf16.mxu0 %v4905
  %4992 = vmatpush1.bf16.msra.mxu0 %v4904
  %4993 = vmatprep.subr.bf16.mxu0 %v4901
  %4994 = vmatpush1.bf16.msra.mxu0 %v4900
  %4995 = vmatprep.subr.bf16.mxu0 %v4897
  %4996 = vmatpush1.bf16.msra.mxu0 %v4896
  %4997 = vmatprep.subr.bf16.mxu0 %v4893
  %4998 = vmatpush1.bf16.msra.mxu0 %v4892
  %4999 = vmatprep.subr.bf16.mxu0 %v4889
  %5000 = vmatpush1.bf16.msra.mxu0 %v4888
  %5001 = vmatprep.subr.bf16.mxu0 %v4885
  %5002 = vmatpush1.bf16.msra.mxu0 %v4884
  %5003 = vmatprep.subr.bf16.mxu0 0
  %5004 = vmatpush2.bf16.msra.mxu0 0
  %5005 = vmatprep.subr.bf16.mxu0 0
  %5006 = vmatpush2.bf16.msra.mxu0 0
  %5007 = vmatprep.subr.bf16.mxu0 0
  %5008 = vmatpush2.bf16.msra.mxu0 0
  %5009 = vmatprep.subr.bf16.mxu0 0
  %5010 = vmatpush2.bf16.msra.mxu0 0
  %5011 = vmatprep.subr.bf16.mxu0 0
  %5012 = vmatpush2.bf16.msra.mxu0 0
  %5013 = vmatprep.subr.bf16.mxu0 0
  %5014 = vmatpush2.bf16.msra.mxu0 0
  %5015 = vmatprep.subr.bf16.mxu0 0
  %5016 = vmatpush2.bf16.msra.mxu0 0
  %5017 = vmatprep.subr.bf16.mxu0 0
  %5018 = vmatpush2.bf16.msra.mxu0 0
  %5019 = vmatprep.mubr.bf16.mxu0 0
  %5020 = vmatmul.mubr.bf16.gmra.mxu0 %v4744
  %v5021 = vpop.f32.mrf.mxu0
  %v5022 = vadd.f32 %v4784, %v5021
  %v5023 = vpop.f32.mrf.mxu0
  %v5024 = vadd.f32 %v4785, %v5023
  %v5025 = vpop.f32.mrf.mxu0
  %v5026 = vpop.f32.mrf.mxu0
  %5027 = vdwg.mxu0
  %v5028 = vxor.u32 %v4981, 2147483648
  %v5029 = vmul.f32 %v5028, 1.442695
  %v5030 = vpow.pop %v5029
  %v5031 = vadd.f32 %v5030, 1.0
  %v5032 = vrcp.pop %v5031
  %v5033 = vmul.f32 1.0, %v5032
  %v5034 = vxor.u32 %v4983, 2147483648
  %v5035 = vmul.f32 %v5034, 1.442695
  %v5036 = vpow.pop %v5035
  %v5037 = vadd.f32 %v5036, 1.0
  %v5038 = vrcp.pop %v5037
  %v5039 = vmul.f32 1.0, %v5038
  %v5040 = vtanh.pop %v5022
  %v5041 = vxor.u32 %v5024, 2147483648
  %v5042 = vmul.f32 %v5041, 1.442695
  %v5043 = vpow.pop %v5042
  %v5044 = vadd.f32 %v5043, 1.0
  %v5045 = vrcp.pop %v5044
  %v5046 = vmul.f32 1.0, %v5045
  %v5047 = vmul.f32 %v5039, %v4741
  %v5048 = vmul.f32 %v5033, %v5040
  %v5049 = vadd.f32 %v5047, %v5048
  %v5050 = vtanh.pop %v5049
  %v5051 = vmul.f32 %v5046, %v5050
  %v5052 = vpack.c.bf16 %v5051, %v5051
  %s5053 = scalar_lea.vmem %s2, 60
  %5054 = vst [vmem:[%s5053] sm:$0xf] %v5052
  %5055 = vst [vmem:[#allocation2] sm:$0xf] %v5052
  %5056 = vst [vmem:[#allocation3] sm:$0xff] %v5049
  // Predicated region
  $region44: #{awd_lstm_layer_forward.1} parent=0 // pred_check
    %p5057 = pneg %p12
  $region45: #{awd_lstm_layer_forward.1} parent=0 // pred_check_branch
    %5059 = sbr.rel (%p5057) target = $region47
  $region46: #{awd_lstm_layer_forward.1} parent=0 // pred_region
    %5060 = vst [vmem:[%s3] sm:$0xff] %v5049
  $region47: #{awd_lstm_layer_forward.1} parent=0 // pred_fallthru
    _
  // Predicated region
  $region48: #{awd_lstm_layer_forward.1} parent=0 // pred_check
    _
  $region49: #{awd_lstm_layer_forward.1} parent=0 // pred_check_branch
    %5062 = sbr.rel (0) target = $region51
  $region50: #{awd_lstm_layer_forward.1} parent=0 // pred_region
    _
  $region51: #{awd_lstm_layer_forward.1} parent=0 // pred_fallthru
    _
  // Predicated region
  $region52: #{awd_lstm_layer_forward.1} parent=0 // pred_check
    _
  $region53: #{awd_lstm_layer_forward.1} parent=0 // pred_check_branch
    %5064 = sbr.rel (0) target = $region55
  $region54: #{awd_lstm_layer_forward.1} parent=0 // pred_region
    _
  $region55: #{awd_lstm_layer_forward.1} parent=0 // pred_fallthru
    _
  // Predicated region
  $region56: #{awd_lstm_layer_forward.1} parent=0 // pred_check
    _
  $region57: #{awd_lstm_layer_forward.1} parent=0 // pred_check_branch
    %5066 = sbr.rel (0) target = $region59
  $region58: #{awd_lstm_layer_forward.1} parent=0 // pred_region
    _
  $region59: #{awd_lstm_layer_forward.1} parent=0 // pred_fallthru
    _
  // Predicated region
  $region60: #{awd_lstm_layer_forward.1} parent=0 // pred_check
    _
  $region61: #{awd_lstm_layer_forward.1} parent=0 // pred_check_branch
    %5068 = sbr.rel (0) target = $region63
  $region62: #{awd_lstm_layer_forward.1} parent=0 // pred_region
    _
  $region63: #{awd_lstm_layer_forward.1} parent=0 // pred_fallthru
    _
  %5069 = vsyncmov [#allocation5]
  %s5070 = vpop.sfrf %5069
  %p5071 = scmp.eq.s32.totalorder %s5070, 0
  %p5072 = pneg %p5071
  %5074 = shalt.err (%p5072)

</llo_original>
